<compile_context>
chip_gen: v5e
topology: v5e:2x2
jax: 0.10.0
libtpu: 0.0.40
codegen_flags: <defaults>
</compile_context>

<pallas_src>
import jax
import jax.numpy as jnp
from jax.experimental import pallas as pl
from jax.experimental.pallas import tpu as pltpu

# ---- problem sizes ----
NUM_UNIVERSES = 8                   # MultiverseProcessor(num_universes=8)
S = 8                               # seq_len per sample
D = 32                              # model dim of the base FractalSelfAttention
NUM_HEADS = 8
HEAD_DIM = D // NUM_HEADS           # 4
HALF = HEAD_DIM // 2                # 2 (re / im split inside a head)
SCALE = HEAD_DIM ** (-0.5)
RECURSIVE_DEPTH = 2
JULIA_C_RE = 0.1                    # deterministic init of the complex parameter
JULIA_C_IM = 0.7

B = NUM_UNIVERSES                   # total batch: one sample per universe
R = B * S * NUM_HEADS               # 512 flattened (universe, query, head) rows
K = B * S                           # 64 flattened (universe, key) rows
NEG_INF = -1e9


def _fractal(z, depth):
    """Julia-set recursion, vectorized over all heads.

    `z` is (..., D) in the permuted layout [re of all heads | im of all heads],
    so one 16-lane split + one concat per depth level covers every head."""
    if depth <= 0:
        return z
    re = z[..., : D // 2]
    im = z[..., D // 2:]
    z_new = jnp.concatenate(
        [re * re - im * im + JULIA_C_RE, 2.0 * re * im + JULIA_C_IM], axis=-1)
    return 0.5 * z_new + 0.5 * _fractal(0.5 * z, depth - 1)


def multiverse_kernel(x_ref, wqkv_ref, bqkv_ref, wo_ref, bo_ref,
                      head_mask_ref, uni_mask_ref, head_sel_ref, o_ref):
    f32 = jnp.float32
    bf16 = jnp.bfloat16

    x = x_ref[...].astype(bf16)                                  # (U, S, D)

    # Fused q|k|v projection: one universe-batched einsum, bf16 in / f32 acc.
    qkv = jnp.einsum('usd,udf->usf', x, wqkv_ref[...],
                     preferred_element_type=f32) + bqkv_ref[...]  # (U, S, 3D)
    qkv2 = qkv.reshape(B * S, 3 * D)                              # (64, 96)
    q = qkv2[:, :D]                    # permuted re|im layout
    k = qkv2[:, D:2 * D]               # permuted re|im layout
    v = qkv2[:, 2 * D:]                # original head layout

    # Fractal recursion on full-width tiles (q/k are in permuted re|im layout).
    qf = _fractal(q, RECURSIVE_DEPTH)                             # (64, 32) f32
    kf = _fractal(k, RECURSIVE_DEPTH)

    # Flattened all-universe, all-head scores.  qm rows are ordered (u, s, h):
    # each (u, s) query row is repeated once per head, masked to that head's
    # permuted lanes (precomputed head_mask).  Keys are the stacked (u, s) rows
    # of kf.  One (512,32)@(32,64) matmul gives every score at once.
    qm = (qf[:, None, :] * head_mask_ref[...][None, :, :]).reshape(R, D)
    scores = jnp.einsum('rd,kd->rk', qm.astype(bf16), kf.astype(bf16),
                        preferred_element_type=f32) * SCALE       # (512, 64)
    # Additive block-diagonal mask: -1e9 on keys from a different universe.
    scores = scores + uni_mask_ref[...]

    # Softmax over keys: one wide max + one wide sum for all rows; approximate
    # reciprocal runs on the EUP (rows may not sum to exactly 1).
    m = jnp.max(scores, axis=-1, keepdims=True)
    p = jnp.exp(scores - m)
    p = p * pl.reciprocal(jnp.sum(p, axis=-1, keepdims=True), approx=True)
    # TODO(synk): attention dropout omitted (identity in eval mode).

    # P @ V for every (universe, query, head) row at once: (512,64)@(64,32).
    ctx_all = jnp.einsum('rk,kd->rd', p.astype(bf16), v.astype(bf16),
                         preferred_element_type=f32)              # (512, 32)
    # Keep each head's own 4 output lanes and sum the head axis out.
    ctx = jnp.sum(ctx_all.reshape(B * S, NUM_HEADS, D)
                  * head_sel_ref[...][None, :, :], axis=1)        # (64, 32)

    # Output projection: one flat matmul against all universes' Wo laid side by
    # side, then each universe row-group keeps its own 32-column block.
    ow = jnp.einsum('rd,df->rf', ctx.astype(bf16), wo_ref[...],
                    preferred_element_type=f32)                   # (64, 256)
    out = jnp.stack([ow[u * S:(u + 1) * S, u * D:(u + 1) * D]
                     for u in range(NUM_UNIVERSES)], axis=0)      # (U, S, D)
    o_ref[...] = out + bo_ref[...]


def _full_spec(shape):
    return pl.BlockSpec(shape, lambda i: (0,) * len(shape))


@jax.jit
def multiverse_forward(x, wqkv, bqkv, wo_cat, bo_r, head_mask, uni_mask, head_sel):
    return pl.pallas_call(
        multiverse_kernel,
        out_shape=jax.ShapeDtypeStruct((B, S, D), jnp.float32),
        grid_spec=pltpu.PrefetchScalarGridSpec(
            num_scalar_prefetch=0,
            grid=(1,),                          # single step: overhead paid once
            in_specs=[
                _full_spec((B, S, D)),          # x
                _full_spec((B, D, 3 * D)),      # fused Wq|Wk|Wv (bf16, q/k permuted)
                _full_spec((B, 1, 3 * D)),      # fused bias (f32)
                _full_spec((D, B * D)),         # all universes' Wo side by side (bf16)
                _full_spec((B, 1, D)),          # bo (f32)
                _full_spec((NUM_HEADS, D)),     # head lane mask (permuted layout)
                _full_spec((R, K)),             # additive cross-universe mask
                _full_spec((NUM_HEADS, D)),     # head output selector
            ],
            out_specs=_full_spec((B, S, D)),
        ),
        compiler_params=pltpu.CompilerParams(
            dimension_semantics=("arbitrary",)),
    )(x, wqkv, bqkv, wo_cat, bo_r, head_mask, uni_mask, head_sel)


def prepare_params(wq, bq, wk, bk, wv, bv, wo, bo):
    """One-time weight/mask preprocessing (out of the per-call hot path):
    re|im head-column permutation for Wq/Wk, q|k|v fusion, Wo concatenation,
    bf16 weight cast, and all selection masks as constant inputs."""
    heads = jnp.arange(NUM_HEADS)
    re_cols = (heads[:, None] * HEAD_DIM + jnp.arange(HALF)[None, :]).reshape(-1)
    im_cols = re_cols + HALF
    perm = jnp.concatenate([re_cols, im_cols])                    # (D,)

    wqkv = jnp.concatenate([wq[:, :, perm], wk[:, :, perm], wv], axis=-1)
    bqkv = jnp.concatenate([bq[:, perm], bk[:, perm], bv], axis=-1)
    wo_cat = jnp.transpose(wo, (1, 0, 2)).reshape(D, NUM_UNIVERSES * D)

    d = jnp.arange(D)
    # head h's lanes in the permuted re|im layout
    head_mask = ((d[None, :] % (NUM_HEADS * HALF)) // HALF
                 == heads[:, None]).astype(jnp.float32)           # (H, D)
    # head h's lanes in the original (v / context) layout
    head_sel = (d[None, :] // HEAD_DIM == heads[:, None]).astype(jnp.float32)

    r = jnp.arange(R)
    c = jnp.arange(K)
    uni_mask = jnp.where((r[:, None] // (S * NUM_HEADS)) == (c[None, :] // S),
                         0.0, NEG_INF).astype(jnp.float32)        # (512, 64)

    return (wqkv.astype(jnp.bfloat16),
            bqkv.reshape(B, 1, 3 * D).astype(jnp.float32),
            wo_cat.astype(jnp.bfloat16),
            bo.reshape(B, 1, D).astype(jnp.float32),
            head_mask, uni_mask, head_sel)


# ---------------- pure-JAX reference (for verification) ----------------
def _ref_fractal_head(z, depth):
    if depth <= 0:
        return z
    half = HEAD_DIM // 2
    zr, zi = z[..., :half], z[..., half:]
    zn = jnp.concatenate([zr * zr - zi * zi + JULIA_C_RE,
                          2.0 * zr * zi + JULIA_C_IM], axis=-1)
    return 0.5 * zn + 0.5 * _ref_fractal_head(0.5 * z, depth - 1)


def _ref_fractal_attention(x_u, wq, bq, wk, bk, wv, bv, wo, bo):
    q = x_u @ wq + bq
    k = x_u @ wk + bk
    v = x_u @ wv + bv

    def split_heads(t):
        return t.reshape(t.shape[0], S, NUM_HEADS, HEAD_DIM).transpose(0, 2, 1, 3)

    qh, kh, vh = split_heads(q), split_heads(k), split_heads(v)
    qfh = _ref_fractal_head(qh, RECURSIVE_DEPTH)
    kfh = _ref_fractal_head(kh, RECURSIVE_DEPTH)
    attn = jax.nn.softmax(jnp.einsum('bhqd,bhkd->bhqk', qfh, kfh) * SCALE, axis=-1)
    o = jnp.einsum('bhqk,bhkd->bhqd', attn, vh)
    o = o.transpose(0, 2, 1, 3).reshape(x_u.shape[0], S, D)
    return o @ wo + bo


def reference_multiverse(x, wq, bq, wk, bk, wv, bv, wo, bo):
    # torch.chunk(x, U, dim=0) -> per-universe processor -> torch.cat
    chunks = jnp.split(x, NUM_UNIVERSES, axis=0)
    outs = [_ref_fractal_attention(chunks[u], wq[u], bq[u], wk[u], bk[u],
                                   wv[u], bv[u], wo[u], bo[u])
            for u in range(NUM_UNIVERSES)]
    return jnp.concatenate(outs, axis=0)


if __name__ == "__main__":
    key = jax.random.PRNGKey(0)
    kx, kq, kk, kv, ko, kbq, kbk, kbv, kbo = jax.random.split(key, 9)

    # batch = num_universes = 8 -> each universe processes one (1, S, D) chunk
    x = jax.random.normal(kx, (B, S, D), dtype=jnp.float32)

    # per-universe parameters, stored as (in_features, out_features)
    init = 1.0 / jnp.sqrt(jnp.float32(D))
    wq = jax.random.normal(kq, (B, D, D), dtype=jnp.float32) * init
    wk = jax.random.normal(kk, (B, D, D), dtype=jnp.float32) * init
    wv = jax.random.normal(kv, (B, D, D), dtype=jnp.float32) * init
    wo = jax.random.normal(ko, (B, D, D), dtype=jnp.float32) * init
    bq = jax.random.normal(kbq, (B, D), dtype=jnp.float32) * 0.01
    bk = jax.random.normal(kbk, (B, D), dtype=jnp.float32) * 0.01
    bv = jax.random.normal(kbv, (B, D), dtype=jnp.float32) * 0.01
    bo = jax.random.normal(kbo, (B, D), dtype=jnp.float32) * 0.01

    prepped = prepare_params(wq, bq, wk, bk, wv, bv, wo, bo)
    out = multiverse_forward(x, *prepped)
    out = jax.block_until_ready(out)

    ref = reference_multiverse(x, wq, bq, wk, bk, wv, bv, wo, bo)
    assert out.shape == (B, S, D)
    # bf16 MXU operands (kernel) vs default-precision MXU (reference) round
    # independently through a softmax, plus the approx EUP reciprocal, so small
    # numeric drift is expected; structural bugs would show as O(1) errors.
    max_err = float(jnp.max(jnp.abs(out - ref)))
    assert max_err < 1e-1, f"mismatch vs pure-JAX reference: {max_err}"

    print("KERNEL_OK")
</pallas_src>

<mosaic_0001>
module attributes {stable_mosaic.version = 11 : i64} {
  func.func @multiverse_kernel(%arg0: i32, %arg1: memref<8x8x32xf32, #tpu.memory_space<vmem>>, %arg2: memref<8x32x96xbf16, #tpu.memory_space<vmem>>, %arg3: memref<8x1x96xf32, #tpu.memory_space<vmem>>, %arg4: memref<32x256xbf16, #tpu.memory_space<vmem>>, %arg5: memref<8x1x32xf32, #tpu.memory_space<vmem>>, %arg6: memref<8x32xf32, #tpu.memory_space<vmem>>, %arg7: memref<512x64xf32, #tpu.memory_space<vmem>>, %arg8: memref<8x32xf32, #tpu.memory_space<vmem>>, %arg9: memref<8x8x32xf32, #tpu.memory_space<vmem>>) attributes {dimension_semantics = [#tpu.dimension_semantics<arbitrary>], iteration_bounds = array<i64: 1>, scalar_prefetch = 0 : i64, scratch_operands = 0 : i64, tpu.core_type = #tpu.core_type<tc>, window_params = [{pipeline_mode = #tpu.pipeline_mode<synchronous>, transform_indices = @transform_0, window_bounds = array<i64: 8, 8, 32>}, {pipeline_mode = #tpu.pipeline_mode<synchronous>, transform_indices = @transform_1, window_bounds = array<i64: 8, 32, 96>}, {pipeline_mode = #tpu.pipeline_mode<synchronous>, transform_indices = @transform_2, window_bounds = array<i64: 8, 1, 96>}, {pipeline_mode = #tpu.pipeline_mode<synchronous>, transform_indices = @transform_3, window_bounds = array<i64: 32, 256>}, {pipeline_mode = #tpu.pipeline_mode<synchronous>, transform_indices = @transform_4, window_bounds = array<i64: 8, 1, 32>}, {pipeline_mode = #tpu.pipeline_mode<synchronous>, transform_indices = @transform_5, window_bounds = array<i64: 8, 32>}, {pipeline_mode = #tpu.pipeline_mode<synchronous>, transform_indices = @transform_6, window_bounds = array<i64: 512, 64>}, {pipeline_mode = #tpu.pipeline_mode<synchronous>, transform_indices = @transform_7, window_bounds = array<i64: 8, 32>}, {pipeline_mode = #tpu.pipeline_mode<synchronous>, transform_indices = @transform_8, window_bounds = array<i64: 8, 8, 32>}]} {
    %c0 = arith.constant 0 : index
    %c0_0 = arith.constant 0 : index
    %c0_1 = arith.constant 0 : index
    %0 = vector.load %arg1[%c0, %c0_0, %c0_1] : memref<8x8x32xf32, #tpu.memory_space<vmem>>, vector<8x8x32xf32>
    %1 = arith.truncf %0 : vector<8x8x32xf32> to vector<8x8x32xbf16>
    %c0_2 = arith.constant 0 : index
    %c0_3 = arith.constant 0 : index
    %c0_4 = arith.constant 0 : index
    %2 = vector.load %arg2[%c0_2, %c0_3, %c0_4] : memref<8x32x96xbf16, #tpu.memory_space<vmem>>, vector<8x32x96xbf16>
    "tpu.trace_start"() <{level = 10 : i32, message = "usd,udf->usf"}> : () -> ()
    %cst = arith.constant dense<0.000000e+00> : vector<8x8x96xf32>
    %3 = tpu.matmul %1, %2, %cst {dimension_numbers = #tpu.dot_dimension_numbers<[2], [1], [1], [2], [0, 0, 0, 1, 1, 2], [0], [0]>} : vector<8x8x32xbf16>, vector<8x32x96xbf16>, vector<8x8x96xf32> -> vector<8x8x96xf32>
    "tpu.trace_stop"() : () -> ()
    %c0_5 = arith.constant 0 : index
    %c0_6 = arith.constant 0 : index
    %c0_7 = arith.constant 0 : index
    %4 = vector.load %arg3[%c0_5, %c0_6, %c0_7] : memref<8x1x96xf32, #tpu.memory_space<vmem>>, vector<8x1x96xf32>
    %5 = vector.broadcast %4 : vector<8x1x96xf32> to vector<8x8x96xf32>
    %6 = arith.addf %3, %5 : vector<8x8x96xf32>
    %7 = vector.shape_cast %6 : vector<8x8x96xf32> to vector<64x96xf32>
    %8 = vector.extract_strided_slice %7 {offsets = [0, 0], sizes = [64, 32], strides = [1, 1]} : vector<64x96xf32> to vector<64x32xf32>
    %9 = vector.extract_strided_slice %7 {offsets = [0, 32], sizes = [64, 32], strides = [1, 1]} : vector<64x96xf32> to vector<64x32xf32>
    %10 = vector.extract_strided_slice %7 {offsets = [0, 64], sizes = [64, 32], strides = [1, 1]} : vector<64x96xf32> to vector<64x32xf32>
    %11 = vector.extract_strided_slice %8 {offsets = [0, 0], sizes = [64, 16], strides = [1, 1]} : vector<64x32xf32> to vector<64x16xf32>
    %12 = vector.extract_strided_slice %8 {offsets = [0, 16], sizes = [64, 16], strides = [1, 1]} : vector<64x32xf32> to vector<64x16xf32>
    %13 = arith.mulf %11, %11 : vector<64x16xf32>
    %14 = arith.mulf %12, %12 : vector<64x16xf32>
    %15 = arith.subf %13, %14 : vector<64x16xf32>
    %cst_8 = arith.constant 1.000000e-01 : f32
    %16 = vector.broadcast %cst_8 : f32 to vector<64x16xf32>
    %17 = arith.addf %15, %16 : vector<64x16xf32>
    %cst_9 = arith.constant 2.000000e+00 : f32
    %18 = vector.broadcast %cst_9 : f32 to vector<64x16xf32>
    %19 = arith.mulf %18, %11 : vector<64x16xf32>
    %20 = arith.mulf %19, %12 : vector<64x16xf32>
    %cst_10 = arith.constant 0.699999988 : f32
    %21 = vector.broadcast %cst_10 : f32 to vector<64x16xf32>
    %22 = arith.addf %20, %21 : vector<64x16xf32>
    %23 = tpu.concatenate %17, %22 in 1 : vector<64x16xf32>, vector<64x16xf32> -> vector<64x32xf32>
    %cst_11 = arith.constant 5.000000e-01 : f32
    %24 = vector.broadcast %cst_11 : f32 to vector<64x32xf32>
    %25 = arith.mulf %24, %23 : vector<64x32xf32>
    %cst_12 = arith.constant 5.000000e-01 : f32
    %26 = vector.broadcast %cst_12 : f32 to vector<64x32xf32>
    %27 = arith.mulf %26, %8 : vector<64x32xf32>
    %28 = vector.extract_strided_slice %27 {offsets = [0, 0], sizes = [64, 16], strides = [1, 1]} : vector<64x32xf32> to vector<64x16xf32>
    %29 = vector.extract_strided_slice %27 {offsets = [0, 16], sizes = [64, 16], strides = [1, 1]} : vector<64x32xf32> to vector<64x16xf32>
    %30 = arith.mulf %28, %28 : vector<64x16xf32>
    %31 = arith.mulf %29, %29 : vector<64x16xf32>
    %32 = arith.subf %30, %31 : vector<64x16xf32>
    %cst_13 = arith.constant 1.000000e-01 : f32
    %33 = vector.broadcast %cst_13 : f32 to vector<64x16xf32>
    %34 = arith.addf %32, %33 : vector<64x16xf32>
    %cst_14 = arith.constant 2.000000e+00 : f32
    %35 = vector.broadcast %cst_14 : f32 to vector<64x16xf32>
    %36 = arith.mulf %35, %28 : vector<64x16xf32>
    %37 = arith.mulf %36, %29 : vector<64x16xf32>
    %cst_15 = arith.constant 0.699999988 : f32
    %38 = vector.broadcast %cst_15 : f32 to vector<64x16xf32>
    %39 = arith.addf %37, %38 : vector<64x16xf32>
    %40 = tpu.concatenate %34, %39 in 1 : vector<64x16xf32>, vector<64x16xf32> -> vector<64x32xf32>
    %cst_16 = arith.constant 5.000000e-01 : f32
    %41 = vector.broadcast %cst_16 : f32 to vector<64x32xf32>
    %42 = arith.mulf %41, %40 : vector<64x32xf32>
    %cst_17 = arith.constant 5.000000e-01 : f32
    %43 = vector.broadcast %cst_17 : f32 to vector<64x32xf32>
    %44 = arith.mulf %43, %27 : vector<64x32xf32>
    %cst_18 = arith.constant 5.000000e-01 : f32
    %45 = vector.broadcast %cst_18 : f32 to vector<64x32xf32>
    %46 = arith.mulf %45, %44 : vector<64x32xf32>
    %47 = arith.addf %42, %46 : vector<64x32xf32>
    %cst_19 = arith.constant 5.000000e-01 : f32
    %48 = vector.broadcast %cst_19 : f32 to vector<64x32xf32>
    %49 = arith.mulf %48, %47 : vector<64x32xf32>
    %50 = arith.addf %25, %49 : vector<64x32xf32>
    %51 = vector.extract_strided_slice %9 {offsets = [0, 0], sizes = [64, 16], strides = [1, 1]} : vector<64x32xf32> to vector<64x16xf32>
    %52 = vector.extract_strided_slice %9 {offsets = [0, 16], sizes = [64, 16], strides = [1, 1]} : vector<64x32xf32> to vector<64x16xf32>
    %53 = arith.mulf %51, %51 : vector<64x16xf32>
    %54 = arith.mulf %52, %52 : vector<64x16xf32>
    %55 = arith.subf %53, %54 : vector<64x16xf32>
    %cst_20 = arith.constant 1.000000e-01 : f32
    %56 = vector.broadcast %cst_20 : f32 to vector<64x16xf32>
    %57 = arith.addf %55, %56 : vector<64x16xf32>
    %cst_21 = arith.constant 2.000000e+00 : f32
    %58 = vector.broadcast %cst_21 : f32 to vector<64x16xf32>
    %59 = arith.mulf %58, %51 : vector<64x16xf32>
    %60 = arith.mulf %59, %52 : vector<64x16xf32>
    %cst_22 = arith.constant 0.699999988 : f32
    %61 = vector.broadcast %cst_22 : f32 to vector<64x16xf32>
    %62 = arith.addf %60, %61 : vector<64x16xf32>
    %63 = tpu.concatenate %57, %62 in 1 : vector<64x16xf32>, vector<64x16xf32> -> vector<64x32xf32>
    %cst_23 = arith.constant 5.000000e-01 : f32
    %64 = vector.broadcast %cst_23 : f32 to vector<64x32xf32>
    %65 = arith.mulf %64, %63 : vector<64x32xf32>
    %cst_24 = arith.constant 5.000000e-01 : f32
    %66 = vector.broadcast %cst_24 : f32 to vector<64x32xf32>
    %67 = arith.mulf %66, %9 : vector<64x32xf32>
    %68 = vector.extract_strided_slice %67 {offsets = [0, 0], sizes = [64, 16], strides = [1, 1]} : vector<64x32xf32> to vector<64x16xf32>
    %69 = vector.extract_strided_slice %67 {offsets = [0, 16], sizes = [64, 16], strides = [1, 1]} : vector<64x32xf32> to vector<64x16xf32>
    %70 = arith.mulf %68, %68 : vector<64x16xf32>
    %71 = arith.mulf %69, %69 : vector<64x16xf32>
    %72 = arith.subf %70, %71 : vector<64x16xf32>
    %cst_25 = arith.constant 1.000000e-01 : f32
    %73 = vector.broadcast %cst_25 : f32 to vector<64x16xf32>
    %74 = arith.addf %72, %73 : vector<64x16xf32>
    %cst_26 = arith.constant 2.000000e+00 : f32
    %75 = vector.broadcast %cst_26 : f32 to vector<64x16xf32>
    %76 = arith.mulf %75, %68 : vector<64x16xf32>
    %77 = arith.mulf %76, %69 : vector<64x16xf32>
    %cst_27 = arith.constant 0.699999988 : f32
    %78 = vector.broadcast %cst_27 : f32 to vector<64x16xf32>
    %79 = arith.addf %77, %78 : vector<64x16xf32>
    %80 = tpu.concatenate %74, %79 in 1 : vector<64x16xf32>, vector<64x16xf32> -> vector<64x32xf32>
    %cst_28 = arith.constant 5.000000e-01 : f32
    %81 = vector.broadcast %cst_28 : f32 to vector<64x32xf32>
    %82 = arith.mulf %81, %80 : vector<64x32xf32>
    %cst_29 = arith.constant 5.000000e-01 : f32
    %83 = vector.broadcast %cst_29 : f32 to vector<64x32xf32>
    %84 = arith.mulf %83, %67 : vector<64x32xf32>
    %cst_30 = arith.constant 5.000000e-01 : f32
    %85 = vector.broadcast %cst_30 : f32 to vector<64x32xf32>
    %86 = arith.mulf %85, %84 : vector<64x32xf32>
    %87 = arith.addf %82, %86 : vector<64x32xf32>
    %cst_31 = arith.constant 5.000000e-01 : f32
    %88 = vector.broadcast %cst_31 : f32 to vector<64x32xf32>
    %89 = arith.mulf %88, %87 : vector<64x32xf32>
    %90 = arith.addf %65, %89 : vector<64x32xf32>
    %91 = vector.shape_cast %50 : vector<64x32xf32> to vector<64x1x32xf32>
    %c0_32 = arith.constant 0 : index
    %c0_33 = arith.constant 0 : index
    %92 = vector.load %arg6[%c0_32, %c0_33] : memref<8x32xf32, #tpu.memory_space<vmem>>, vector<8x32xf32>
    %93 = vector.shape_cast %92 : vector<8x32xf32> to vector<1x8x32xf32>
    %94 = vector.broadcast %91 : vector<64x1x32xf32> to vector<64x8x32xf32>
    %95 = vector.broadcast %93 : vector<1x8x32xf32> to vector<64x8x32xf32>
    %96 = arith.mulf %94, %95 : vector<64x8x32xf32>
    %97 = vector.shape_cast %96 : vector<64x8x32xf32> to vector<512x32xf32>
    %98 = arith.truncf %97 : vector<512x32xf32> to vector<512x32xbf16>
    %99 = arith.truncf %90 : vector<64x32xf32> to vector<64x32xbf16>
    "tpu.trace_start"() <{level = 10 : i32, message = "rd,kd->rk"}> : () -> ()
    %cst_34 = arith.constant dense<0.000000e+00> : vector<512x64xf32>
    %100 = tpu.matmul %98, %99, %cst_34 {dimension_numbers = #tpu.dot_dimension_numbers<[1], [1], [0], [0], [0, 0, 1, 0], [], []>} : vector<512x32xbf16>, vector<64x32xbf16>, vector<512x64xf32> -> vector<512x64xf32>
    "tpu.trace_stop"() : () -> ()
    %cst_35 = arith.constant 5.000000e-01 : f32
    %101 = vector.broadcast %cst_35 : f32 to vector<512x64xf32>
    %102 = arith.mulf %100, %101 : vector<512x64xf32>
    %c0_36 = arith.constant 0 : index
    %c0_37 = arith.constant 0 : index
    %103 = vector.load %arg7[%c0_36, %c0_37] : memref<512x64xf32, #tpu.memory_space<vmem>>, vector<512x64xf32>
    %104 = arith.addf %102, %103 : vector<512x64xf32>
    %cst_38 = arith.constant dense<0xFF800000> : vector<512xf32>
    %105 = vector.multi_reduction <maximumf>, %104, %cst_38 [1] : vector<512x64xf32> to vector<512xf32>
    %106 = vector.shape_cast %105 : vector<512xf32> to vector<512x1xf32>
    %107 = vector.broadcast %106 : vector<512x1xf32> to vector<512x64xf32>
    %108 = arith.subf %104, %107 : vector<512x64xf32>
    %109 = math.exp %108 : vector<512x64xf32>
    %cst_39 = arith.constant dense<0.000000e+00> : vector<512xf32>
    %110 = vector.multi_reduction <add>, %109, %cst_39 [1] : vector<512x64xf32> to vector<512xf32>
    %111 = vector.shape_cast %110 : vector<512xf32> to vector<512x1xf32>
    %112 = tpu.reciprocal %111 {approx = true} : vector<512x1xf32> -> vector<512x1xf32>
    %113 = vector.broadcast %112 : vector<512x1xf32> to vector<512x64xf32>
    %114 = arith.mulf %109, %113 : vector<512x64xf32>
    %115 = arith.truncf %114 : vector<512x64xf32> to vector<512x64xbf16>
    %116 = arith.truncf %10 : vector<64x32xf32> to vector<64x32xbf16>
    "tpu.trace_start"() <{level = 10 : i32, message = "rk,kd->rd"}> : () -> ()
    %cst_40 = arith.constant dense<0.000000e+00> : vector<512x32xf32>
    %117 = tpu.matmul %115, %116, %cst_40 {dimension_numbers = #tpu.dot_dimension_numbers<[1], [0], [0], [1], [0, 0, 1, 1], [], []>} : vector<512x64xbf16>, vector<64x32xbf16>, vector<512x32xf32> -> vector<512x32xf32>
    "tpu.trace_stop"() : () -> ()
    %118 = vector.shape_cast %117 : vector<512x32xf32> to vector<64x8x32xf32>
    %c0_41 = arith.constant 0 : index
    %c0_42 = arith.constant 0 : index
    %119 = vector.load %arg8[%c0_41, %c0_42] : memref<8x32xf32, #tpu.memory_space<vmem>>, vector<8x32xf32>
    %120 = vector.shape_cast %119 : vector<8x32xf32> to vector<1x8x32xf32>
    %121 = vector.broadcast %120 : vector<1x8x32xf32> to vector<64x8x32xf32>
    %122 = arith.mulf %118, %121 : vector<64x8x32xf32>
    %cst_43 = arith.constant dense<0.000000e+00> : vector<64x32xf32>
    %123 = vector.multi_reduction <add>, %122, %cst_43 [1] : vector<64x8x32xf32> to vector<64x32xf32>
    %124 = arith.truncf %123 : vector<64x32xf32> to vector<64x32xbf16>
    %c0_44 = arith.constant 0 : index
    %c0_45 = arith.constant 0 : index
    %125 = vector.load %arg4[%c0_44, %c0_45] : memref<32x256xbf16, #tpu.memory_space<vmem>>, vector<32x256xbf16>
    "tpu.trace_start"() <{level = 10 : i32, message = "rd,df->rf"}> : () -> ()
    %cst_46 = arith.constant dense<0.000000e+00> : vector<64x256xf32>
    %126 = tpu.matmul %124, %125, %cst_46 {dimension_numbers = #tpu.dot_dimension_numbers<[1], [0], [0], [1], [0, 0, 1, 1], [], []>} : vector<64x32xbf16>, vector<32x256xbf16>, vector<64x256xf32> -> vector<64x256xf32>
    "tpu.trace_stop"() : () -> ()
    %127 = vector.extract_strided_slice %126 {offsets = [0, 0], sizes = [8, 32], strides = [1, 1]} : vector<64x256xf32> to vector<8x32xf32>
    %128 = vector.extract_strided_slice %126 {offsets = [8, 32], sizes = [8, 32], strides = [1, 1]} : vector<64x256xf32> to vector<8x32xf32>
    %129 = vector.extract_strided_slice %126 {offsets = [16, 64], sizes = [8, 32], strides = [1, 1]} : vector<64x256xf32> to vector<8x32xf32>
    %130 = vector.extract_strided_slice %126 {offsets = [24, 96], sizes = [8, 32], strides = [1, 1]} : vector<64x256xf32> to vector<8x32xf32>
    %131 = vector.extract_strided_slice %126 {offsets = [32, 128], sizes = [8, 32], strides = [1, 1]} : vector<64x256xf32> to vector<8x32xf32>
    %132 = vector.extract_strided_slice %126 {offsets = [40, 160], sizes = [8, 32], strides = [1, 1]} : vector<64x256xf32> to vector<8x32xf32>
    %133 = vector.extract_strided_slice %126 {offsets = [48, 192], sizes = [8, 32], strides = [1, 1]} : vector<64x256xf32> to vector<8x32xf32>
    %134 = vector.extract_strided_slice %126 {offsets = [56, 224], sizes = [8, 32], strides = [1, 1]} : vector<64x256xf32> to vector<8x32xf32>
    %135 = vector.shape_cast %127 : vector<8x32xf32> to vector<1x8x32xf32>
    %136 = vector.shape_cast %128 : vector<8x32xf32> to vector<1x8x32xf32>
    %137 = vector.shape_cast %129 : vector<8x32xf32> to vector<1x8x32xf32>
    %138 = vector.shape_cast %130 : vector<8x32xf32> to vector<1x8x32xf32>
    %139 = vector.shape_cast %131 : vector<8x32xf32> to vector<1x8x32xf32>
    %140 = vector.shape_cast %132 : vector<8x32xf32> to vector<1x8x32xf32>
    %141 = vector.shape_cast %133 : vector<8x32xf32> to vector<1x8x32xf32>
    %142 = vector.shape_cast %134 : vector<8x32xf32> to vector<1x8x32xf32>
    %143 = tpu.concatenate %135, %136, %137, %138, %139, %140, %141, %142 in 0 : vector<1x8x32xf32>, vector<1x8x32xf32>, vector<1x8x32xf32>, vector<1x8x32xf32>, vector<1x8x32xf32>, vector<1x8x32xf32>, vector<1x8x32xf32>, vector<1x8x32xf32> -> vector<8x8x32xf32>
    %c0_47 = arith.constant 0 : index
    %c0_48 = arith.constant 0 : index
    %c0_49 = arith.constant 0 : index
    %144 = vector.load %arg5[%c0_47, %c0_48, %c0_49] : memref<8x1x32xf32, #tpu.memory_space<vmem>>, vector<8x1x32xf32>
    %145 = vector.broadcast %144 : vector<8x1x32xf32> to vector<8x8x32xf32>
    %146 = arith.addf %143, %145 : vector<8x8x32xf32>
    %c0_50 = arith.constant 0 : index
    %c0_51 = arith.constant 0 : index
    %c0_52 = arith.constant 0 : index
    %147 = vector.load %arg9[%c0_50, %c0_51, %c0_52] : memref<8x8x32xf32, #tpu.memory_space<vmem>>, vector<8x8x32xf32>
    tpu.vector_store %arg9[%c0_50, %c0_51, %c0_52], %146 {strides = array<i32>} : memref<8x8x32xf32, #tpu.memory_space<vmem>>, vector<8x8x32xf32>,
    return
  }
  func.func @transform_0(%arg0: i32) -> (i32, i32, i32) {
    %c0_i32 = arith.constant 0 : i32
    %c0_i32_0 = arith.constant 0 : i32
    %c0_i32_1 = arith.constant 0 : i32
    %c0_i32_2 = arith.constant 0 : i32
    return %c0_i32, %c0_i32_0, %c0_i32_1 : i32, i32, i32
  }
  func.func @transform_1(%arg0: i32) -> (i32, i32, i32) {
    %c0_i32 = arith.constant 0 : i32
    %c0_i32_0 = arith.constant 0 : i32
    %c0_i32_1 = arith.constant 0 : i32
    %c0_i32_2 = arith.constant 0 : i32
    return %c0_i32, %c0_i32_0, %c0_i32_1 : i32, i32, i32
  }
  func.func @transform_2(%arg0: i32) -> (i32, i32, i32) {
    %c0_i32 = arith.constant 0 : i32
    %c0_i32_0 = arith.constant 0 : i32
    %c0_i32_1 = arith.constant 0 : i32
    %c0_i32_2 = arith.constant 0 : i32
    return %c0_i32, %c0_i32_0, %c0_i32_1 : i32, i32, i32
  }
  func.func @transform_3(%arg0: i32) -> (i32, i32) {
    %c0_i32 = arith.constant 0 : i32
    %c0_i32_0 = arith.constant 0 : i32
    %c0_i32_1 = arith.constant 0 : i32
    return %c0_i32, %c0_i32_0 : i32, i32
  }
  func.func @transform_4(%arg0: i32) -> (i32, i32, i32) {
    %c0_i32 = arith.constant 0 : i32
    %c0_i32_0 = arith.constant 0 : i32
    %c0_i32_1 = arith.constant 0 : i32
    %c0_i32_2 = arith.constant 0 : i32
    return %c0_i32, %c0_i32_0, %c0_i32_1 : i32, i32, i32
  }
  func.func @transform_5(%arg0: i32) -> (i32, i32) {
    %c0_i32 = arith.constant 0 : i32
    %c0_i32_0 = arith.constant 0 : i32
    %c0_i32_1 = arith.constant 0 : i32
    return %c0_i32, %c0_i32_0 : i32, i32
  }
  func.func @transform_6(%arg0: i32) -> (i32, i32) {
    %c0_i32 = arith.constant 0 : i32
    %c0_i32_0 = arith.constant 0 : i32
    %c0_i32_1 = arith.constant 0 : i32
    return %c0_i32, %c0_i32_0 : i32, i32
  }
  func.func @transform_7(%arg0: i32) -> (i32, i32) {
    %c0_i32 = arith.constant 0 : i32
    %c0_i32_0 = arith.constant 0 : i32
    %c0_i32_1 = arith.constant 0 : i32
    return %c0_i32, %c0_i32_0 : i32, i32
  }
  func.func @transform_8(%arg0: i32) -> (i32, i32, i32) {
    %c0_i32 = arith.constant 0 : i32
    %c0_i32_0 = arith.constant 0 : i32
    %c0_i32_1 = arith.constant 0 : i32
    %c0_i32_2 = arith.constant 0 : i32
    return %c0_i32, %c0_i32_0, %c0_i32_1 : i32, i32, i32
  }
}

</mosaic_0001>

<llo_original>
// kernel: multiverse_forward.1
$region0: #{multiverse_forward.1}
  #allocation0 [shape = 'u32[]', space=smem, size = 0x4, offset = 0x4, fixed_abs, tag = 'smem constant byte address 0x4 - core index']
  #allocation1 [shape = 'u32[72,128]{1,0:T(1,128)}', space=vmem, size = 0x9000, scoped, tag = 'internal scratch']
  %s0 = inlined_call_operand.vmem [shape: f32[8,8,32], index: 0, kind: input, shape index: {}]
  %s1 = inlined_call_operand.vmem [shape: bf16[8,32,96], index: 1, kind: input, shape index: {}]
  %s2 = inlined_call_operand.vmem [shape: f32[8,1,96], index: 2, kind: input, shape index: {}]
  %s3 = inlined_call_operand.vmem [shape: bf16[32,256], index: 3, kind: input, shape index: {}]
  %s4 = inlined_call_operand.vmem [shape: f32[8,1,32], index: 4, kind: input, shape index: {}]
  %s5 = inlined_call_operand.vmem [shape: f32[8,32], index: 5, kind: input, shape index: {}]
  %s6 = inlined_call_operand.vmem [shape: f32[512,64], index: 6, kind: input, shape index: {}]
  %s7 = inlined_call_operand.vmem [shape: f32[8,32], index: 7, kind: input, shape index: {}]
  %s8 = inlined_call_operand.hbm [shape: f32[8,8,32], index: 8, kind: output, shape index: {}]
  %s9 = sld [smem:[#allocation0]]
  $region42: #{multiverse_forward.1} parent=0
    _
  %s11 = ssub.s32 1, %s9
  %s12 = scalar_select 0, %s11, %s9
  $region1: #{multiverse_forward.1} parent=0
    #allocation2 [shape = 'u8[32768]{0}', space=vmem, size = 0x8000, scoped, tag = 'output window, operand 0, single buffered']
    #allocation3 [shape = 's32[1]{0}', space=sflag, size = 0x4, scoped, tag = 'scoped memory for multiverse_forward.1']
    %13 = vsyncpa [#allocation3], 0
    // Predicated region
    $region2: #{multiverse_forward.1} parent=1 // pred_check
      _
    $region3: #{multiverse_forward.1} parent=1 // pred_check_branch
      %15 = sbr.rel (0) target = $region5
    $region4: #{multiverse_forward.1} parent=1 // pred_region
      _
    $region5: #{multiverse_forward.1} parent=1 // pred_fallthru
      _
    // Predicated region
    $region6: #{multiverse_forward.1} parent=1 // pred_check
      _
    $region7: #{multiverse_forward.1} parent=1 // pred_check_branch
      %17 = sbr.rel (0) target = $region9
    $region8: #{multiverse_forward.1} parent=1 // pred_region
      _
    $region9: #{multiverse_forward.1} parent=1 // pred_fallthru
      _
    // Predicated region
    $region10: #{multiverse_forward.1} parent=1 // pred_check
      _
    $region11: #{multiverse_forward.1} parent=1 // pred_check_branch
      %19 = sbr.rel (0) target = $region13
    $region12: #{multiverse_forward.1} parent=1 // pred_region
      _
    $region13: #{multiverse_forward.1} parent=1 // pred_fallthru
      _
    // Predicated region
    $region14: #{multiverse_forward.1} parent=1 // pred_check
      _
    $region15: #{multiverse_forward.1} parent=1 // pred_check_branch
      %21 = sbr.rel (0) target = $region17
    $region16: #{multiverse_forward.1} parent=1 // pred_region
      _
    $region17: #{multiverse_forward.1} parent=1 // pred_fallthru
      _
    // Predicated region
    $region18: #{multiverse_forward.1} parent=1 // pred_check
      _
    $region19: #{multiverse_forward.1} parent=1 // pred_check_branch
      %23 = sbr.rel (0) target = $region21
    $region20: #{multiverse_forward.1} parent=1 // pred_region
      _
    $region21: #{multiverse_forward.1} parent=1 // pred_fallthru
      _
    // Predicated region
    $region22: #{multiverse_forward.1} parent=1 // pred_check
      _
    $region23: #{multiverse_forward.1} parent=1 // pred_check_branch
      %25 = sbr.rel (0) target = $region25
    $region24: #{multiverse_forward.1} parent=1 // pred_region
      _
    $region25: #{multiverse_forward.1} parent=1 // pred_fallthru
      _
    // Predicated region
    $region26: #{multiverse_forward.1} parent=1 // pred_check
      _
    $region27: #{multiverse_forward.1} parent=1 // pred_check_branch
      %27 = sbr.rel (0) target = $region29
    $region28: #{multiverse_forward.1} parent=1 // pred_region
      _
    $region29: #{multiverse_forward.1} parent=1 // pred_fallthru
      _
    // Predicated region
    $region30: #{multiverse_forward.1} parent=1 // pred_check
      _
    $region31: #{multiverse_forward.1} parent=1 // pred_check_branch
      %29 = sbr.rel (0) target = $region33
    $region32: #{multiverse_forward.1} parent=1 // pred_region
      _
    $region33: #{multiverse_forward.1} parent=1 // pred_fallthru
      _
    %v31 = vld [vmem:[%s0] sm:$0xff]
    %v32 = vld [vmem:[%s0 + $0x8] sm:$0xff]
    %v33 = vld [vmem:[%s0 + $0x10] sm:$0xff]
    %v34 = vld [vmem:[%s0 + $0x18] sm:$0xff]
    %v35 = vld [vmem:[%s0 + $0x20] sm:$0xff]
    %v36 = vld [vmem:[%s0 + $0x28] sm:$0xff]
    %v37 = vld [vmem:[%s0 + $0x30] sm:$0xff]
    %v38 = vld [vmem:[%s0 + $0x38] sm:$0xff]
    %v39 = vpack.c.bf16 %v31, %v31
    %v40 = vpack.c.bf16 %v32, %v32
    %v41 = vpack.c.bf16 %v33, %v33
    %v42 = vpack.c.bf16 %v34, %v34
    %v43 = vpack.c.bf16 %v35, %v35
    %v44 = vpack.c.bf16 %v36, %v36
    %v45 = vpack.c.bf16 %v37, %v37
    %v46 = vpack.c.bf16 %v38, %v38
    %v47 = vld [vmem:[%s1] sm:$0xf]
    %v48 = vld [vmem:[%s1 + $0x4] sm:$0xf]
    %v49 = vld [vmem:[%s1 + $0x8] sm:$0xf]
    %v50 = vld [vmem:[%s1 + $0xc] sm:$0xf]
    %v51 = vld [vmem:[%s1 + $0x10] sm:$0xf]
    %v52 = vld [vmem:[%s1 + $0x14] sm:$0xf]
    %v53 = vld [vmem:[%s1 + $0x18] sm:$0xf]
    %v54 = vld [vmem:[%s1 + $0x1c] sm:$0xf]
    %v55 = vld [vmem:[%s1 + $0x20] sm:$0xf]
    %v56 = vld [vmem:[%s1 + $0x24] sm:$0xf]
    %v57 = vld [vmem:[%s1 + $0x28] sm:$0xf]
    %v58 = vld [vmem:[%s1 + $0x2c] sm:$0xf]
    %v59 = vld [vmem:[%s1 + $0x30] sm:$0xf]
    %v60 = vld [vmem:[%s1 + $0x34] sm:$0xf]
    %v61 = vld [vmem:[%s1 + $0x38] sm:$0xf]
    %v62 = vld [vmem:[%s1 + $0x3c] sm:$0xf]
    %v63 = vld [vmem:[%s1 + $0x40] sm:$0xf]
    %v64 = vld [vmem:[%s1 + $0x44] sm:$0xf]
    %v65 = vld [vmem:[%s1 + $0x48] sm:$0xf]
    %v66 = vld [vmem:[%s1 + $0x4c] sm:$0xf]
    %v67 = vld [vmem:[%s1 + $0x50] sm:$0xf]
    %v68 = vld [vmem:[%s1 + $0x54] sm:$0xf]
    %v69 = vld [vmem:[%s1 + $0x58] sm:$0xf]
    %v70 = vld [vmem:[%s1 + $0x5c] sm:$0xf]
    %v71 = vld [vmem:[%s1 + $0x60] sm:$0xf]
    %v72 = vld [vmem:[%s1 + $0x64] sm:$0xf]
    %v73 = vld [vmem:[%s1 + $0x68] sm:$0xf]
    %v74 = vld [vmem:[%s1 + $0x6c] sm:$0xf]
    %v75 = vld [vmem:[%s1 + $0x70] sm:$0xf]
    %v76 = vld [vmem:[%s1 + $0x74] sm:$0xf]
    %v77 = vld [vmem:[%s1 + $0x78] sm:$0xf]
    %v78 = vld [vmem:[%s1 + $0x7c] sm:$0xf]
    %v79 = vld [vmem:[%s2] sm:$0x1]
    %v80 = vld [vmem:[%s2 + $0x1] sm:$0x1]
    %v81 = vld [vmem:[%s2 + $0x2] sm:$0x1]
    %v82 = vld [vmem:[%s2 + $0x3] sm:$0x1]
    %v83 = vld [vmem:[%s2 + $0x4] sm:$0x1]
    %v84 = vld [vmem:[%s2 + $0x5] sm:$0x1]
    %v85 = vld [vmem:[%s2 + $0x6] sm:$0x1]
    %v86 = vld [vmem:[%s2 + $0x7] sm:$0x1]
    %v95 = vperm.slane %v79, 0
    %v96 = vperm.slane %v80, 0
    %v97 = vperm.slane %v81, 0
    %v98 = vperm.slane %v82, 0
    %v99 = vperm.slane %v83, 0
    %v100 = vperm.slane %v84, 0
    %v101 = vperm.slane %v85, 0
    %v102 = vperm.slane %v86, 0
    %v115 = vunpack.c.l.b16 %v47
    %v116 = vunpack.c.l.b16 %v48
    %v117 = vunpack.c.l.b16 %v49
    %v118 = vunpack.c.l.b16 %v50
    %v119 = vpack.c.b16 %v116, %v115
    %v120 = vpack.c.b16 %v118, %v117
    %vm123 = vcmask 261120
    %v125 = vsel %vm123, %v39, 0
    %127 = vmatpush.bf16.msra.mxu0 0
    %128 = vmatpush.bf16.msra.mxu0 0
    %129 = vmatpush.bf16.msra.mxu0 0
    %130 = vmatpush.bf16.msra.mxu0 0
    %131 = vmatpush.bf16.msra.mxu0 0
    %132 = vmatpush.bf16.msra.mxu0 0
    %133 = vmatpush.bf16.msra.mxu0 %v120
    %134 = vmatpush.bf16.msra.mxu0 %v119
    %135 = vmatmul.bf16.gmra.mxu0 %v125
    %v136 = vpop.f32.mrf.mxu0
    %v137 = vadd.f32 %v95, %v136
    %v138 = vpop.f32.mrf.mxu0
    %139 = vdwg.mxu0
    %v144 = vunpack.c.l.b16 %v51
    %v145 = vunpack.c.l.b16 %v52
    %v146 = vunpack.c.l.b16 %v53
    %v147 = vunpack.c.l.b16 %v54
    %v148 = vpack.c.b16 %v145, %v144
    %v149 = vpack.c.b16 %v147, %v146
    %v153 = vsel %vm123, %v40, 0
    %155 = vmatpush.bf16.msra.mxu0 0
    %156 = vmatpush.bf16.msra.mxu0 0
    %157 = vmatpush.bf16.msra.mxu0 0
    %158 = vmatpush.bf16.msra.mxu0 0
    %159 = vmatpush.bf16.msra.mxu0 0
    %160 = vmatpush.bf16.msra.mxu0 0
    %161 = vmatpush.bf16.msra.mxu0 %v149
    %162 = vmatpush.bf16.msra.mxu0 %v148
    %163 = vmatmul.bf16.gmra.mxu0 %v153
    %v164 = vpop.f32.mrf.mxu0
    %v165 = vadd.f32 %v96, %v164
    %v166 = vpop.f32.mrf.mxu0
    %167 = vdwg.mxu0
    %v172 = vunpack.c.l.b16 %v55
    %v173 = vunpack.c.l.b16 %v56
    %v174 = vunpack.c.l.b16 %v57
    %v175 = vunpack.c.l.b16 %v58
    %v176 = vpack.c.b16 %v173, %v172
    %v177 = vpack.c.b16 %v175, %v174
    %v181 = vsel %vm123, %v41, 0
    %183 = vmatpush.bf16.msra.mxu0 0
    %184 = vmatpush.bf16.msra.mxu0 0
    %185 = vmatpush.bf16.msra.mxu0 0
    %186 = vmatpush.bf16.msra.mxu0 0
    %187 = vmatpush.bf16.msra.mxu0 0
    %188 = vmatpush.bf16.msra.mxu0 0
    %189 = vmatpush.bf16.msra.mxu0 %v177
    %190 = vmatpush.bf16.msra.mxu0 %v176
    %191 = vmatmul.bf16.gmra.mxu0 %v181
    %v192 = vpop.f32.mrf.mxu0
    %v193 = vadd.f32 %v97, %v192
    %v194 = vpop.f32.mrf.mxu0
    %195 = vdwg.mxu0
    %v200 = vunpack.c.l.b16 %v59
    %v201 = vunpack.c.l.b16 %v60
    %v202 = vunpack.c.l.b16 %v61
    %v203 = vunpack.c.l.b16 %v62
    %v204 = vpack.c.b16 %v201, %v200
    %v205 = vpack.c.b16 %v203, %v202
    %v209 = vsel %vm123, %v42, 0
    %211 = vmatpush.bf16.msra.mxu0 0
    %212 = vmatpush.bf16.msra.mxu0 0
    %213 = vmatpush.bf16.msra.mxu0 0
    %214 = vmatpush.bf16.msra.mxu0 0
    %215 = vmatpush.bf16.msra.mxu0 0
    %216 = vmatpush.bf16.msra.mxu0 0
    %217 = vmatpush.bf16.msra.mxu0 %v205
    %218 = vmatpush.bf16.msra.mxu0 %v204
    %219 = vmatmul.bf16.gmra.mxu0 %v209
    %v220 = vpop.f32.mrf.mxu0
    %v221 = vadd.f32 %v98, %v220
    %v222 = vpop.f32.mrf.mxu0
    %223 = vdwg.mxu0
    %v228 = vunpack.c.l.b16 %v63
    %v229 = vunpack.c.l.b16 %v64
    %v230 = vunpack.c.l.b16 %v65
    %v231 = vunpack.c.l.b16 %v66
    %v232 = vpack.c.b16 %v229, %v228
    %v233 = vpack.c.b16 %v231, %v230
    %v237 = vsel %vm123, %v43, 0
    %239 = vmatpush.bf16.msra.mxu0 0
    %240 = vmatpush.bf16.msra.mxu0 0
    %241 = vmatpush.bf16.msra.mxu0 0
    %242 = vmatpush.bf16.msra.mxu0 0
    %243 = vmatpush.bf16.msra.mxu0 0
    %244 = vmatpush.bf16.msra.mxu0 0
    %245 = vmatpush.bf16.msra.mxu0 %v233
    %246 = vmatpush.bf16.msra.mxu0 %v232
    %247 = vmatmul.bf16.gmra.mxu0 %v237
    %v248 = vpop.f32.mrf.mxu0
    %v249 = vadd.f32 %v99, %v248
    %v250 = vpop.f32.mrf.mxu0
    %251 = vdwg.mxu0
    %v256 = vunpack.c.l.b16 %v67
    %v257 = vunpack.c.l.b16 %v68
    %v258 = vunpack.c.l.b16 %v69
    %v259 = vunpack.c.l.b16 %v70
    %v260 = vpack.c.b16 %v257, %v256
    %v261 = vpack.c.b16 %v259, %v258
    %v265 = vsel %vm123, %v44, 0
    %267 = vmatpush.bf16.msra.mxu0 0
    %268 = vmatpush.bf16.msra.mxu0 0
    %269 = vmatpush.bf16.msra.mxu0 0
    %270 = vmatpush.bf16.msra.mxu0 0
    %271 = vmatpush.bf16.msra.mxu0 0
    %272 = vmatpush.bf16.msra.mxu0 0
    %273 = vmatpush.bf16.msra.mxu0 %v261
    %274 = vmatpush.bf16.msra.mxu0 %v260
    %275 = vmatmul.bf16.gmra.mxu0 %v265
    %v276 = vpop.f32.mrf.mxu0
    %v277 = vadd.f32 %v100, %v276
    %v278 = vpop.f32.mrf.mxu0
    %279 = vdwg.mxu0
    %v284 = vunpack.c.l.b16 %v71
    %v285 = vunpack.c.l.b16 %v72
    %v286 = vunpack.c.l.b16 %v73
    %v287 = vunpack.c.l.b16 %v74
    %v288 = vpack.c.b16 %v285, %v284
    %v289 = vpack.c.b16 %v287, %v286
    %v293 = vsel %vm123, %v45, 0
    %295 = vmatpush.bf16.msra.mxu0 0
    %296 = vmatpush.bf16.msra.mxu0 0
    %297 = vmatpush.bf16.msra.mxu0 0
    %298 = vmatpush.bf16.msra.mxu0 0
    %299 = vmatpush.bf16.msra.mxu0 0
    %300 = vmatpush.bf16.msra.mxu0 0
    %301 = vmatpush.bf16.msra.mxu0 %v289
    %302 = vmatpush.bf16.msra.mxu0 %v288
    %303 = vmatmul.bf16.gmra.mxu0 %v293
    %v304 = vpop.f32.mrf.mxu0
    %v305 = vadd.f32 %v101, %v304
    %v306 = vpop.f32.mrf.mxu0
    %307 = vdwg.mxu0
    %v312 = vunpack.c.l.b16 %v75
    %v313 = vunpack.c.l.b16 %v76
    %v314 = vunpack.c.l.b16 %v77
    %v315 = vunpack.c.l.b16 %v78
    %v316 = vpack.c.b16 %v313, %v312
    %v317 = vpack.c.b16 %v315, %v314
    %v321 = vsel %vm123, %v46, 0
    %323 = vmatpush.bf16.msra.mxu0 0
    %324 = vmatpush.bf16.msra.mxu0 0
    %325 = vmatpush.bf16.msra.mxu0 0
    %326 = vmatpush.bf16.msra.mxu0 0
    %327 = vmatpush.bf16.msra.mxu0 0
    %328 = vmatpush.bf16.msra.mxu0 0
    %329 = vmatpush.bf16.msra.mxu0 %v317
    %330 = vmatpush.bf16.msra.mxu0 %v316
    %331 = vmatmul.bf16.gmra.mxu0 %v321
    %v332 = vpop.f32.mrf.mxu0
    %v333 = vadd.f32 %v102, %v332
    %v334 = vpop.f32.mrf.mxu0
    %335 = vdwg.mxu0
    %v336 = vmul.f32 %v137, %v137
    %v337 = vmul.f32 %v165, %v165
    %v338 = vmul.f32 %v193, %v193
    %v339 = vmul.f32 %v221, %v221
    %v340 = vmul.f32 %v249, %v249
    %v341 = vmul.f32 %v277, %v277
    %v342 = vmul.f32 %v305, %v305
    %v343 = vmul.f32 %v333, %v333
    %352 = vrot.lane.b32.xlu0 %v336, 112
    %v353 = vpop.permute.xlu0 %352
    %354 = vrot.lane.b32.xlu0 %v337, 112
    %v355 = vpop.permute.xlu0 %354
    %356 = vrot.lane.b32.xlu0 %v338, 112
    %v357 = vpop.permute.xlu0 %356
    %358 = vrot.lane.b32.xlu0 %v339, 112
    %v359 = vpop.permute.xlu0 %358
    %360 = vrot.lane.b32.xlu0 %v340, 112
    %v361 = vpop.permute.xlu0 %360
    %362 = vrot.lane.b32.xlu0 %v341, 112
    %v363 = vpop.permute.xlu0 %362
    %364 = vrot.lane.b32.xlu0 %v342, 112
    %v365 = vpop.permute.xlu0 %364
    %366 = vrot.lane.b32.xlu0 %v343, 112
    %v367 = vpop.permute.xlu0 %366
    %v376 = vsub.f32 %v336, %v353
    %v377 = vsub.f32 %v337, %v355
    %v378 = vsub.f32 %v338, %v357
    %v379 = vsub.f32 %v339, %v359
    %v380 = vsub.f32 %v340, %v361
    %v381 = vsub.f32 %v341, %v363
    %v382 = vsub.f32 %v342, %v365
    %v383 = vsub.f32 %v343, %v367
    %v384 = vadd.f32 %v376, 0.1
    %v385 = vadd.f32 %v377, 0.1
    %v386 = vadd.f32 %v378, 0.1
    %v387 = vadd.f32 %v379, 0.1
    %v388 = vadd.f32 %v380, 0.1
    %v389 = vadd.f32 %v381, 0.1
    %v390 = vadd.f32 %v382, 0.1
    %v391 = vadd.f32 %v383, 0.1
    %v392 = vmul.f32 %v137, 2.0
    %v393 = vmul.f32 %v165, 2.0
    %v394 = vmul.f32 %v193, 2.0
    %v395 = vmul.f32 %v221, 2.0
    %v396 = vmul.f32 %v249, 2.0
    %v397 = vmul.f32 %v277, 2.0
    %v398 = vmul.f32 %v305, 2.0
    %v399 = vmul.f32 %v333, 2.0
    %408 = vrot.lane.b32.xlu0 %v137, 112
    %v409 = vpop.permute.xlu0 %408
    %410 = vrot.lane.b32.xlu0 %v165, 112
    %v411 = vpop.permute.xlu0 %410
    %412 = vrot.lane.b32.xlu0 %v193, 112
    %v413 = vpop.permute.xlu0 %412
    %414 = vrot.lane.b32.xlu0 %v221, 112
    %v415 = vpop.permute.xlu0 %414
    %416 = vrot.lane.b32.xlu0 %v249, 112
    %v417 = vpop.permute.xlu0 %416
    %418 = vrot.lane.b32.xlu0 %v277, 112
    %v419 = vpop.permute.xlu0 %418
    %420 = vrot.lane.b32.xlu0 %v305, 112
    %v421 = vpop.permute.xlu0 %420
    %422 = vrot.lane.b32.xlu0 %v333, 112
    %v423 = vpop.permute.xlu0 %422
    %v432 = vmul.f32 %v392, %v409
    %v433 = vmul.f32 %v393, %v411
    %v434 = vmul.f32 %v394, %v413
    %v435 = vmul.f32 %v395, %v415
    %v436 = vmul.f32 %v396, %v417
    %v437 = vmul.f32 %v397, %v419
    %v438 = vmul.f32 %v398, %v421
    %v439 = vmul.f32 %v399, %v423
    %v440 = vadd.f32 %v432, 0.7
    %v441 = vadd.f32 %v433, 0.7
    %v442 = vadd.f32 %v434, 0.7
    %v443 = vadd.f32 %v435, 0.7
    %v444 = vadd.f32 %v436, 0.7
    %v445 = vadd.f32 %v437, 0.7
    %v446 = vadd.f32 %v438, 0.7
    %v447 = vadd.f32 %v439, 0.7
    %456 = vrot.lane.b32.xlu0 %v440, 16
    %v457 = vpop.permute.xlu0 %456
    %458 = vrot.lane.b32.xlu0 %v441, 16
    %v459 = vpop.permute.xlu0 %458
    %460 = vrot.lane.b32.xlu0 %v442, 16
    %v461 = vpop.permute.xlu0 %460
    %462 = vrot.lane.b32.xlu0 %v443, 16
    %v463 = vpop.permute.xlu0 %462
    %464 = vrot.lane.b32.xlu0 %v444, 16
    %v465 = vpop.permute.xlu0 %464
    %466 = vrot.lane.b32.xlu0 %v445, 16
    %v467 = vpop.permute.xlu0 %466
    %468 = vrot.lane.b32.xlu0 %v446, 16
    %v469 = vpop.permute.xlu0 %468
    %470 = vrot.lane.b32.xlu0 %v447, 16
    %v471 = vpop.permute.xlu0 %470
    %vm480 = vcmask 130048
    %v481 = vsel %vm480, %v384, %v457
    %v482 = vsel %vm480, %v385, %v459
    %v483 = vsel %vm480, %v386, %v461
    %v484 = vsel %vm480, %v387, %v463
    %v485 = vsel %vm480, %v388, %v465
    %v486 = vsel %vm480, %v389, %v467
    %v487 = vsel %vm480, %v390, %v469
    %v488 = vsel %vm480, %v391, %v471
    %v489 = vmul.f32 %v481, 0.5
    %v490 = vmul.f32 %v482, 0.5
    %v491 = vmul.f32 %v483, 0.5
    %v492 = vmul.f32 %v484, 0.5
    %v493 = vmul.f32 %v485, 0.5
    %v494 = vmul.f32 %v486, 0.5
    %v495 = vmul.f32 %v487, 0.5
    %v496 = vmul.f32 %v488, 0.5
    %v497 = vmul.f32 %v137, 0.5
    %v498 = vmul.f32 %v165, 0.5
    %v499 = vmul.f32 %v193, 0.5
    %v500 = vmul.f32 %v221, 0.5
    %v501 = vmul.f32 %v249, 0.5
    %v502 = vmul.f32 %v277, 0.5
    %v503 = vmul.f32 %v305, 0.5
    %v504 = vmul.f32 %v333, 0.5
    %v505 = vmul.f32 %v497, %v497
    %v506 = vmul.f32 %v498, %v498
    %v507 = vmul.f32 %v499, %v499
    %v508 = vmul.f32 %v500, %v500
    %v509 = vmul.f32 %v501, %v501
    %v510 = vmul.f32 %v502, %v502
    %v511 = vmul.f32 %v503, %v503
    %v512 = vmul.f32 %v504, %v504
    %521 = vrot.lane.b32.xlu0 %v505, 112
    %v522 = vpop.permute.xlu0 %521
    %523 = vrot.lane.b32.xlu0 %v506, 112
    %v524 = vpop.permute.xlu0 %523
    %525 = vrot.lane.b32.xlu0 %v507, 112
    %v526 = vpop.permute.xlu0 %525
    %527 = vrot.lane.b32.xlu0 %v508, 112
    %v528 = vpop.permute.xlu0 %527
    %529 = vrot.lane.b32.xlu0 %v509, 112
    %v530 = vpop.permute.xlu0 %529
    %531 = vrot.lane.b32.xlu0 %v510, 112
    %v532 = vpop.permute.xlu0 %531
    %533 = vrot.lane.b32.xlu0 %v511, 112
    %v534 = vpop.permute.xlu0 %533
    %535 = vrot.lane.b32.xlu0 %v512, 112
    %v536 = vpop.permute.xlu0 %535
    %v545 = vsub.f32 %v505, %v522
    %v546 = vsub.f32 %v506, %v524
    %v547 = vsub.f32 %v507, %v526
    %v548 = vsub.f32 %v508, %v528
    %v549 = vsub.f32 %v509, %v530
    %v550 = vsub.f32 %v510, %v532
    %v551 = vsub.f32 %v511, %v534
    %v552 = vsub.f32 %v512, %v536
    %v553 = vadd.f32 %v545, 0.1
    %v554 = vadd.f32 %v546, 0.1
    %v555 = vadd.f32 %v547, 0.1
    %v556 = vadd.f32 %v548, 0.1
    %v557 = vadd.f32 %v549, 0.1
    %v558 = vadd.f32 %v550, 0.1
    %v559 = vadd.f32 %v551, 0.1
    %v560 = vadd.f32 %v552, 0.1
    %v561 = vmul.f32 %v497, 2.0
    %v562 = vmul.f32 %v498, 2.0
    %v563 = vmul.f32 %v499, 2.0
    %v564 = vmul.f32 %v500, 2.0
    %v565 = vmul.f32 %v501, 2.0
    %v566 = vmul.f32 %v502, 2.0
    %v567 = vmul.f32 %v503, 2.0
    %v568 = vmul.f32 %v504, 2.0
    %577 = vrot.lane.b32.xlu0 %v497, 112
    %v578 = vpop.permute.xlu0 %577
    %579 = vrot.lane.b32.xlu0 %v498, 112
    %v580 = vpop.permute.xlu0 %579
    %581 = vrot.lane.b32.xlu0 %v499, 112
    %v582 = vpop.permute.xlu0 %581
    %583 = vrot.lane.b32.xlu0 %v500, 112
    %v584 = vpop.permute.xlu0 %583
    %585 = vrot.lane.b32.xlu0 %v501, 112
    %v586 = vpop.permute.xlu0 %585
    %587 = vrot.lane.b32.xlu0 %v502, 112
    %v588 = vpop.permute.xlu0 %587
    %589 = vrot.lane.b32.xlu0 %v503, 112
    %v590 = vpop.permute.xlu0 %589
    %591 = vrot.lane.b32.xlu0 %v504, 112
    %v592 = vpop.permute.xlu0 %591
    %v601 = vmul.f32 %v561, %v578
    %v602 = vmul.f32 %v562, %v580
    %v603 = vmul.f32 %v563, %v582
    %v604 = vmul.f32 %v564, %v584
    %v605 = vmul.f32 %v565, %v586
    %v606 = vmul.f32 %v566, %v588
    %v607 = vmul.f32 %v567, %v590
    %v608 = vmul.f32 %v568, %v592
    %v609 = vadd.f32 %v601, 0.7
    %v610 = vadd.f32 %v602, 0.7
    %v611 = vadd.f32 %v603, 0.7
    %v612 = vadd.f32 %v604, 0.7
    %v613 = vadd.f32 %v605, 0.7
    %v614 = vadd.f32 %v606, 0.7
    %v615 = vadd.f32 %v607, 0.7
    %v616 = vadd.f32 %v608, 0.7
    %625 = vrot.lane.b32.xlu0 %v609, 16
    %v626 = vpop.permute.xlu0 %625
    %627 = vrot.lane.b32.xlu0 %v610, 16
    %v628 = vpop.permute.xlu0 %627
    %629 = vrot.lane.b32.xlu0 %v611, 16
    %v630 = vpop.permute.xlu0 %629
    %631 = vrot.lane.b32.xlu0 %v612, 16
    %v632 = vpop.permute.xlu0 %631
    %633 = vrot.lane.b32.xlu0 %v613, 16
    %v634 = vpop.permute.xlu0 %633
    %635 = vrot.lane.b32.xlu0 %v614, 16
    %v636 = vpop.permute.xlu0 %635
    %637 = vrot.lane.b32.xlu0 %v615, 16
    %v638 = vpop.permute.xlu0 %637
    %639 = vrot.lane.b32.xlu0 %v616, 16
    %v640 = vpop.permute.xlu0 %639
    %v649 = vsel %vm480, %v553, %v626
    %v650 = vsel %vm480, %v554, %v628
    %v651 = vsel %vm480, %v555, %v630
    %v652 = vsel %vm480, %v556, %v632
    %v653 = vsel %vm480, %v557, %v634
    %v654 = vsel %vm480, %v558, %v636
    %v655 = vsel %vm480, %v559, %v638
    %v656 = vsel %vm480, %v560, %v640
    %v657 = vmul.f32 %v649, 0.5
    %v658 = vmul.f32 %v650, 0.5
    %v659 = vmul.f32 %v651, 0.5
    %v660 = vmul.f32 %v652, 0.5
    %v661 = vmul.f32 %v653, 0.5
    %v662 = vmul.f32 %v654, 0.5
    %v663 = vmul.f32 %v655, 0.5
    %v664 = vmul.f32 %v656, 0.5
    %v665 = vmul.f32 %v497, 0.5
    %v666 = vmul.f32 %v498, 0.5
    %v667 = vmul.f32 %v499, 0.5
    %v668 = vmul.f32 %v500, 0.5
    %v669 = vmul.f32 %v501, 0.5
    %v670 = vmul.f32 %v502, 0.5
    %v671 = vmul.f32 %v503, 0.5
    %v672 = vmul.f32 %v504, 0.5
    %v673 = vmul.f32 %v665, 0.5
    %v674 = vmul.f32 %v666, 0.5
    %v675 = vmul.f32 %v667, 0.5
    %v676 = vmul.f32 %v668, 0.5
    %v677 = vmul.f32 %v669, 0.5
    %v678 = vmul.f32 %v670, 0.5
    %v679 = vmul.f32 %v671, 0.5
    %v680 = vmul.f32 %v672, 0.5
    %v681 = vadd.f32 %v657, %v673
    %v682 = vadd.f32 %v658, %v674
    %v683 = vadd.f32 %v659, %v675
    %v684 = vadd.f32 %v660, %v676
    %v685 = vadd.f32 %v661, %v677
    %v686 = vadd.f32 %v662, %v678
    %v687 = vadd.f32 %v663, %v679
    %v688 = vadd.f32 %v664, %v680
    %v689 = vmul.f32 %v681, 0.5
    %v690 = vmul.f32 %v682, 0.5
    %v691 = vmul.f32 %v683, 0.5
    %v692 = vmul.f32 %v684, 0.5
    %v693 = vmul.f32 %v685, 0.5
    %v694 = vmul.f32 %v686, 0.5
    %v695 = vmul.f32 %v687, 0.5
    %v696 = vmul.f32 %v688, 0.5
    %v697 = vadd.f32 %v489, %v689
    %v698 = vadd.f32 %v490, %v690
    %v699 = vadd.f32 %v491, %v691
    %v700 = vadd.f32 %v492, %v692
    %v701 = vadd.f32 %v493, %v693
    %v702 = vadd.f32 %v494, %v694
    %v703 = vadd.f32 %v495, %v695
    %v704 = vadd.f32 %v496, %v696
    %713 = vrot.lane.b32.xlu0 %v384, 96
    %v714 = vpop.permute.xlu0 %713
    %715 = vrot.lane.b32.xlu0 %v385, 96
    %v716 = vpop.permute.xlu0 %715
    %717 = vrot.lane.b32.xlu0 %v386, 96
    %v718 = vpop.permute.xlu0 %717
    %719 = vrot.lane.b32.xlu0 %v387, 96
    %v720 = vpop.permute.xlu0 %719
    %721 = vrot.lane.b32.xlu0 %v388, 96
    %v722 = vpop.permute.xlu0 %721
    %723 = vrot.lane.b32.xlu0 %v389, 96
    %v724 = vpop.permute.xlu0 %723
    %725 = vrot.lane.b32.xlu0 %v390, 96
    %v726 = vpop.permute.xlu0 %725
    %727 = vrot.lane.b32.xlu0 %v391, 96
    %v728 = vpop.permute.xlu0 %727
    %737 = vrot.lane.b32.xlu0 %v440, 112
    %v738 = vpop.permute.xlu0 %737
    %739 = vrot.lane.b32.xlu0 %v441, 112
    %v740 = vpop.permute.xlu0 %739
    %741 = vrot.lane.b32.xlu0 %v442, 112
    %v742 = vpop.permute.xlu0 %741
    %743 = vrot.lane.b32.xlu0 %v443, 112
    %v744 = vpop.permute.xlu0 %743
    %745 = vrot.lane.b32.xlu0 %v444, 112
    %v746 = vpop.permute.xlu0 %745
    %747 = vrot.lane.b32.xlu0 %v445, 112
    %v748 = vpop.permute.xlu0 %747
    %749 = vrot.lane.b32.xlu0 %v446, 112
    %v750 = vpop.permute.xlu0 %749
    %751 = vrot.lane.b32.xlu0 %v447, 112
    %v752 = vpop.permute.xlu0 %751
    %v761 = vsel %vm480, %v714, %v738
    %v762 = vsel %vm480, %v716, %v740
    %v763 = vsel %vm480, %v718, %v742
    %v764 = vsel %vm480, %v720, %v744
    %v765 = vsel %vm480, %v722, %v746
    %v766 = vsel %vm480, %v724, %v748
    %v767 = vsel %vm480, %v726, %v750
    %v768 = vsel %vm480, %v728, %v752
    %v769 = vmul.f32 %v761, 0.5
    %v770 = vmul.f32 %v762, 0.5
    %v771 = vmul.f32 %v763, 0.5
    %v772 = vmul.f32 %v764, 0.5
    %v773 = vmul.f32 %v765, 0.5
    %v774 = vmul.f32 %v766, 0.5
    %v775 = vmul.f32 %v767, 0.5
    %v776 = vmul.f32 %v768, 0.5
    %785 = vrot.lane.b32.xlu0 %v553, 96
    %v786 = vpop.permute.xlu0 %785
    %787 = vrot.lane.b32.xlu0 %v554, 96
    %v788 = vpop.permute.xlu0 %787
    %789 = vrot.lane.b32.xlu0 %v555, 96
    %v790 = vpop.permute.xlu0 %789
    %791 = vrot.lane.b32.xlu0 %v556, 96
    %v792 = vpop.permute.xlu0 %791
    %793 = vrot.lane.b32.xlu0 %v557, 96
    %v794 = vpop.permute.xlu0 %793
    %795 = vrot.lane.b32.xlu0 %v558, 96
    %v796 = vpop.permute.xlu0 %795
    %797 = vrot.lane.b32.xlu0 %v559, 96
    %v798 = vpop.permute.xlu0 %797
    %799 = vrot.lane.b32.xlu0 %v560, 96
    %v800 = vpop.permute.xlu0 %799
    %809 = vrot.lane.b32.xlu0 %v609, 112
    %v810 = vpop.permute.xlu0 %809
    %811 = vrot.lane.b32.xlu0 %v610, 112
    %v812 = vpop.permute.xlu0 %811
    %813 = vrot.lane.b32.xlu0 %v611, 112
    %v814 = vpop.permute.xlu0 %813
    %815 = vrot.lane.b32.xlu0 %v612, 112
    %v816 = vpop.permute.xlu0 %815
    %817 = vrot.lane.b32.xlu0 %v613, 112
    %v818 = vpop.permute.xlu0 %817
    %819 = vrot.lane.b32.xlu0 %v614, 112
    %v820 = vpop.permute.xlu0 %819
    %821 = vrot.lane.b32.xlu0 %v615, 112
    %v822 = vpop.permute.xlu0 %821
    %823 = vrot.lane.b32.xlu0 %v616, 112
    %v824 = vpop.permute.xlu0 %823
    %v833 = vsel %vm480, %v786, %v810
    %v834 = vsel %vm480, %v788, %v812
    %v835 = vsel %vm480, %v790, %v814
    %v836 = vsel %vm480, %v792, %v816
    %v837 = vsel %vm480, %v794, %v818
    %v838 = vsel %vm480, %v796, %v820
    %v839 = vsel %vm480, %v798, %v822
    %v840 = vsel %vm480, %v800, %v824
    %v841 = vmul.f32 %v833, 0.5
    %v842 = vmul.f32 %v834, 0.5
    %v843 = vmul.f32 %v835, 0.5
    %v844 = vmul.f32 %v836, 0.5
    %v845 = vmul.f32 %v837, 0.5
    %v846 = vmul.f32 %v838, 0.5
    %v847 = vmul.f32 %v839, 0.5
    %v848 = vmul.f32 %v840, 0.5
    %857 = vrot.lane.b32.xlu0 %v673, 96
    %v858 = vpop.permute.xlu0 %857
    %859 = vrot.lane.b32.xlu0 %v674, 96
    %v860 = vpop.permute.xlu0 %859
    %861 = vrot.lane.b32.xlu0 %v675, 96
    %v862 = vpop.permute.xlu0 %861
    %863 = vrot.lane.b32.xlu0 %v676, 96
    %v864 = vpop.permute.xlu0 %863
    %865 = vrot.lane.b32.xlu0 %v677, 96
    %v866 = vpop.permute.xlu0 %865
    %867 = vrot.lane.b32.xlu0 %v678, 96
    %v868 = vpop.permute.xlu0 %867
    %869 = vrot.lane.b32.xlu0 %v679, 96
    %v870 = vpop.permute.xlu0 %869
    %871 = vrot.lane.b32.xlu0 %v680, 96
    %v872 = vpop.permute.xlu0 %871
    %v881 = vadd.f32 %v841, %v858
    %v882 = vadd.f32 %v842, %v860
    %v883 = vadd.f32 %v843, %v862
    %v884 = vadd.f32 %v844, %v864
    %v885 = vadd.f32 %v845, %v866
    %v886 = vadd.f32 %v846, %v868
    %v887 = vadd.f32 %v847, %v870
    %v888 = vadd.f32 %v848, %v872
    %v889 = vmul.f32 %v881, 0.5
    %v890 = vmul.f32 %v882, 0.5
    %v891 = vmul.f32 %v883, 0.5
    %v892 = vmul.f32 %v884, 0.5
    %v893 = vmul.f32 %v885, 0.5
    %v894 = vmul.f32 %v886, 0.5
    %v895 = vmul.f32 %v887, 0.5
    %v896 = vmul.f32 %v888, 0.5
    %v897 = vadd.f32 %v769, %v889
    %v898 = vadd.f32 %v770, %v890
    %v899 = vadd.f32 %v771, %v891
    %v900 = vadd.f32 %v772, %v892
    %v901 = vadd.f32 %v773, %v893
    %v902 = vadd.f32 %v774, %v894
    %v903 = vadd.f32 %v775, %v895
    %v904 = vadd.f32 %v776, %v896
    %v913 = vrot.slane %v697, 1
    %v914 = vrot.slane %v697, 2
    %v915 = vrot.slane %v697, 3
    %v916 = vrot.slane %v697, 4
    %v917 = vrot.slane %v697, 5
    %v918 = vrot.slane %v697, 6
    %v919 = vrot.slane %v697, 7
    %v920 = vrot.slane %v698, 1
    %v921 = vrot.slane %v698, 2
    %v922 = vrot.slane %v698, 3
    %v923 = vrot.slane %v698, 4
    %v924 = vrot.slane %v698, 5
    %v925 = vrot.slane %v698, 6
    %v926 = vrot.slane %v698, 7
    %v927 = vrot.slane %v699, 1
    %v928 = vrot.slane %v699, 2
    %v929 = vrot.slane %v699, 3
    %v930 = vrot.slane %v699, 4
    %v931 = vrot.slane %v699, 5
    %v932 = vrot.slane %v699, 6
    %v933 = vrot.slane %v699, 7
    %v934 = vrot.slane %v700, 1
    %v935 = vrot.slane %v700, 2
    %v936 = vrot.slane %v700, 3
    %v937 = vrot.slane %v700, 4
    %v938 = vrot.slane %v700, 5
    %v939 = vrot.slane %v700, 6
    %v940 = vrot.slane %v700, 7
    %v941 = vrot.slane %v701, 1
    %v942 = vrot.slane %v701, 2
    %v943 = vrot.slane %v701, 3
    %v944 = vrot.slane %v701, 4
    %v945 = vrot.slane %v701, 5
    %v946 = vrot.slane %v701, 6
    %v947 = vrot.slane %v701, 7
    %v948 = vrot.slane %v702, 1
    %v949 = vrot.slane %v702, 2
    %v950 = vrot.slane %v702, 3
    %v951 = vrot.slane %v702, 4
    %v952 = vrot.slane %v702, 5
    %v953 = vrot.slane %v702, 6
    %v954 = vrot.slane %v702, 7
    %v955 = vrot.slane %v703, 1
    %v956 = vrot.slane %v703, 2
    %v957 = vrot.slane %v703, 3
    %v958 = vrot.slane %v703, 4
    %v959 = vrot.slane %v703, 5
    %v960 = vrot.slane %v703, 6
    %v961 = vrot.slane %v703, 7
    %v962 = vrot.slane %v704, 1
    %v963 = vrot.slane %v704, 2
    %v964 = vrot.slane %v704, 3
    %v965 = vrot.slane %v704, 4
    %v966 = vrot.slane %v704, 5
    %v967 = vrot.slane %v704, 6
    %v968 = vrot.slane %v704, 7
    %v969 = vld [vmem:[%s5] sm:$0xff]
    %v970 = vperm.slane %v697, 0
    %v971 = vperm.slane %v913, 0
    %v972 = vperm.slane %v914, 0
    %v973 = vperm.slane %v915, 0
    %v974 = vperm.slane %v916, 0
    %v975 = vperm.slane %v917, 0
    %v976 = vperm.slane %v918, 0
    %v977 = vperm.slane %v919, 0
    %v978 = vperm.slane %v698, 0
    %v979 = vperm.slane %v920, 0
    %v980 = vperm.slane %v921, 0
    %v981 = vperm.slane %v922, 0
    %v982 = vperm.slane %v923, 0
    %v983 = vperm.slane %v924, 0
    %v984 = vperm.slane %v925, 0
    %v985 = vperm.slane %v926, 0
    %v986 = vperm.slane %v699, 0
    %v987 = vperm.slane %v927, 0
    %v988 = vperm.slane %v928, 0
    %v989 = vperm.slane %v929, 0
    %v990 = vperm.slane %v930, 0
    %v991 = vperm.slane %v931, 0
    %v992 = vperm.slane %v932, 0
    %v993 = vperm.slane %v933, 0
    %v994 = vperm.slane %v700, 0
    %v995 = vperm.slane %v934, 0
    %v996 = vperm.slane %v935, 0
    %v997 = vperm.slane %v936, 0
    %v998 = vperm.slane %v937, 0
    %v999 = vperm.slane %v938, 0
    %v1000 = vperm.slane %v939, 0
    %v1001 = vperm.slane %v940, 0
    %v1002 = vperm.slane %v701, 0
    %v1003 = vperm.slane %v941, 0
    %v1004 = vperm.slane %v942, 0
    %v1005 = vperm.slane %v943, 0
    %v1006 = vperm.slane %v944, 0
    %v1007 = vperm.slane %v945, 0
    %v1008 = vperm.slane %v946, 0
    %v1009 = vperm.slane %v947, 0
    %v1010 = vperm.slane %v702, 0
    %v1011 = vperm.slane %v948, 0
    %v1012 = vperm.slane %v949, 0
    %v1013 = vperm.slane %v950, 0
    %v1014 = vperm.slane %v951, 0
    %v1015 = vperm.slane %v952, 0
    %v1016 = vperm.slane %v953, 0
    %v1017 = vperm.slane %v954, 0
    %v1018 = vperm.slane %v703, 0
    %v1019 = vperm.slane %v955, 0
    %v1020 = vperm.slane %v956, 0
    %v1021 = vperm.slane %v957, 0
    %v1022 = vperm.slane %v958, 0
    %v1023 = vperm.slane %v959, 0
    %v1024 = vperm.slane %v960, 0
    %v1025 = vperm.slane %v961, 0
    %v1026 = vperm.slane %v704, 0
    %v1027 = vperm.slane %v962, 0
    %v1028 = vperm.slane %v963, 0
    %v1029 = vperm.slane %v964, 0
    %v1030 = vperm.slane %v965, 0
    %v1031 = vperm.slane %v966, 0
    %v1032 = vperm.slane %v967, 0
    %v1033 = vperm.slane %v968, 0
    %v1098 = vmul.f32 %v970, %v969
    %v1099 = vmul.f32 %v971, %v969
    %v1100 = vmul.f32 %v972, %v969
    %v1101 = vmul.f32 %v973, %v969
    %v1102 = vmul.f32 %v974, %v969
    %v1103 = vmul.f32 %v975, %v969
    %v1104 = vmul.f32 %v976, %v969
    %v1105 = vmul.f32 %v977, %v969
    %v1106 = vmul.f32 %v978, %v969
    %v1107 = vmul.f32 %v979, %v969
    %v1108 = vmul.f32 %v980, %v969
    %v1109 = vmul.f32 %v981, %v969
    %v1110 = vmul.f32 %v982, %v969
    %v1111 = vmul.f32 %v983, %v969
    %v1112 = vmul.f32 %v984, %v969
    %v1113 = vmul.f32 %v985, %v969
    %v1114 = vmul.f32 %v986, %v969
    %v1115 = vmul.f32 %v987, %v969
    %v1116 = vmul.f32 %v988, %v969
    %v1117 = vmul.f32 %v989, %v969
    %v1118 = vmul.f32 %v990, %v969
    %v1119 = vmul.f32 %v991, %v969
    %v1120 = vmul.f32 %v992, %v969
    %v1121 = vmul.f32 %v993, %v969
    %v1122 = vmul.f32 %v994, %v969
    %v1123 = vmul.f32 %v995, %v969
    %v1124 = vmul.f32 %v996, %v969
    %v1125 = vmul.f32 %v997, %v969
    %v1126 = vmul.f32 %v998, %v969
    %v1127 = vmul.f32 %v999, %v969
    %v1128 = vmul.f32 %v1000, %v969
    %v1129 = vmul.f32 %v1001, %v969
    %v1130 = vmul.f32 %v1002, %v969
    %v1131 = vmul.f32 %v1003, %v969
    %v1132 = vmul.f32 %v1004, %v969
    %v1133 = vmul.f32 %v1005, %v969
    %v1134 = vmul.f32 %v1006, %v969
    %v1135 = vmul.f32 %v1007, %v969
    %v1136 = vmul.f32 %v1008, %v969
    %v1137 = vmul.f32 %v1009, %v969
    %v1138 = vmul.f32 %v1010, %v969
    %v1139 = vmul.f32 %v1011, %v969
    %v1140 = vmul.f32 %v1012, %v969
    %v1141 = vmul.f32 %v1013, %v969
    %v1142 = vmul.f32 %v1014, %v969
    %v1143 = vmul.f32 %v1015, %v969
    %v1144 = vmul.f32 %v1016, %v969
    %v1145 = vmul.f32 %v1017, %v969
    %v1146 = vmul.f32 %v1018, %v969
    %v1147 = vmul.f32 %v1019, %v969
    %v1148 = vmul.f32 %v1020, %v969
    %v1149 = vmul.f32 %v1021, %v969
    %v1150 = vmul.f32 %v1022, %v969
    %v1151 = vmul.f32 %v1023, %v969
    %v1152 = vmul.f32 %v1024, %v969
    %v1153 = vmul.f32 %v1025, %v969
    %v1154 = vmul.f32 %v1026, %v969
    %v1155 = vmul.f32 %v1027, %v969
    %v1156 = vmul.f32 %v1028, %v969
    %v1157 = vmul.f32 %v1029, %v969
    %v1158 = vmul.f32 %v1030, %v969
    %v1159 = vmul.f32 %v1031, %v969
    %v1160 = vmul.f32 %v1032, %v969
    %v1161 = vmul.f32 %v1033, %v969
    %v1162 = vpack.c.bf16 %v1099, %v1098
    %v1163 = vpack.c.bf16 %v1101, %v1100
    %v1164 = vpack.c.bf16 %v1103, %v1102
    %v1165 = vpack.c.bf16 %v1105, %v1104
    %v1166 = vpack.c.bf16 %v1107, %v1106
    %v1167 = vpack.c.bf16 %v1109, %v1108
    %v1168 = vpack.c.bf16 %v1111, %v1110
    %v1169 = vpack.c.bf16 %v1113, %v1112
    %v1170 = vpack.c.bf16 %v1115, %v1114
    %v1171 = vpack.c.bf16 %v1117, %v1116
    %v1172 = vpack.c.bf16 %v1119, %v1118
    %v1173 = vpack.c.bf16 %v1121, %v1120
    %v1174 = vpack.c.bf16 %v1123, %v1122
    %v1175 = vpack.c.bf16 %v1125, %v1124
    %v1176 = vpack.c.bf16 %v1127, %v1126
    %v1177 = vpack.c.bf16 %v1129, %v1128
    %v1178 = vpack.c.bf16 %v1131, %v1130
    %v1179 = vpack.c.bf16 %v1133, %v1132
    %v1180 = vpack.c.bf16 %v1135, %v1134
    %v1181 = vpack.c.bf16 %v1137, %v1136
    %v1182 = vpack.c.bf16 %v1139, %v1138
    %v1183 = vpack.c.bf16 %v1141, %v1140
    %v1184 = vpack.c.bf16 %v1143, %v1142
    %v1185 = vpack.c.bf16 %v1145, %v1144
    %v1186 = vpack.c.bf16 %v1147, %v1146
    %v1187 = vpack.c.bf16 %v1149, %v1148
    %v1188 = vpack.c.bf16 %v1151, %v1150
    %v1189 = vpack.c.bf16 %v1153, %v1152
    %v1190 = vpack.c.bf16 %v1155, %v1154
    %v1191 = vpack.c.bf16 %v1157, %v1156
    %v1192 = vpack.c.bf16 %v1159, %v1158
    %v1193 = vpack.c.bf16 %v1161, %v1160
    %v1194 = vpack.c.bf16 %v898, %v897
    %v1195 = vpack.c.bf16 %v900, %v899
    %v1196 = vpack.c.bf16 %v902, %v901
    %v1197 = vpack.c.bf16 %v904, %v903
    %v1199 = vsel %vm123, %v1162, 0
    %v1202 = vsel %vm123, %v1163, 0
    %v1205 = vsel %vm123, %v1164, 0
    %v1208 = vsel %vm123, %v1165, 0
    %v1211 = vsel %vm123, %v1166, 0
    %v1214 = vsel %vm123, %v1167, 0
    %v1217 = vsel %vm123, %v1168, 0
    %v1220 = vsel %vm123, %v1169, 0
    %v1223 = vsel %vm123, %v1170, 0
    %v1226 = vsel %vm123, %v1171, 0
    %v1229 = vsel %vm123, %v1172, 0
    %v1232 = vsel %vm123, %v1173, 0
    %v1235 = vsel %vm123, %v1174, 0
    %v1238 = vsel %vm123, %v1175, 0
    %v1241 = vsel %vm123, %v1176, 0
    %v1244 = vsel %vm123, %v1177, 0
    %v1247 = vsel %vm123, %v1178, 0
    %v1250 = vsel %vm123, %v1179, 0
    %v1253 = vsel %vm123, %v1180, 0
    %v1256 = vsel %vm123, %v1181, 0
    %v1259 = vsel %vm123, %v1182, 0
    %v1262 = vsel %vm123, %v1183, 0
    %v1265 = vsel %vm123, %v1184, 0
    %v1268 = vsel %vm123, %v1185, 0
    %v1271 = vsel %vm123, %v1186, 0
    %v1274 = vsel %vm123, %v1187, 0
    %v1277 = vsel %vm123, %v1188, 0
    %v1280 = vsel %vm123, %v1189, 0
    %v1283 = vsel %vm123, %v1190, 0
    %v1286 = vsel %vm123, %v1191, 0
    %v1289 = vsel %vm123, %v1192, 0
    %v1292 = vsel %vm123, %v1193, 0
    %v1295 = vsel %vm123, %v1194, 0
    %v1298 = vsel %vm123, %v1195, 0
    %v1301 = vsel %vm123, %v1196, 0
    %v1304 = vsel %vm123, %v1197, 0
    %1306 = vmatpush.bf16.xpose.msra.mxu0 0
    %1307 = vmatpush.bf16.xpose.msra.mxu0 0
    %1308 = vmatpush.bf16.xpose.msra.mxu0 0
    %1309 = vmatpush.bf16.xpose.msra.mxu0 0
    %1310 = vmatpush.bf16.xpose.msra.mxu0 %v1304
    %1311 = vmatpush.bf16.xpose.msra.mxu0 %v1301
    %1312 = vmatpush.bf16.xpose.msra.mxu0 %v1298
    %1313 = vmatpush.bf16.xpose.msra.mxu0 %v1295
    %1314 = vmatmul.bf16.gmra.mxu0 %v1199
    %v1315 = vpop.f32.mrf.mxu0
    %v1316 = vadd.f32 0.0, %v1315
    %v1317 = vpop.f32.mrf.mxu0
    %v1318 = vadd.f32 0.0, %v1317
    %1319 = vmatmul.bf16.gmra.mxu0 %v1202
    %v1320 = vpop.f32.mrf.mxu0
    %v1321 = vadd.f32 0.0, %v1320
    %v1322 = vpop.f32.mrf.mxu0
    %v1323 = vadd.f32 0.0, %v1322
    %1324 = vmatmul.bf16.gmra.mxu0 %v1205
    %v1325 = vpop.f32.mrf.mxu0
    %v1326 = vadd.f32 0.0, %v1325
    %v1327 = vpop.f32.mrf.mxu0
    %v1328 = vadd.f32 0.0, %v1327
    %1329 = vmatmul.bf16.gmra.mxu0 %v1208
    %v1330 = vpop.f32.mrf.mxu0
    %v1331 = vadd.f32 0.0, %v1330
    %v1332 = vpop.f32.mrf.mxu0
    %v1333 = vadd.f32 0.0, %v1332
    %1334 = vmatmul.bf16.gmra.mxu0 %v1211
    %v1335 = vpop.f32.mrf.mxu0
    %v1336 = vadd.f32 0.0, %v1335
    %v1337 = vpop.f32.mrf.mxu0
    %v1338 = vadd.f32 0.0, %v1337
    %1339 = vmatmul.bf16.gmra.mxu0 %v1214
    %v1340 = vpop.f32.mrf.mxu0
    %v1341 = vadd.f32 0.0, %v1340
    %v1342 = vpop.f32.mrf.mxu0
    %v1343 = vadd.f32 0.0, %v1342
    %1344 = vmatmul.bf16.gmra.mxu0 %v1217
    %v1345 = vpop.f32.mrf.mxu0
    %v1346 = vadd.f32 0.0, %v1345
    %v1347 = vpop.f32.mrf.mxu0
    %v1348 = vadd.f32 0.0, %v1347
    %1349 = vmatmul.bf16.gmra.mxu0 %v1220
    %v1350 = vpop.f32.mrf.mxu0
    %v1351 = vadd.f32 0.0, %v1350
    %v1352 = vpop.f32.mrf.mxu0
    %v1353 = vadd.f32 0.0, %v1352
    %1354 = vmatmul.bf16.gmra.mxu0 %v1223
    %v1355 = vpop.f32.mrf.mxu0
    %v1356 = vadd.f32 0.0, %v1355
    %v1357 = vpop.f32.mrf.mxu0
    %v1358 = vadd.f32 0.0, %v1357
    %1359 = vmatmul.bf16.gmra.mxu0 %v1226
    %v1360 = vpop.f32.mrf.mxu0
    %v1361 = vadd.f32 0.0, %v1360
    %v1362 = vpop.f32.mrf.mxu0
    %v1363 = vadd.f32 0.0, %v1362
    %1364 = vmatmul.bf16.gmra.mxu0 %v1229
    %v1365 = vpop.f32.mrf.mxu0
    %v1366 = vadd.f32 0.0, %v1365
    %v1367 = vpop.f32.mrf.mxu0
    %v1368 = vadd.f32 0.0, %v1367
    %1369 = vmatmul.bf16.gmra.mxu0 %v1232
    %v1370 = vpop.f32.mrf.mxu0
    %v1371 = vadd.f32 0.0, %v1370
    %v1372 = vpop.f32.mrf.mxu0
    %v1373 = vadd.f32 0.0, %v1372
    %1374 = vmatmul.bf16.gmra.mxu0 %v1235
    %v1375 = vpop.f32.mrf.mxu0
    %v1376 = vadd.f32 0.0, %v1375
    %v1377 = vpop.f32.mrf.mxu0
    %v1378 = vadd.f32 0.0, %v1377
    %1379 = vmatmul.bf16.gmra.mxu0 %v1238
    %v1380 = vpop.f32.mrf.mxu0
    %v1381 = vadd.f32 0.0, %v1380
    %v1382 = vpop.f32.mrf.mxu0
    %v1383 = vadd.f32 0.0, %v1382
    %1384 = vmatmul.bf16.gmra.mxu0 %v1241
    %v1385 = vpop.f32.mrf.mxu0
    %v1386 = vadd.f32 0.0, %v1385
    %v1387 = vpop.f32.mrf.mxu0
    %v1388 = vadd.f32 0.0, %v1387
    %1389 = vmatmul.bf16.gmra.mxu0 %v1244
    %v1390 = vpop.f32.mrf.mxu0
    %v1391 = vadd.f32 0.0, %v1390
    %v1392 = vpop.f32.mrf.mxu0
    %v1393 = vadd.f32 0.0, %v1392
    %1394 = vmatmul.bf16.gmra.mxu0 %v1247
    %v1395 = vpop.f32.mrf.mxu0
    %v1396 = vadd.f32 0.0, %v1395
    %v1397 = vpop.f32.mrf.mxu0
    %v1398 = vadd.f32 0.0, %v1397
    %1399 = vmatmul.bf16.gmra.mxu0 %v1250
    %v1400 = vpop.f32.mrf.mxu0
    %v1401 = vadd.f32 0.0, %v1400
    %v1402 = vpop.f32.mrf.mxu0
    %v1403 = vadd.f32 0.0, %v1402
    %1404 = vmatmul.bf16.gmra.mxu0 %v1253
    %v1405 = vpop.f32.mrf.mxu0
    %v1406 = vadd.f32 0.0, %v1405
    %v1407 = vpop.f32.mrf.mxu0
    %v1408 = vadd.f32 0.0, %v1407
    %1409 = vmatmul.bf16.gmra.mxu0 %v1256
    %v1410 = vpop.f32.mrf.mxu0
    %v1411 = vadd.f32 0.0, %v1410
    %v1412 = vpop.f32.mrf.mxu0
    %v1413 = vadd.f32 0.0, %v1412
    %1414 = vmatmul.bf16.gmra.mxu0 %v1259
    %v1415 = vpop.f32.mrf.mxu0
    %v1416 = vadd.f32 0.0, %v1415
    %v1417 = vpop.f32.mrf.mxu0
    %v1418 = vadd.f32 0.0, %v1417
    %1419 = vmatmul.bf16.gmra.mxu0 %v1262
    %v1420 = vpop.f32.mrf.mxu0
    %v1421 = vadd.f32 0.0, %v1420
    %v1422 = vpop.f32.mrf.mxu0
    %v1423 = vadd.f32 0.0, %v1422
    %1424 = vmatmul.bf16.gmra.mxu0 %v1265
    %v1425 = vpop.f32.mrf.mxu0
    %v1426 = vadd.f32 0.0, %v1425
    %v1427 = vpop.f32.mrf.mxu0
    %v1428 = vadd.f32 0.0, %v1427
    %1429 = vmatmul.bf16.gmra.mxu0 %v1268
    %v1430 = vpop.f32.mrf.mxu0
    %v1431 = vadd.f32 0.0, %v1430
    %v1432 = vpop.f32.mrf.mxu0
    %v1433 = vadd.f32 0.0, %v1432
    %1434 = vmatmul.bf16.gmra.mxu0 %v1271
    %v1435 = vpop.f32.mrf.mxu0
    %v1436 = vadd.f32 0.0, %v1435
    %v1437 = vpop.f32.mrf.mxu0
    %v1438 = vadd.f32 0.0, %v1437
    %1439 = vmatmul.bf16.gmra.mxu0 %v1274
    %v1440 = vpop.f32.mrf.mxu0
    %v1441 = vadd.f32 0.0, %v1440
    %v1442 = vpop.f32.mrf.mxu0
    %v1443 = vadd.f32 0.0, %v1442
    %1444 = vmatmul.bf16.gmra.mxu0 %v1277
    %v1445 = vpop.f32.mrf.mxu0
    %v1446 = vadd.f32 0.0, %v1445
    %v1447 = vpop.f32.mrf.mxu0
    %v1448 = vadd.f32 0.0, %v1447
    %1449 = vmatmul.bf16.gmra.mxu0 %v1280
    %v1450 = vpop.f32.mrf.mxu0
    %v1451 = vadd.f32 0.0, %v1450
    %v1452 = vpop.f32.mrf.mxu0
    %v1453 = vadd.f32 0.0, %v1452
    %1454 = vmatmul.bf16.gmra.mxu0 %v1283
    %v1455 = vpop.f32.mrf.mxu0
    %v1456 = vadd.f32 0.0, %v1455
    %v1457 = vpop.f32.mrf.mxu0
    %v1458 = vadd.f32 0.0, %v1457
    %1459 = vmatmul.bf16.gmra.mxu0 %v1286
    %v1460 = vpop.f32.mrf.mxu0
    %v1461 = vadd.f32 0.0, %v1460
    %v1462 = vpop.f32.mrf.mxu0
    %v1463 = vadd.f32 0.0, %v1462
    %1464 = vmatmul.bf16.gmra.mxu0 %v1289
    %v1465 = vpop.f32.mrf.mxu0
    %v1466 = vadd.f32 0.0, %v1465
    %v1467 = vpop.f32.mrf.mxu0
    %v1468 = vadd.f32 0.0, %v1467
    %1469 = vmatmul.bf16.gmra.mxu0 %v1292
    %v1470 = vpop.f32.mrf.mxu0
    %v1471 = vadd.f32 0.0, %v1470
    %v1472 = vpop.f32.mrf.mxu0
    %v1473 = vadd.f32 0.0, %v1472
    %1474 = vdwg.mxu0
    %v1475 = vmul.f32 %v1316, 0.5
    %v1476 = vmul.f32 %v1318, 0.5
    %v1477 = vmul.f32 %v1321, 0.5
    %v1478 = vmul.f32 %v1323, 0.5
    %v1479 = vmul.f32 %v1326, 0.5
    %v1480 = vmul.f32 %v1328, 0.5
    %v1481 = vmul.f32 %v1331, 0.5
    %v1482 = vmul.f32 %v1333, 0.5
    %v1483 = vmul.f32 %v1336, 0.5
    %v1484 = vmul.f32 %v1338, 0.5
    %v1485 = vmul.f32 %v1341, 0.5
    %v1486 = vmul.f32 %v1343, 0.5
    %v1487 = vmul.f32 %v1346, 0.5
    %v1488 = vmul.f32 %v1348, 0.5
    %v1489 = vmul.f32 %v1351, 0.5
    %v1490 = vmul.f32 %v1353, 0.5
    %v1491 = vmul.f32 %v1356, 0.5
    %v1492 = vmul.f32 %v1358, 0.5
    %v1493 = vmul.f32 %v1361, 0.5
    %v1494 = vmul.f32 %v1363, 0.5
    %v1495 = vmul.f32 %v1366, 0.5
    %v1496 = vmul.f32 %v1368, 0.5
    %v1497 = vmul.f32 %v1371, 0.5
    %v1498 = vmul.f32 %v1373, 0.5
    %v1499 = vmul.f32 %v1376, 0.5
    %v1500 = vmul.f32 %v1378, 0.5
    %v1501 = vmul.f32 %v1381, 0.5
    %v1502 = vmul.f32 %v1383, 0.5
    %v1503 = vmul.f32 %v1386, 0.5
    %v1504 = vmul.f32 %v1388, 0.5
    %v1505 = vmul.f32 %v1391, 0.5
    %v1506 = vmul.f32 %v1393, 0.5
    %v1507 = vmul.f32 %v1396, 0.5
    %v1508 = vmul.f32 %v1398, 0.5
    %v1509 = vmul.f32 %v1401, 0.5
    %v1510 = vmul.f32 %v1403, 0.5
    %v1511 = vmul.f32 %v1406, 0.5
    %v1512 = vmul.f32 %v1408, 0.5
    %v1513 = vmul.f32 %v1411, 0.5
    %v1514 = vmul.f32 %v1413, 0.5
    %v1515 = vmul.f32 %v1416, 0.5
    %v1516 = vmul.f32 %v1418, 0.5
    %v1517 = vmul.f32 %v1421, 0.5
    %v1518 = vmul.f32 %v1423, 0.5
    %v1519 = vmul.f32 %v1426, 0.5
    %v1520 = vmul.f32 %v1428, 0.5
    %v1521 = vmul.f32 %v1431, 0.5
    %v1522 = vmul.f32 %v1433, 0.5
    %v1523 = vmul.f32 %v1436, 0.5
    %v1524 = vmul.f32 %v1438, 0.5
    %v1525 = vmul.f32 %v1441, 0.5
    %v1526 = vmul.f32 %v1443, 0.5
    %v1527 = vmul.f32 %v1446, 0.5
    %v1528 = vmul.f32 %v1448, 0.5
    %v1529 = vmul.f32 %v1451, 0.5
    %v1530 = vmul.f32 %v1453, 0.5
    %v1531 = vmul.f32 %v1456, 0.5
    %v1532 = vmul.f32 %v1458, 0.5
    %v1533 = vmul.f32 %v1461, 0.5
    %v1534 = vmul.f32 %v1463, 0.5
    %v1535 = vmul.f32 %v1466, 0.5
    %v1536 = vmul.f32 %v1468, 0.5
    %v1537 = vmul.f32 %v1471, 0.5
    %v1538 = vmul.f32 %v1473, 0.5
    %v1539 = vld [vmem:[%s6] sm:$0xff]
    %v1540 = vld [vmem:[%s6 + $0x8] sm:$0xff]
    %v1541 = vld [vmem:[%s6 + $0x10] sm:$0xff]
    %v1542 = vld [vmem:[%s6 + $0x18] sm:$0xff]
    %v1543 = vld [vmem:[%s6 + $0x20] sm:$0xff]
    %v1544 = vld [vmem:[%s6 + $0x28] sm:$0xff]
    %v1545 = vld [vmem:[%s6 + $0x30] sm:$0xff]
    %v1546 = vld [vmem:[%s6 + $0x38] sm:$0xff]
    %v1547 = vld [vmem:[%s6 + $0x40] sm:$0xff]
    %v1548 = vld [vmem:[%s6 + $0x48] sm:$0xff]
    %v1549 = vld [vmem:[%s6 + $0x50] sm:$0xff]
    %v1550 = vld [vmem:[%s6 + $0x58] sm:$0xff]
    %v1551 = vld [vmem:[%s6 + $0x60] sm:$0xff]
    %v1552 = vld [vmem:[%s6 + $0x68] sm:$0xff]
    %v1553 = vld [vmem:[%s6 + $0x70] sm:$0xff]
    %v1554 = vld [vmem:[%s6 + $0x78] sm:$0xff]
    %v1555 = vld [vmem:[%s6 + $0x80] sm:$0xff]
    %v1556 = vld [vmem:[%s6 + $0x88] sm:$0xff]
    %v1557 = vld [vmem:[%s6 + $0x90] sm:$0xff]
    %v1558 = vld [vmem:[%s6 + $0x98] sm:$0xff]
    %v1559 = vld [vmem:[%s6 + $0xa0] sm:$0xff]
    %v1560 = vld [vmem:[%s6 + $0xa8] sm:$0xff]
    %v1561 = vld [vmem:[%s6 + $0xb0] sm:$0xff]
    %v1562 = vld [vmem:[%s6 + $0xb8] sm:$0xff]
    %v1563 = vld [vmem:[%s6 + $0xc0] sm:$0xff]
    %v1564 = vld [vmem:[%s6 + $0xc8] sm:$0xff]
    %v1565 = vld [vmem:[%s6 + $0xd0] sm:$0xff]
    %v1566 = vld [vmem:[%s6 + $0xd8] sm:$0xff]
    %v1567 = vld [vmem:[%s6 + $0xe0] sm:$0xff]
    %v1568 = vld [vmem:[%s6 + $0xe8] sm:$0xff]
    %v1569 = vld [vmem:[%s6 + $0xf0] sm:$0xff]
    %v1570 = vld [vmem:[%s6 + $0xf8] sm:$0xff]
    %v1571 = vld [vmem:[%s6 + $0x100] sm:$0xff]
    %v1572 = vld [vmem:[%s6 + $0x108] sm:$0xff]
    %v1573 = vld [vmem:[%s6 + $0x110] sm:$0xff]
    %v1574 = vld [vmem:[%s6 + $0x118] sm:$0xff]
    %v1575 = vld [vmem:[%s6 + $0x120] sm:$0xff]
    %v1576 = vld [vmem:[%s6 + $0x128] sm:$0xff]
    %v1577 = vld [vmem:[%s6 + $0x130] sm:$0xff]
    %v1578 = vld [vmem:[%s6 + $0x138] sm:$0xff]
    %v1579 = vld [vmem:[%s6 + $0x140] sm:$0xff]
    %v1580 = vld [vmem:[%s6 + $0x148] sm:$0xff]
    %v1581 = vld [vmem:[%s6 + $0x150] sm:$0xff]
    %v1582 = vld [vmem:[%s6 + $0x158] sm:$0xff]
    %v1583 = vld [vmem:[%s6 + $0x160] sm:$0xff]
    %v1584 = vld [vmem:[%s6 + $0x168] sm:$0xff]
    %v1585 = vld [vmem:[%s6 + $0x170] sm:$0xff]
    %v1586 = vld [vmem:[%s6 + $0x178] sm:$0xff]
    %v1587 = vld [vmem:[%s6 + $0x180] sm:$0xff]
    %v1588 = vld [vmem:[%s6 + $0x188] sm:$0xff]
    %v1589 = vld [vmem:[%s6 + $0x190] sm:$0xff]
    %v1590 = vld [vmem:[%s6 + $0x198] sm:$0xff]
    %v1591 = vld [vmem:[%s6 + $0x1a0] sm:$0xff]
    %v1592 = vld [vmem:[%s6 + $0x1a8] sm:$0xff]
    %v1593 = vld [vmem:[%s6 + $0x1b0] sm:$0xff]
    %v1594 = vld [vmem:[%s6 + $0x1b8] sm:$0xff]
    %v1595 = vld [vmem:[%s6 + $0x1c0] sm:$0xff]
    %v1596 = vld [vmem:[%s6 + $0x1c8] sm:$0xff]
    %v1597 = vld [vmem:[%s6 + $0x1d0] sm:$0xff]
    %v1598 = vld [vmem:[%s6 + $0x1d8] sm:$0xff]
    %v1599 = vld [vmem:[%s6 + $0x1e0] sm:$0xff]
    %v1600 = vld [vmem:[%s6 + $0x1e8] sm:$0xff]
    %v1601 = vld [vmem:[%s6 + $0x1f0] sm:$0xff]
    %v1602 = vld [vmem:[%s6 + $0x1f8] sm:$0xff]
    %v1603 = vadd.f32 %v1475, %v1539
    %v1604 = vadd.f32 %v1476, %v1540
    %v1605 = vadd.f32 %v1477, %v1541
    %v1606 = vadd.f32 %v1478, %v1542
    %v1607 = vadd.f32 %v1479, %v1543
    %v1608 = vadd.f32 %v1480, %v1544
    %v1609 = vadd.f32 %v1481, %v1545
    %v1610 = vadd.f32 %v1482, %v1546
    %v1611 = vadd.f32 %v1483, %v1547
    %v1612 = vadd.f32 %v1484, %v1548
    %v1613 = vadd.f32 %v1485, %v1549
    %v1614 = vadd.f32 %v1486, %v1550
    %v1615 = vadd.f32 %v1487, %v1551
    %v1616 = vadd.f32 %v1488, %v1552
    %v1617 = vadd.f32 %v1489, %v1553
    %v1618 = vadd.f32 %v1490, %v1554
    %v1619 = vadd.f32 %v1491, %v1555
    %v1620 = vadd.f32 %v1492, %v1556
    %v1621 = vadd.f32 %v1493, %v1557
    %v1622 = vadd.f32 %v1494, %v1558
    %v1623 = vadd.f32 %v1495, %v1559
    %v1624 = vadd.f32 %v1496, %v1560
    %v1625 = vadd.f32 %v1497, %v1561
    %v1626 = vadd.f32 %v1498, %v1562
    %v1627 = vadd.f32 %v1499, %v1563
    %v1628 = vadd.f32 %v1500, %v1564
    %v1629 = vadd.f32 %v1501, %v1565
    %v1630 = vadd.f32 %v1502, %v1566
    %v1631 = vadd.f32 %v1503, %v1567
    %v1632 = vadd.f32 %v1504, %v1568
    %v1633 = vadd.f32 %v1505, %v1569
    %v1634 = vadd.f32 %v1506, %v1570
    %v1635 = vadd.f32 %v1507, %v1571
    %v1636 = vadd.f32 %v1508, %v1572
    %v1637 = vadd.f32 %v1509, %v1573
    %v1638 = vadd.f32 %v1510, %v1574
    %v1639 = vadd.f32 %v1511, %v1575
    %v1640 = vadd.f32 %v1512, %v1576
    %v1641 = vadd.f32 %v1513, %v1577
    %v1642 = vadd.f32 %v1514, %v1578
    %v1643 = vadd.f32 %v1515, %v1579
    %v1644 = vadd.f32 %v1516, %v1580
    %v1645 = vadd.f32 %v1517, %v1581
    %v1646 = vadd.f32 %v1518, %v1582
    %v1647 = vadd.f32 %v1519, %v1583
    %v1648 = vadd.f32 %v1520, %v1584
    %v1649 = vadd.f32 %v1521, %v1585
    %v1650 = vadd.f32 %v1522, %v1586
    %v1651 = vadd.f32 %v1523, %v1587
    %v1652 = vadd.f32 %v1524, %v1588
    %v1653 = vadd.f32 %v1525, %v1589
    %v1654 = vadd.f32 %v1526, %v1590
    %v1655 = vadd.f32 %v1527, %v1591
    %v1656 = vadd.f32 %v1528, %v1592
    %v1657 = vadd.f32 %v1529, %v1593
    %v1658 = vadd.f32 %v1530, %v1594
    %v1659 = vadd.f32 %v1531, %v1595
    %v1660 = vadd.f32 %v1532, %v1596
    %v1661 = vadd.f32 %v1533, %v1597
    %v1662 = vadd.f32 %v1534, %v1598
    %v1663 = vadd.f32 %v1535, %v1599
    %v1664 = vadd.f32 %v1536, %v1600
    %v1665 = vadd.f32 %v1537, %v1601
    %v1666 = vadd.f32 %v1538, %v1602
    %vm1667 = vcmask 523264
    %v1668 = vsel %vm1667, %v1603, -inf
    %1669 = vmax.xlane.f32.xlu0 %v1668
    %v1670 = vpop.xlane.xlu0 %1669
    %v1671 = vsel %vm1667, %v1604, -inf
    %1672 = vmax.xlane.f32.xlu0 %v1671
    %v1673 = vpop.xlane.xlu0 %1672
    %v1674 = vsel %vm1667, %v1605, -inf
    %1675 = vmax.xlane.f32.xlu0 %v1674
    %v1676 = vpop.xlane.xlu0 %1675
    %v1677 = vsel %vm1667, %v1606, -inf
    %1678 = vmax.xlane.f32.xlu0 %v1677
    %v1679 = vpop.xlane.xlu0 %1678
    %v1680 = vsel %vm1667, %v1607, -inf
    %1681 = vmax.xlane.f32.xlu0 %v1680
    %v1682 = vpop.xlane.xlu0 %1681
    %v1683 = vsel %vm1667, %v1608, -inf
    %1684 = vmax.xlane.f32.xlu0 %v1683
    %v1685 = vpop.xlane.xlu0 %1684
    %v1686 = vsel %vm1667, %v1609, -inf
    %1687 = vmax.xlane.f32.xlu0 %v1686
    %v1688 = vpop.xlane.xlu0 %1687
    %v1689 = vsel %vm1667, %v1610, -inf
    %1690 = vmax.xlane.f32.xlu0 %v1689
    %v1691 = vpop.xlane.xlu0 %1690
    %v1692 = vsel %vm1667, %v1611, -inf
    %1693 = vmax.xlane.f32.xlu0 %v1692
    %v1694 = vpop.xlane.xlu0 %1693
    %v1695 = vsel %vm1667, %v1612, -inf
    %1696 = vmax.xlane.f32.xlu0 %v1695
    %v1697 = vpop.xlane.xlu0 %1696
    %v1698 = vsel %vm1667, %v1613, -inf
    %1699 = vmax.xlane.f32.xlu0 %v1698
    %v1700 = vpop.xlane.xlu0 %1699
    %v1701 = vsel %vm1667, %v1614, -inf
    %1702 = vmax.xlane.f32.xlu0 %v1701
    %v1703 = vpop.xlane.xlu0 %1702
    %v1704 = vsel %vm1667, %v1615, -inf
    %1705 = vmax.xlane.f32.xlu0 %v1704
    %v1706 = vpop.xlane.xlu0 %1705
    %v1707 = vsel %vm1667, %v1616, -inf
    %1708 = vmax.xlane.f32.xlu0 %v1707
    %v1709 = vpop.xlane.xlu0 %1708
    %v1710 = vsel %vm1667, %v1617, -inf
    %1711 = vmax.xlane.f32.xlu0 %v1710
    %v1712 = vpop.xlane.xlu0 %1711
    %v1713 = vsel %vm1667, %v1618, -inf
    %1714 = vmax.xlane.f32.xlu0 %v1713
    %v1715 = vpop.xlane.xlu0 %1714
    %v1716 = vsel %vm1667, %v1619, -inf
    %1717 = vmax.xlane.f32.xlu0 %v1716
    %v1718 = vpop.xlane.xlu0 %1717
    %v1719 = vsel %vm1667, %v1620, -inf
    %1720 = vmax.xlane.f32.xlu0 %v1719
    %v1721 = vpop.xlane.xlu0 %1720
    %v1722 = vsel %vm1667, %v1621, -inf
    %1723 = vmax.xlane.f32.xlu0 %v1722
    %v1724 = vpop.xlane.xlu0 %1723
    %v1725 = vsel %vm1667, %v1622, -inf
    %1726 = vmax.xlane.f32.xlu0 %v1725
    %v1727 = vpop.xlane.xlu0 %1726
    %v1728 = vsel %vm1667, %v1623, -inf
    %1729 = vmax.xlane.f32.xlu0 %v1728
    %v1730 = vpop.xlane.xlu0 %1729
    %v1731 = vsel %vm1667, %v1624, -inf
    %1732 = vmax.xlane.f32.xlu0 %v1731
    %v1733 = vpop.xlane.xlu0 %1732
    %v1734 = vsel %vm1667, %v1625, -inf
    %1735 = vmax.xlane.f32.xlu0 %v1734
    %v1736 = vpop.xlane.xlu0 %1735
    %v1737 = vsel %vm1667, %v1626, -inf
    %1738 = vmax.xlane.f32.xlu0 %v1737
    %v1739 = vpop.xlane.xlu0 %1738
    %v1740 = vsel %vm1667, %v1627, -inf
    %1741 = vmax.xlane.f32.xlu0 %v1740
    %v1742 = vpop.xlane.xlu0 %1741
    %v1743 = vsel %vm1667, %v1628, -inf
    %1744 = vmax.xlane.f32.xlu0 %v1743
    %v1745 = vpop.xlane.xlu0 %1744
    %v1746 = vsel %vm1667, %v1629, -inf
    %1747 = vmax.xlane.f32.xlu0 %v1746
    %v1748 = vpop.xlane.xlu0 %1747
    %v1749 = vsel %vm1667, %v1630, -inf
    %1750 = vmax.xlane.f32.xlu0 %v1749
    %v1751 = vpop.xlane.xlu0 %1750
    %v1752 = vsel %vm1667, %v1631, -inf
    %1753 = vmax.xlane.f32.xlu0 %v1752
    %v1754 = vpop.xlane.xlu0 %1753
    %v1755 = vsel %vm1667, %v1632, -inf
    %1756 = vmax.xlane.f32.xlu0 %v1755
    %v1757 = vpop.xlane.xlu0 %1756
    %v1758 = vsel %vm1667, %v1633, -inf
    %1759 = vmax.xlane.f32.xlu0 %v1758
    %v1760 = vpop.xlane.xlu0 %1759
    %v1761 = vsel %vm1667, %v1634, -inf
    %1762 = vmax.xlane.f32.xlu0 %v1761
    %v1763 = vpop.xlane.xlu0 %1762
    %v1764 = vsel %vm1667, %v1635, -inf
    %1765 = vmax.xlane.f32.xlu0 %v1764
    %v1766 = vpop.xlane.xlu0 %1765
    %v1767 = vsel %vm1667, %v1636, -inf
    %1768 = vmax.xlane.f32.xlu0 %v1767
    %v1769 = vpop.xlane.xlu0 %1768
    %v1770 = vsel %vm1667, %v1637, -inf
    %1771 = vmax.xlane.f32.xlu0 %v1770
    %v1772 = vpop.xlane.xlu0 %1771
    %v1773 = vsel %vm1667, %v1638, -inf
    %1774 = vmax.xlane.f32.xlu0 %v1773
    %v1775 = vpop.xlane.xlu0 %1774
    %v1776 = vsel %vm1667, %v1639, -inf
    %1777 = vmax.xlane.f32.xlu0 %v1776
    %v1778 = vpop.xlane.xlu0 %1777
    %v1779 = vsel %vm1667, %v1640, -inf
    %1780 = vmax.xlane.f32.xlu0 %v1779
    %v1781 = vpop.xlane.xlu0 %1780
    %v1782 = vsel %vm1667, %v1641, -inf
    %1783 = vmax.xlane.f32.xlu0 %v1782
    %v1784 = vpop.xlane.xlu0 %1783
    %v1785 = vsel %vm1667, %v1642, -inf
    %1786 = vmax.xlane.f32.xlu0 %v1785
    %v1787 = vpop.xlane.xlu0 %1786
    %v1788 = vsel %vm1667, %v1643, -inf
    %1789 = vmax.xlane.f32.xlu0 %v1788
    %v1790 = vpop.xlane.xlu0 %1789
    %v1791 = vsel %vm1667, %v1644, -inf
    %1792 = vmax.xlane.f32.xlu0 %v1791
    %v1793 = vpop.xlane.xlu0 %1792
    %v1794 = vsel %vm1667, %v1645, -inf
    %1795 = vmax.xlane.f32.xlu0 %v1794
    %v1796 = vpop.xlane.xlu0 %1795
    %v1797 = vsel %vm1667, %v1646, -inf
    %1798 = vmax.xlane.f32.xlu0 %v1797
    %v1799 = vpop.xlane.xlu0 %1798
    %v1800 = vsel %vm1667, %v1647, -inf
    %1801 = vmax.xlane.f32.xlu0 %v1800
    %v1802 = vpop.xlane.xlu0 %1801
    %v1803 = vsel %vm1667, %v1648, -inf
    %1804 = vmax.xlane.f32.xlu0 %v1803
    %v1805 = vpop.xlane.xlu0 %1804
    %v1806 = vsel %vm1667, %v1649, -inf
    %1807 = vmax.xlane.f32.xlu0 %v1806
    %v1808 = vpop.xlane.xlu0 %1807
    %v1809 = vsel %vm1667, %v1650, -inf
    %1810 = vmax.xlane.f32.xlu0 %v1809
    %v1811 = vpop.xlane.xlu0 %1810
    %v1812 = vsel %vm1667, %v1651, -inf
    %1813 = vmax.xlane.f32.xlu0 %v1812
    %v1814 = vpop.xlane.xlu0 %1813
    %v1815 = vsel %vm1667, %v1652, -inf
    %1816 = vmax.xlane.f32.xlu0 %v1815
    %v1817 = vpop.xlane.xlu0 %1816
    %v1818 = vsel %vm1667, %v1653, -inf
    %1819 = vmax.xlane.f32.xlu0 %v1818
    %v1820 = vpop.xlane.xlu0 %1819
    %v1821 = vsel %vm1667, %v1654, -inf
    %1822 = vmax.xlane.f32.xlu0 %v1821
    %v1823 = vpop.xlane.xlu0 %1822
    %v1824 = vsel %vm1667, %v1655, -inf
    %1825 = vmax.xlane.f32.xlu0 %v1824
    %v1826 = vpop.xlane.xlu0 %1825
    %v1827 = vsel %vm1667, %v1656, -inf
    %1828 = vmax.xlane.f32.xlu0 %v1827
    %v1829 = vpop.xlane.xlu0 %1828
    %v1830 = vsel %vm1667, %v1657, -inf
    %1831 = vmax.xlane.f32.xlu0 %v1830
    %v1832 = vpop.xlane.xlu0 %1831
    %v1833 = vsel %vm1667, %v1658, -inf
    %1834 = vmax.xlane.f32.xlu0 %v1833
    %v1835 = vpop.xlane.xlu0 %1834
    %v1836 = vsel %vm1667, %v1659, -inf
    %1837 = vmax.xlane.f32.xlu0 %v1836
    %v1838 = vpop.xlane.xlu0 %1837
    %v1839 = vsel %vm1667, %v1660, -inf
    %1840 = vmax.xlane.f32.xlu0 %v1839
    %v1841 = vpop.xlane.xlu0 %1840
    %v1842 = vsel %vm1667, %v1661, -inf
    %1843 = vmax.xlane.f32.xlu0 %v1842
    %v1844 = vpop.xlane.xlu0 %1843
    %v1845 = vsel %vm1667, %v1662, -inf
    %1846 = vmax.xlane.f32.xlu0 %v1845
    %v1847 = vpop.xlane.xlu0 %1846
    %v1848 = vsel %vm1667, %v1663, -inf
    %1849 = vmax.xlane.f32.xlu0 %v1848
    %v1850 = vpop.xlane.xlu0 %1849
    %v1851 = vsel %vm1667, %v1664, -inf
    %1852 = vmax.xlane.f32.xlu0 %v1851
    %v1853 = vpop.xlane.xlu0 %1852
    %v1854 = vsel %vm1667, %v1665, -inf
    %1855 = vmax.xlane.f32.xlu0 %v1854
    %v1856 = vpop.xlane.xlu0 %1855
    %v1857 = vsel %vm1667, %v1666, -inf
    %1858 = vmax.xlane.f32.xlu0 %v1857
    %v1859 = vpop.xlane.xlu0 %1858
    %v1860 = vsub.f32 %v1603, %v1670
    %v1861 = vsub.f32 %v1604, %v1673
    %v1862 = vsub.f32 %v1605, %v1676
    %v1863 = vsub.f32 %v1606, %v1679
    %v1864 = vsub.f32 %v1607, %v1682
    %v1865 = vsub.f32 %v1608, %v1685
    %v1866 = vsub.f32 %v1609, %v1688
    %v1867 = vsub.f32 %v1610, %v1691
    %v1868 = vsub.f32 %v1611, %v1694
    %v1869 = vsub.f32 %v1612, %v1697
    %v1870 = vsub.f32 %v1613, %v1700
    %v1871 = vsub.f32 %v1614, %v1703
    %v1872 = vsub.f32 %v1615, %v1706
    %v1873 = vsub.f32 %v1616, %v1709
    %v1874 = vsub.f32 %v1617, %v1712
    %v1875 = vsub.f32 %v1618, %v1715
    %v1876 = vsub.f32 %v1619, %v1718
    %v1877 = vsub.f32 %v1620, %v1721
    %v1878 = vsub.f32 %v1621, %v1724
    %v1879 = vsub.f32 %v1622, %v1727
    %v1880 = vsub.f32 %v1623, %v1730
    %v1881 = vsub.f32 %v1624, %v1733
    %v1882 = vsub.f32 %v1625, %v1736
    %v1883 = vsub.f32 %v1626, %v1739
    %v1884 = vsub.f32 %v1627, %v1742
    %v1885 = vsub.f32 %v1628, %v1745
    %v1886 = vsub.f32 %v1629, %v1748
    %v1887 = vsub.f32 %v1630, %v1751
    %v1888 = vsub.f32 %v1631, %v1754
    %v1889 = vsub.f32 %v1632, %v1757
    %v1890 = vsub.f32 %v1633, %v1760
    %v1891 = vsub.f32 %v1634, %v1763
    %v1892 = vsub.f32 %v1635, %v1766
    %v1893 = vsub.f32 %v1636, %v1769
    %v1894 = vsub.f32 %v1637, %v1772
    %v1895 = vsub.f32 %v1638, %v1775
    %v1896 = vsub.f32 %v1639, %v1778
    %v1897 = vsub.f32 %v1640, %v1781
    %v1898 = vsub.f32 %v1641, %v1784
    %v1899 = vsub.f32 %v1642, %v1787
    %v1900 = vsub.f32 %v1643, %v1790
    %v1901 = vsub.f32 %v1644, %v1793
    %v1902 = vsub.f32 %v1645, %v1796
    %v1903 = vsub.f32 %v1646, %v1799
    %v1904 = vsub.f32 %v1647, %v1802
    %v1905 = vsub.f32 %v1648, %v1805
    %v1906 = vsub.f32 %v1649, %v1808
    %v1907 = vsub.f32 %v1650, %v1811
    %v1908 = vsub.f32 %v1651, %v1814
    %v1909 = vsub.f32 %v1652, %v1817
    %v1910 = vsub.f32 %v1653, %v1820
    %v1911 = vsub.f32 %v1654, %v1823
    %v1912 = vsub.f32 %v1655, %v1826
    %v1913 = vsub.f32 %v1656, %v1829
    %v1914 = vsub.f32 %v1657, %v1832
    %v1915 = vsub.f32 %v1658, %v1835
    %v1916 = vsub.f32 %v1659, %v1838
    %v1917 = vsub.f32 %v1660, %v1841
    %v1918 = vsub.f32 %v1661, %v1844
    %v1919 = vsub.f32 %v1662, %v1847
    %v1920 = vsub.f32 %v1663, %v1850
    %v1921 = vsub.f32 %v1664, %v1853
    %v1922 = vsub.f32 %v1665, %v1856
    %v1923 = vsub.f32 %v1666, %v1859
    %v1924 = vmul.f32 %v1860, 1.442695
    %v1925 = vpow.pop %v1924
    %v1926 = vmul.f32 %v1861, 1.442695
    %v1927 = vpow.pop %v1926
    %v1928 = vmul.f32 %v1862, 1.442695
    %v1929 = vpow.pop %v1928
    %v1930 = vmul.f32 %v1863, 1.442695
    %v1931 = vpow.pop %v1930
    %v1932 = vmul.f32 %v1864, 1.442695
    %v1933 = vpow.pop %v1932
    %v1934 = vmul.f32 %v1865, 1.442695
    %v1935 = vpow.pop %v1934
    %v1936 = vmul.f32 %v1866, 1.442695
    %v1937 = vpow.pop %v1936
    %v1938 = vmul.f32 %v1867, 1.442695
    %v1939 = vpow.pop %v1938
    %v1940 = vmul.f32 %v1868, 1.442695
    %v1941 = vpow.pop %v1940
    %v1942 = vmul.f32 %v1869, 1.442695
    %v1943 = vpow.pop %v1942
    %v1944 = vmul.f32 %v1870, 1.442695
    %v1945 = vpow.pop %v1944
    %v1946 = vmul.f32 %v1871, 1.442695
    %v1947 = vpow.pop %v1946
    %v1948 = vmul.f32 %v1872, 1.442695
    %v1949 = vpow.pop %v1948
    %v1950 = vmul.f32 %v1873, 1.442695
    %v1951 = vpow.pop %v1950
    %v1952 = vmul.f32 %v1874, 1.442695
    %v1953 = vpow.pop %v1952
    %v1954 = vmul.f32 %v1875, 1.442695
    %v1955 = vpow.pop %v1954
    %v1956 = vmul.f32 %v1876, 1.442695
    %v1957 = vpow.pop %v1956
    %v1958 = vmul.f32 %v1877, 1.442695
    %v1959 = vpow.pop %v1958
    %v1960 = vmul.f32 %v1878, 1.442695
    %v1961 = vpow.pop %v1960
    %v1962 = vmul.f32 %v1879, 1.442695
    %v1963 = vpow.pop %v1962
    %v1964 = vmul.f32 %v1880, 1.442695
    %v1965 = vpow.pop %v1964
    %v1966 = vmul.f32 %v1881, 1.442695
    %v1967 = vpow.pop %v1966
    %v1968 = vmul.f32 %v1882, 1.442695
    %v1969 = vpow.pop %v1968
    %v1970 = vmul.f32 %v1883, 1.442695
    %v1971 = vpow.pop %v1970
    %v1972 = vmul.f32 %v1884, 1.442695
    %v1973 = vpow.pop %v1972
    %v1974 = vmul.f32 %v1885, 1.442695
    %v1975 = vpow.pop %v1974
    %v1976 = vmul.f32 %v1886, 1.442695
    %v1977 = vpow.pop %v1976
    %v1978 = vmul.f32 %v1887, 1.442695
    %v1979 = vpow.pop %v1978
    %v1980 = vmul.f32 %v1888, 1.442695
    %v1981 = vpow.pop %v1980
    %v1982 = vmul.f32 %v1889, 1.442695
    %v1983 = vpow.pop %v1982
    %v1984 = vmul.f32 %v1890, 1.442695
    %v1985 = vpow.pop %v1984
    %v1986 = vmul.f32 %v1891, 1.442695
    %v1987 = vpow.pop %v1986
    %v1988 = vmul.f32 %v1892, 1.442695
    %v1989 = vpow.pop %v1988
    %v1990 = vmul.f32 %v1893, 1.442695
    %v1991 = vpow.pop %v1990
    %v1992 = vmul.f32 %v1894, 1.442695
    %v1993 = vpow.pop %v1992
    %v1994 = vmul.f32 %v1895, 1.442695
    %v1995 = vpow.pop %v1994
    %v1996 = vmul.f32 %v1896, 1.442695
    %v1997 = vpow.pop %v1996
    %v1998 = vmul.f32 %v1897, 1.442695
    %v1999 = vpow.pop %v1998
    %v2000 = vmul.f32 %v1898, 1.442695
    %v2001 = vpow.pop %v2000
    %v2002 = vmul.f32 %v1899, 1.442695
    %v2003 = vpow.pop %v2002
    %v2004 = vmul.f32 %v1900, 1.442695
    %v2005 = vpow.pop %v2004
    %v2006 = vmul.f32 %v1901, 1.442695
    %v2007 = vpow.pop %v2006
    %v2008 = vmul.f32 %v1902, 1.442695
    %v2009 = vpow.pop %v2008
    %v2010 = vmul.f32 %v1903, 1.442695
    %v2011 = vpow.pop %v2010
    %v2012 = vmul.f32 %v1904, 1.442695
    %v2013 = vpow.pop %v2012
    %v2014 = vmul.f32 %v1905, 1.442695
    %v2015 = vpow.pop %v2014
    %v2016 = vmul.f32 %v1906, 1.442695
    %v2017 = vpow.pop %v2016
    %v2018 = vmul.f32 %v1907, 1.442695
    %v2019 = vpow.pop %v2018
    %v2020 = vmul.f32 %v1908, 1.442695
    %v2021 = vpow.pop %v2020
    %v2022 = vmul.f32 %v1909, 1.442695
    %v2023 = vpow.pop %v2022
    %v2024 = vmul.f32 %v1910, 1.442695
    %v2025 = vpow.pop %v2024
    %v2026 = vmul.f32 %v1911, 1.442695
    %v2027 = vpow.pop %v2026
    %v2028 = vmul.f32 %v1912, 1.442695
    %v2029 = vpow.pop %v2028
    %v2030 = vmul.f32 %v1913, 1.442695
    %v2031 = vpow.pop %v2030
    %v2032 = vmul.f32 %v1914, 1.442695
    %v2033 = vpow.pop %v2032
    %v2034 = vmul.f32 %v1915, 1.442695
    %v2035 = vpow.pop %v2034
    %v2036 = vmul.f32 %v1916, 1.442695
    %v2037 = vpow.pop %v2036
    %v2038 = vmul.f32 %v1917, 1.442695
    %v2039 = vpow.pop %v2038
    %v2040 = vmul.f32 %v1918, 1.442695
    %v2041 = vpow.pop %v2040
    %v2042 = vmul.f32 %v1919, 1.442695
    %v2043 = vpow.pop %v2042
    %v2044 = vmul.f32 %v1920, 1.442695
    %v2045 = vpow.pop %v2044
    %v2046 = vmul.f32 %v1921, 1.442695
    %v2047 = vpow.pop %v2046
    %v2048 = vmul.f32 %v1922, 1.442695
    %v2049 = vpow.pop %v2048
    %v2050 = vmul.f32 %v1923, 1.442695
    %v2051 = vpow.pop %v2050
    %v2052 = vsel %vm1667, %v1925, 0.0
    %2053 = vadd.xlane.f32.xlu0 %v2052
    %v2054 = vpop.xlane.xlu0 %2053
    %v2055 = vsel %vm1667, %v1927, 0.0
    %2056 = vadd.xlane.f32.xlu0 %v2055
    %v2057 = vpop.xlane.xlu0 %2056
    %v2058 = vsel %vm1667, %v1929, 0.0
    %2059 = vadd.xlane.f32.xlu0 %v2058
    %v2060 = vpop.xlane.xlu0 %2059
    %v2061 = vsel %vm1667, %v1931, 0.0
    %2062 = vadd.xlane.f32.xlu0 %v2061
    %v2063 = vpop.xlane.xlu0 %2062
    %v2064 = vsel %vm1667, %v1933, 0.0
    %2065 = vadd.xlane.f32.xlu0 %v2064
    %v2066 = vpop.xlane.xlu0 %2065
    %v2067 = vsel %vm1667, %v1935, 0.0
    %2068 = vadd.xlane.f32.xlu0 %v2067
    %v2069 = vpop.xlane.xlu0 %2068
    %v2070 = vsel %vm1667, %v1937, 0.0
    %2071 = vadd.xlane.f32.xlu0 %v2070
    %v2072 = vpop.xlane.xlu0 %2071
    %v2073 = vsel %vm1667, %v1939, 0.0
    %2074 = vadd.xlane.f32.xlu0 %v2073
    %v2075 = vpop.xlane.xlu0 %2074
    %v2076 = vsel %vm1667, %v1941, 0.0
    %2077 = vadd.xlane.f32.xlu0 %v2076
    %v2078 = vpop.xlane.xlu0 %2077
    %v2079 = vsel %vm1667, %v1943, 0.0
    %2080 = vadd.xlane.f32.xlu0 %v2079
    %v2081 = vpop.xlane.xlu0 %2080
    %v2082 = vsel %vm1667, %v1945, 0.0
    %2083 = vadd.xlane.f32.xlu0 %v2082
    %v2084 = vpop.xlane.xlu0 %2083
    %v2085 = vsel %vm1667, %v1947, 0.0
    %2086 = vadd.xlane.f32.xlu0 %v2085
    %v2087 = vpop.xlane.xlu0 %2086
    %v2088 = vsel %vm1667, %v1949, 0.0
    %2089 = vadd.xlane.f32.xlu0 %v2088
    %v2090 = vpop.xlane.xlu0 %2089
    %v2091 = vsel %vm1667, %v1951, 0.0
    %2092 = vadd.xlane.f32.xlu0 %v2091
    %v2093 = vpop.xlane.xlu0 %2092
    %v2094 = vsel %vm1667, %v1953, 0.0
    %2095 = vadd.xlane.f32.xlu0 %v2094
    %v2096 = vpop.xlane.xlu0 %2095
    %v2097 = vsel %vm1667, %v1955, 0.0
    %2098 = vadd.xlane.f32.xlu0 %v2097
    %v2099 = vpop.xlane.xlu0 %2098
    %v2100 = vsel %vm1667, %v1957, 0.0
    %2101 = vadd.xlane.f32.xlu0 %v2100
    %v2102 = vpop.xlane.xlu0 %2101
    %v2103 = vsel %vm1667, %v1959, 0.0
    %2104 = vadd.xlane.f32.xlu0 %v2103
    %v2105 = vpop.xlane.xlu0 %2104
    %v2106 = vsel %vm1667, %v1961, 0.0
    %2107 = vadd.xlane.f32.xlu0 %v2106
    %v2108 = vpop.xlane.xlu0 %2107
    %v2109 = vsel %vm1667, %v1963, 0.0
    %2110 = vadd.xlane.f32.xlu0 %v2109
    %v2111 = vpop.xlane.xlu0 %2110
    %v2112 = vsel %vm1667, %v1965, 0.0
    %2113 = vadd.xlane.f32.xlu0 %v2112
    %v2114 = vpop.xlane.xlu0 %2113
    %v2115 = vsel %vm1667, %v1967, 0.0
    %2116 = vadd.xlane.f32.xlu0 %v2115
    %v2117 = vpop.xlane.xlu0 %2116
    %v2118 = vsel %vm1667, %v1969, 0.0
    %2119 = vadd.xlane.f32.xlu0 %v2118
    %v2120 = vpop.xlane.xlu0 %2119
    %v2121 = vsel %vm1667, %v1971, 0.0
    %2122 = vadd.xlane.f32.xlu0 %v2121
    %v2123 = vpop.xlane.xlu0 %2122
    %v2124 = vsel %vm1667, %v1973, 0.0
    %2125 = vadd.xlane.f32.xlu0 %v2124
    %v2126 = vpop.xlane.xlu0 %2125
    %v2127 = vsel %vm1667, %v1975, 0.0
    %2128 = vadd.xlane.f32.xlu0 %v2127
    %v2129 = vpop.xlane.xlu0 %2128
    %v2130 = vsel %vm1667, %v1977, 0.0
    %2131 = vadd.xlane.f32.xlu0 %v2130
    %v2132 = vpop.xlane.xlu0 %2131
    %v2133 = vsel %vm1667, %v1979, 0.0
    %2134 = vadd.xlane.f32.xlu0 %v2133
    %v2135 = vpop.xlane.xlu0 %2134
    %v2136 = vsel %vm1667, %v1981, 0.0
    %2137 = vadd.xlane.f32.xlu0 %v2136
    %v2138 = vpop.xlane.xlu0 %2137
    %v2139 = vsel %vm1667, %v1983, 0.0
    %2140 = vadd.xlane.f32.xlu0 %v2139
    %v2141 = vpop.xlane.xlu0 %2140
    %v2142 = vsel %vm1667, %v1985, 0.0
    %2143 = vadd.xlane.f32.xlu0 %v2142
    %v2144 = vpop.xlane.xlu0 %2143
    %v2145 = vsel %vm1667, %v1987, 0.0
    %2146 = vadd.xlane.f32.xlu0 %v2145
    %v2147 = vpop.xlane.xlu0 %2146
    %v2148 = vsel %vm1667, %v1989, 0.0
    %2149 = vadd.xlane.f32.xlu0 %v2148
    %v2150 = vpop.xlane.xlu0 %2149
    %v2151 = vsel %vm1667, %v1991, 0.0
    %2152 = vadd.xlane.f32.xlu0 %v2151
    %v2153 = vpop.xlane.xlu0 %2152
    %v2154 = vsel %vm1667, %v1993, 0.0
    %2155 = vadd.xlane.f32.xlu0 %v2154
    %v2156 = vpop.xlane.xlu0 %2155
    %v2157 = vsel %vm1667, %v1995, 0.0
    %2158 = vadd.xlane.f32.xlu0 %v2157
    %v2159 = vpop.xlane.xlu0 %2158
    %v2160 = vsel %vm1667, %v1997, 0.0
    %2161 = vadd.xlane.f32.xlu0 %v2160
    %v2162 = vpop.xlane.xlu0 %2161
    %v2163 = vsel %vm1667, %v1999, 0.0
    %2164 = vadd.xlane.f32.xlu0 %v2163
    %v2165 = vpop.xlane.xlu0 %2164
    %v2166 = vsel %vm1667, %v2001, 0.0
    %2167 = vadd.xlane.f32.xlu0 %v2166
    %v2168 = vpop.xlane.xlu0 %2167
    %v2169 = vsel %vm1667, %v2003, 0.0
    %2170 = vadd.xlane.f32.xlu0 %v2169
    %v2171 = vpop.xlane.xlu0 %2170
    %v2172 = vsel %vm1667, %v2005, 0.0
    %2173 = vadd.xlane.f32.xlu0 %v2172
    %v2174 = vpop.xlane.xlu0 %2173
    %v2175 = vsel %vm1667, %v2007, 0.0
    %2176 = vadd.xlane.f32.xlu0 %v2175
    %v2177 = vpop.xlane.xlu0 %2176
    %v2178 = vsel %vm1667, %v2009, 0.0
    %2179 = vadd.xlane.f32.xlu0 %v2178
    %v2180 = vpop.xlane.xlu0 %2179
    %v2181 = vsel %vm1667, %v2011, 0.0
    %2182 = vadd.xlane.f32.xlu0 %v2181
    %v2183 = vpop.xlane.xlu0 %2182
    %v2184 = vsel %vm1667, %v2013, 0.0
    %2185 = vadd.xlane.f32.xlu0 %v2184
    %v2186 = vpop.xlane.xlu0 %2185
    %v2187 = vsel %vm1667, %v2015, 0.0
    %2188 = vadd.xlane.f32.xlu0 %v2187
    %v2189 = vpop.xlane.xlu0 %2188
    %v2190 = vsel %vm1667, %v2017, 0.0
    %2191 = vadd.xlane.f32.xlu0 %v2190
    %v2192 = vpop.xlane.xlu0 %2191
    %v2193 = vsel %vm1667, %v2019, 0.0
    %2194 = vadd.xlane.f32.xlu0 %v2193
    %v2195 = vpop.xlane.xlu0 %2194
    %v2196 = vsel %vm1667, %v2021, 0.0
    %2197 = vadd.xlane.f32.xlu0 %v2196
    %v2198 = vpop.xlane.xlu0 %2197
    %v2199 = vsel %vm1667, %v2023, 0.0
    %2200 = vadd.xlane.f32.xlu0 %v2199
    %v2201 = vpop.xlane.xlu0 %2200
    %v2202 = vsel %vm1667, %v2025, 0.0
    %2203 = vadd.xlane.f32.xlu0 %v2202
    %v2204 = vpop.xlane.xlu0 %2203
    %v2205 = vsel %vm1667, %v2027, 0.0
    %2206 = vadd.xlane.f32.xlu0 %v2205
    %v2207 = vpop.xlane.xlu0 %2206
    %v2208 = vsel %vm1667, %v2029, 0.0
    %2209 = vadd.xlane.f32.xlu0 %v2208
    %v2210 = vpop.xlane.xlu0 %2209
    %v2211 = vsel %vm1667, %v2031, 0.0
    %2212 = vadd.xlane.f32.xlu0 %v2211
    %v2213 = vpop.xlane.xlu0 %2212
    %v2214 = vsel %vm1667, %v2033, 0.0
    %2215 = vadd.xlane.f32.xlu0 %v2214
    %v2216 = vpop.xlane.xlu0 %2215
    %v2217 = vsel %vm1667, %v2035, 0.0
    %2218 = vadd.xlane.f32.xlu0 %v2217
    %v2219 = vpop.xlane.xlu0 %2218
    %v2220 = vsel %vm1667, %v2037, 0.0
    %2221 = vadd.xlane.f32.xlu0 %v2220
    %v2222 = vpop.xlane.xlu0 %2221
    %v2223 = vsel %vm1667, %v2039, 0.0
    %2224 = vadd.xlane.f32.xlu0 %v2223
    %v2225 = vpop.xlane.xlu0 %2224
    %v2226 = vsel %vm1667, %v2041, 0.0
    %2227 = vadd.xlane.f32.xlu0 %v2226
    %v2228 = vpop.xlane.xlu0 %2227
    %v2229 = vsel %vm1667, %v2043, 0.0
    %2230 = vadd.xlane.f32.xlu0 %v2229
    %v2231 = vpop.xlane.xlu0 %2230
    %v2232 = vsel %vm1667, %v2045, 0.0
    %2233 = vadd.xlane.f32.xlu0 %v2232
    %v2234 = vpop.xlane.xlu0 %2233
    %v2235 = vsel %vm1667, %v2047, 0.0
    %2236 = vadd.xlane.f32.xlu0 %v2235
    %v2237 = vpop.xlane.xlu0 %2236
    %v2238 = vsel %vm1667, %v2049, 0.0
    %2239 = vadd.xlane.f32.xlu0 %v2238
    %v2240 = vpop.xlane.xlu0 %2239
    %v2241 = vsel %vm1667, %v2051, 0.0
    %2242 = vadd.xlane.f32.xlu0 %v2241
    %v2243 = vpop.xlane.xlu0 %2242
    %v2244 = vrcp.pop %v2054
    %v2245 = vrcp.pop %v2057
    %v2246 = vrcp.pop %v2060
    %v2247 = vrcp.pop %v2063
    %v2248 = vrcp.pop %v2066
    %v2249 = vrcp.pop %v2069
    %v2250 = vrcp.pop %v2072
    %v2251 = vrcp.pop %v2075
    %v2252 = vrcp.pop %v2078
    %v2253 = vrcp.pop %v2081
    %v2254 = vrcp.pop %v2084
    %v2255 = vrcp.pop %v2087
    %v2256 = vrcp.pop %v2090
    %v2257 = vrcp.pop %v2093
    %v2258 = vrcp.pop %v2096
    %v2259 = vrcp.pop %v2099
    %v2260 = vrcp.pop %v2102
    %v2261 = vrcp.pop %v2105
    %v2262 = vrcp.pop %v2108
    %v2263 = vrcp.pop %v2111
    %v2264 = vrcp.pop %v2114
    %v2265 = vrcp.pop %v2117
    %v2266 = vrcp.pop %v2120
    %v2267 = vrcp.pop %v2123
    %v2268 = vrcp.pop %v2126
    %v2269 = vrcp.pop %v2129
    %v2270 = vrcp.pop %v2132
    %v2271 = vrcp.pop %v2135
    %v2272 = vrcp.pop %v2138
    %v2273 = vrcp.pop %v2141
    %v2274 = vrcp.pop %v2144
    %v2275 = vrcp.pop %v2147
    %v2276 = vrcp.pop %v2150
    %v2277 = vrcp.pop %v2153
    %v2278 = vrcp.pop %v2156
    %v2279 = vrcp.pop %v2159
    %v2280 = vrcp.pop %v2162
    %v2281 = vrcp.pop %v2165
    %v2282 = vrcp.pop %v2168
    %v2283 = vrcp.pop %v2171
    %v2284 = vrcp.pop %v2174
    %v2285 = vrcp.pop %v2177
    %v2286 = vrcp.pop %v2180
    %v2287 = vrcp.pop %v2183
    %v2288 = vrcp.pop %v2186
    %v2289 = vrcp.pop %v2189
    %v2290 = vrcp.pop %v2192
    %v2291 = vrcp.pop %v2195
    %v2292 = vrcp.pop %v2198
    %v2293 = vrcp.pop %v2201
    %v2294 = vrcp.pop %v2204
    %v2295 = vrcp.pop %v2207
    %v2296 = vrcp.pop %v2210
    %v2297 = vrcp.pop %v2213
    %v2298 = vrcp.pop %v2216
    %v2299 = vrcp.pop %v2219
    %v2300 = vrcp.pop %v2222
    %v2301 = vrcp.pop %v2225
    %v2302 = vrcp.pop %v2228
    %v2303 = vrcp.pop %v2231
    %v2304 = vrcp.pop %v2234
    %v2305 = vrcp.pop %v2237
    %v2306 = vrcp.pop %v2240
    %v2307 = vrcp.pop %v2243
    %v2308 = vmul.f32 %v1925, %v2244
    %v2309 = vmul.f32 %v1927, %v2245
    %v2310 = vmul.f32 %v1929, %v2246
    %v2311 = vmul.f32 %v1931, %v2247
    %v2312 = vmul.f32 %v1933, %v2248
    %v2313 = vmul.f32 %v1935, %v2249
    %v2314 = vmul.f32 %v1937, %v2250
    %v2315 = vmul.f32 %v1939, %v2251
    %v2316 = vmul.f32 %v1941, %v2252
    %v2317 = vmul.f32 %v1943, %v2253
    %v2318 = vmul.f32 %v1945, %v2254
    %v2319 = vmul.f32 %v1947, %v2255
    %v2320 = vmul.f32 %v1949, %v2256
    %v2321 = vmul.f32 %v1951, %v2257
    %v2322 = vmul.f32 %v1953, %v2258
    %v2323 = vmul.f32 %v1955, %v2259
    %v2324 = vmul.f32 %v1957, %v2260
    %v2325 = vmul.f32 %v1959, %v2261
    %v2326 = vmul.f32 %v1961, %v2262
    %v2327 = vmul.f32 %v1963, %v2263
    %v2328 = vmul.f32 %v1965, %v2264
    %v2329 = vmul.f32 %v1967, %v2265
    %v2330 = vmul.f32 %v1969, %v2266
    %v2331 = vmul.f32 %v1971, %v2267
    %v2332 = vmul.f32 %v1973, %v2268
    %v2333 = vmul.f32 %v1975, %v2269
    %v2334 = vmul.f32 %v1977, %v2270
    %v2335 = vmul.f32 %v1979, %v2271
    %v2336 = vmul.f32 %v1981, %v2272
    %v2337 = vmul.f32 %v1983, %v2273
    %v2338 = vmul.f32 %v1985, %v2274
    %v2339 = vmul.f32 %v1987, %v2275
    %v2340 = vmul.f32 %v1989, %v2276
    %v2341 = vmul.f32 %v1991, %v2277
    %v2342 = vmul.f32 %v1993, %v2278
    %v2343 = vmul.f32 %v1995, %v2279
    %v2344 = vmul.f32 %v1997, %v2280
    %v2345 = vmul.f32 %v1999, %v2281
    %v2346 = vmul.f32 %v2001, %v2282
    %v2347 = vmul.f32 %v2003, %v2283
    %v2348 = vmul.f32 %v2005, %v2284
    %v2349 = vmul.f32 %v2007, %v2285
    %v2350 = vmul.f32 %v2009, %v2286
    %v2351 = vmul.f32 %v2011, %v2287
    %v2352 = vmul.f32 %v2013, %v2288
    %v2353 = vmul.f32 %v2015, %v2289
    %v2354 = vmul.f32 %v2017, %v2290
    %v2355 = vmul.f32 %v2019, %v2291
    %v2356 = vmul.f32 %v2021, %v2292
    %v2357 = vmul.f32 %v2023, %v2293
    %v2358 = vmul.f32 %v2025, %v2294
    %v2359 = vmul.f32 %v2027, %v2295
    %v2360 = vmul.f32 %v2029, %v2296
    %v2361 = vmul.f32 %v2031, %v2297
    %v2362 = vmul.f32 %v2033, %v2298
    %v2363 = vmul.f32 %v2035, %v2299
    %v2364 = vmul.f32 %v2037, %v2300
    %v2365 = vmul.f32 %v2039, %v2301
    %v2366 = vmul.f32 %v2041, %v2302
    %v2367 = vmul.f32 %v2043, %v2303
    %v2368 = vmul.f32 %v2045, %v2304
    %v2369 = vmul.f32 %v2047, %v2305
    %v2370 = vmul.f32 %v2049, %v2306
    %v2371 = vmul.f32 %v2051, %v2307
    %v2372 = vpack.c.bf16 %v2309, %v2308
    %v2373 = vpack.c.bf16 %v2311, %v2310
    %v2374 = vpack.c.bf16 %v2313, %v2312
    %v2375 = vpack.c.bf16 %v2315, %v2314
    %v2376 = vpack.c.bf16 %v2317, %v2316
    %v2377 = vpack.c.bf16 %v2319, %v2318
    %v2378 = vpack.c.bf16 %v2321, %v2320
    %v2379 = vpack.c.bf16 %v2323, %v2322
    %v2380 = vpack.c.bf16 %v2325, %v2324
    %v2381 = vpack.c.bf16 %v2327, %v2326
    %v2382 = vpack.c.bf16 %v2329, %v2328
    %v2383 = vpack.c.bf16 %v2331, %v2330
    %v2384 = vpack.c.bf16 %v2333, %v2332
    %v2385 = vpack.c.bf16 %v2335, %v2334
    %v2386 = vpack.c.bf16 %v2337, %v2336
    %v2387 = vpack.c.bf16 %v2339, %v2338
    %v2388 = vpack.c.bf16 %v2341, %v2340
    %v2389 = vpack.c.bf16 %v2343, %v2342
    %v2390 = vpack.c.bf16 %v2345, %v2344
    %v2391 = vpack.c.bf16 %v2347, %v2346
    %v2392 = vpack.c.bf16 %v2349, %v2348
    %v2393 = vpack.c.bf16 %v2351, %v2350
    %v2394 = vpack.c.bf16 %v2353, %v2352
    %v2395 = vpack.c.bf16 %v2355, %v2354
    %v2396 = vpack.c.bf16 %v2357, %v2356
    %v2397 = vpack.c.bf16 %v2359, %v2358
    %v2398 = vpack.c.bf16 %v2361, %v2360
    %v2399 = vpack.c.bf16 %v2363, %v2362
    %v2400 = vpack.c.bf16 %v2365, %v2364
    %v2401 = vpack.c.bf16 %v2367, %v2366
    %v2402 = vpack.c.bf16 %v2369, %v2368
    %v2403 = vpack.c.bf16 %v2371, %v2370
    %v2404 = vpack.c.bf16 %v165, %v137
    %v2405 = vpack.c.bf16 %v221, %v193
    %v2406 = vpack.c.bf16 %v277, %v249
    %v2407 = vpack.c.bf16 %v333, %v305
    %2412 = vrot.lane.b32.xlu0 %v2404, 64
    %v2413 = vpop.permute.xlu0 %2412
    %2414 = vrot.lane.b32.xlu0 %v2405, 64
    %v2415 = vpop.permute.xlu0 %2414
    %2416 = vrot.lane.b32.xlu0 %v2406, 64
    %v2417 = vpop.permute.xlu0 %2416
    %2418 = vrot.lane.b32.xlu0 %v2407, 64
    %v2419 = vpop.permute.xlu0 %2418
    %v2425 = vsel %vm1667, %v2372, 0
    %v2428 = vsel %vm1667, %v2373, 0
    %v2431 = vsel %vm1667, %v2374, 0
    %v2434 = vsel %vm1667, %v2375, 0
    %v2437 = vsel %vm1667, %v2376, 0
    %v2440 = vsel %vm1667, %v2377, 0
    %v2443 = vsel %vm1667, %v2378, 0
    %v2446 = vsel %vm1667, %v2379, 0
    %v2449 = vsel %vm1667, %v2380, 0
    %v2452 = vsel %vm1667, %v2381, 0
    %v2455 = vsel %vm1667, %v2382, 0
    %v2458 = vsel %vm1667, %v2383, 0
    %v2461 = vsel %vm1667, %v2384, 0
    %v2464 = vsel %vm1667, %v2385, 0
    %v2467 = vsel %vm1667, %v2386, 0
    %v2470 = vsel %vm1667, %v2387, 0
    %v2473 = vsel %vm1667, %v2388, 0
    %v2476 = vsel %vm1667, %v2389, 0
    %v2479 = vsel %vm1667, %v2390, 0
    %v2482 = vsel %vm1667, %v2391, 0
    %v2485 = vsel %vm1667, %v2392, 0
    %v2488 = vsel %vm1667, %v2393, 0
    %v2491 = vsel %vm1667, %v2394, 0
    %v2494 = vsel %vm1667, %v2395, 0
    %v2497 = vsel %vm1667, %v2396, 0
    %v2500 = vsel %vm1667, %v2397, 0
    %v2503 = vsel %vm1667, %v2398, 0
    %v2506 = vsel %vm1667, %v2399, 0
    %v2509 = vsel %vm1667, %v2400, 0
    %v2512 = vsel %vm1667, %v2401, 0
    %v2515 = vsel %vm1667, %v2402, 0
    %v2518 = vsel %vm1667, %v2403, 0
    %2520 = vmatpush.bf16.msra.mxu0 0
    %2521 = vmatpush.bf16.msra.mxu0 0
    %2522 = vmatpush.bf16.msra.mxu0 0
    %2523 = vmatpush.bf16.msra.mxu0 0
    %2524 = vmatpush.bf16.msra.mxu0 %v2419
    %2525 = vmatpush.bf16.msra.mxu0 %v2417
    %2526 = vmatpush.bf16.msra.mxu0 %v2415
    %2527 = vmatpush.bf16.msra.mxu0 %v2413
    %2528 = vmatmul.bf16.gmra.mxu0 %v2425
    %v2529 = vpop.f32.mrf.mxu0
    %v2530 = vadd.f32 0.0, %v2529
    %v2531 = vpop.f32.mrf.mxu0
    %v2532 = vadd.f32 0.0, %v2531
    %2533 = vmatmul.bf16.gmra.mxu0 %v2428
    %v2534 = vpop.f32.mrf.mxu0
    %v2535 = vadd.f32 0.0, %v2534
    %v2536 = vpop.f32.mrf.mxu0
    %v2537 = vadd.f32 0.0, %v2536
    %2538 = vmatmul.bf16.gmra.mxu0 %v2431
    %v2539 = vpop.f32.mrf.mxu0
    %v2540 = vadd.f32 0.0, %v2539
    %v2541 = vpop.f32.mrf.mxu0
    %v2542 = vadd.f32 0.0, %v2541
    %2543 = vmatmul.bf16.gmra.mxu0 %v2434
    %v2544 = vpop.f32.mrf.mxu0
    %v2545 = vadd.f32 0.0, %v2544
    %v2546 = vpop.f32.mrf.mxu0
    %v2547 = vadd.f32 0.0, %v2546
    %2548 = vmatmul.bf16.gmra.mxu0 %v2437
    %v2549 = vpop.f32.mrf.mxu0
    %v2550 = vadd.f32 0.0, %v2549
    %v2551 = vpop.f32.mrf.mxu0
    %v2552 = vadd.f32 0.0, %v2551
    %2553 = vmatmul.bf16.gmra.mxu0 %v2440
    %v2554 = vpop.f32.mrf.mxu0
    %v2555 = vadd.f32 0.0, %v2554
    %v2556 = vpop.f32.mrf.mxu0
    %v2557 = vadd.f32 0.0, %v2556
    %2558 = vmatmul.bf16.gmra.mxu0 %v2443
    %v2559 = vpop.f32.mrf.mxu0
    %v2560 = vadd.f32 0.0, %v2559
    %v2561 = vpop.f32.mrf.mxu0
    %v2562 = vadd.f32 0.0, %v2561
    %2563 = vmatmul.bf16.gmra.mxu0 %v2446
    %v2564 = vpop.f32.mrf.mxu0
    %v2565 = vadd.f32 0.0, %v2564
    %v2566 = vpop.f32.mrf.mxu0
    %v2567 = vadd.f32 0.0, %v2566
    %2568 = vmatmul.bf16.gmra.mxu0 %v2449
    %v2569 = vpop.f32.mrf.mxu0
    %v2570 = vadd.f32 0.0, %v2569
    %v2571 = vpop.f32.mrf.mxu0
    %v2572 = vadd.f32 0.0, %v2571
    %2573 = vmatmul.bf16.gmra.mxu0 %v2452
    %v2574 = vpop.f32.mrf.mxu0
    %v2575 = vadd.f32 0.0, %v2574
    %v2576 = vpop.f32.mrf.mxu0
    %v2577 = vadd.f32 0.0, %v2576
    %2578 = vmatmul.bf16.gmra.mxu0 %v2455
    %v2579 = vpop.f32.mrf.mxu0
    %v2580 = vadd.f32 0.0, %v2579
    %v2581 = vpop.f32.mrf.mxu0
    %v2582 = vadd.f32 0.0, %v2581
    %2583 = vmatmul.bf16.gmra.mxu0 %v2458
    %v2584 = vpop.f32.mrf.mxu0
    %v2585 = vadd.f32 0.0, %v2584
    %v2586 = vpop.f32.mrf.mxu0
    %v2587 = vadd.f32 0.0, %v2586
    %2588 = vmatmul.bf16.gmra.mxu0 %v2461
    %v2589 = vpop.f32.mrf.mxu0
    %v2590 = vadd.f32 0.0, %v2589
    %v2591 = vpop.f32.mrf.mxu0
    %v2592 = vadd.f32 0.0, %v2591
    %2593 = vmatmul.bf16.gmra.mxu0 %v2464
    %v2594 = vpop.f32.mrf.mxu0
    %v2595 = vadd.f32 0.0, %v2594
    %v2596 = vpop.f32.mrf.mxu0
    %v2597 = vadd.f32 0.0, %v2596
    %2598 = vmatmul.bf16.gmra.mxu0 %v2467
    %v2599 = vpop.f32.mrf.mxu0
    %v2600 = vadd.f32 0.0, %v2599
    %v2601 = vpop.f32.mrf.mxu0
    %v2602 = vadd.f32 0.0, %v2601
    %2603 = vmatmul.bf16.gmra.mxu0 %v2470
    %v2604 = vpop.f32.mrf.mxu0
    %v2605 = vadd.f32 0.0, %v2604
    %v2606 = vpop.f32.mrf.mxu0
    %v2607 = vadd.f32 0.0, %v2606
    %2608 = vmatmul.bf16.gmra.mxu0 %v2473
    %v2609 = vpop.f32.mrf.mxu0
    %v2610 = vadd.f32 0.0, %v2609
    %v2611 = vpop.f32.mrf.mxu0
    %v2612 = vadd.f32 0.0, %v2611
    %2613 = vmatmul.bf16.gmra.mxu0 %v2476
    %v2614 = vpop.f32.mrf.mxu0
    %v2615 = vadd.f32 0.0, %v2614
    %v2616 = vpop.f32.mrf.mxu0
    %v2617 = vadd.f32 0.0, %v2616
    %2618 = vmatmul.bf16.gmra.mxu0 %v2479
    %v2619 = vpop.f32.mrf.mxu0
    %v2620 = vadd.f32 0.0, %v2619
    %v2621 = vpop.f32.mrf.mxu0
    %v2622 = vadd.f32 0.0, %v2621
    %2623 = vmatmul.bf16.gmra.mxu0 %v2482
    %v2624 = vpop.f32.mrf.mxu0
    %v2625 = vadd.f32 0.0, %v2624
    %v2626 = vpop.f32.mrf.mxu0
    %v2627 = vadd.f32 0.0, %v2626
    %2628 = vmatmul.bf16.gmra.mxu0 %v2485
    %v2629 = vpop.f32.mrf.mxu0
    %v2630 = vadd.f32 0.0, %v2629
    %v2631 = vpop.f32.mrf.mxu0
    %v2632 = vadd.f32 0.0, %v2631
    %2633 = vmatmul.bf16.gmra.mxu0 %v2488
    %v2634 = vpop.f32.mrf.mxu0
    %v2635 = vadd.f32 0.0, %v2634
    %v2636 = vpop.f32.mrf.mxu0
    %v2637 = vadd.f32 0.0, %v2636
    %2638 = vmatmul.bf16.gmra.mxu0 %v2491
    %v2639 = vpop.f32.mrf.mxu0
    %v2640 = vadd.f32 0.0, %v2639
    %v2641 = vpop.f32.mrf.mxu0
    %v2642 = vadd.f32 0.0, %v2641
    %2643 = vmatmul.bf16.gmra.mxu0 %v2494
    %v2644 = vpop.f32.mrf.mxu0
    %v2645 = vadd.f32 0.0, %v2644
    %v2646 = vpop.f32.mrf.mxu0
    %v2647 = vadd.f32 0.0, %v2646
    %2648 = vmatmul.bf16.gmra.mxu0 %v2497
    %v2649 = vpop.f32.mrf.mxu0
    %v2650 = vadd.f32 0.0, %v2649
    %v2651 = vpop.f32.mrf.mxu0
    %v2652 = vadd.f32 0.0, %v2651
    %2653 = vmatmul.bf16.gmra.mxu0 %v2500
    %v2654 = vpop.f32.mrf.mxu0
    %v2655 = vadd.f32 0.0, %v2654
    %v2656 = vpop.f32.mrf.mxu0
    %v2657 = vadd.f32 0.0, %v2656
    %2658 = vmatmul.bf16.gmra.mxu0 %v2503
    %v2659 = vpop.f32.mrf.mxu0
    %v2660 = vadd.f32 0.0, %v2659
    %v2661 = vpop.f32.mrf.mxu0
    %v2662 = vadd.f32 0.0, %v2661
    %2663 = vmatmul.bf16.gmra.mxu0 %v2506
    %v2664 = vpop.f32.mrf.mxu0
    %v2665 = vadd.f32 0.0, %v2664
    %v2666 = vpop.f32.mrf.mxu0
    %v2667 = vadd.f32 0.0, %v2666
    %2668 = vmatmul.bf16.gmra.mxu0 %v2509
    %v2669 = vpop.f32.mrf.mxu0
    %v2670 = vadd.f32 0.0, %v2669
    %v2671 = vpop.f32.mrf.mxu0
    %v2672 = vadd.f32 0.0, %v2671
    %2673 = vmatmul.bf16.gmra.mxu0 %v2512
    %v2674 = vpop.f32.mrf.mxu0
    %v2675 = vadd.f32 0.0, %v2674
    %v2676 = vpop.f32.mrf.mxu0
    %v2677 = vadd.f32 0.0, %v2676
    %2678 = vmatmul.bf16.gmra.mxu0 %v2515
    %v2679 = vpop.f32.mrf.mxu0
    %v2680 = vadd.f32 0.0, %v2679
    %v2681 = vpop.f32.mrf.mxu0
    %v2682 = vadd.f32 0.0, %v2681
    %2683 = vmatmul.bf16.gmra.mxu0 %v2518
    %v2684 = vpop.f32.mrf.mxu0
    %v2685 = vadd.f32 0.0, %v2684
    %v2686 = vpop.f32.mrf.mxu0
    %v2687 = vadd.f32 0.0, %v2686
    %2688 = vdwg.mxu0
    %v2689 = vld [vmem:[%s7] sm:$0xff]
    %v2690 = vmul.f32 %v2530, %v2689
    %v2691 = vmul.f32 %v2532, %v2689
    %v2692 = vmul.f32 %v2535, %v2689
    %v2693 = vmul.f32 %v2537, %v2689
    %v2694 = vmul.f32 %v2540, %v2689
    %v2695 = vmul.f32 %v2542, %v2689
    %v2696 = vmul.f32 %v2545, %v2689
    %v2697 = vmul.f32 %v2547, %v2689
    %v2698 = vmul.f32 %v2550, %v2689
    %v2699 = vmul.f32 %v2552, %v2689
    %v2700 = vmul.f32 %v2555, %v2689
    %v2701 = vmul.f32 %v2557, %v2689
    %v2702 = vmul.f32 %v2560, %v2689
    %v2703 = vmul.f32 %v2562, %v2689
    %v2704 = vmul.f32 %v2565, %v2689
    %v2705 = vmul.f32 %v2567, %v2689
    %v2706 = vmul.f32 %v2570, %v2689
    %v2707 = vmul.f32 %v2572, %v2689
    %v2708 = vmul.f32 %v2575, %v2689
    %v2709 = vmul.f32 %v2577, %v2689
    %v2710 = vmul.f32 %v2580, %v2689
    %v2711 = vmul.f32 %v2582, %v2689
    %v2712 = vmul.f32 %v2585, %v2689
    %v2713 = vmul.f32 %v2587, %v2689
    %v2714 = vmul.f32 %v2590, %v2689
    %v2715 = vmul.f32 %v2592, %v2689
    %v2716 = vmul.f32 %v2595, %v2689
    %v2717 = vmul.f32 %v2597, %v2689
    %v2718 = vmul.f32 %v2600, %v2689
    %v2719 = vmul.f32 %v2602, %v2689
    %v2720 = vmul.f32 %v2605, %v2689
    %v2721 = vmul.f32 %v2607, %v2689
    %v2722 = vmul.f32 %v2610, %v2689
    %v2723 = vmul.f32 %v2612, %v2689
    %v2724 = vmul.f32 %v2615, %v2689
    %v2725 = vmul.f32 %v2617, %v2689
    %v2726 = vmul.f32 %v2620, %v2689
    %v2727 = vmul.f32 %v2622, %v2689
    %v2728 = vmul.f32 %v2625, %v2689
    %v2729 = vmul.f32 %v2627, %v2689
    %v2730 = vmul.f32 %v2630, %v2689
    %v2731 = vmul.f32 %v2632, %v2689
    %v2732 = vmul.f32 %v2635, %v2689
    %v2733 = vmul.f32 %v2637, %v2689
    %v2734 = vmul.f32 %v2640, %v2689
    %v2735 = vmul.f32 %v2642, %v2689
    %v2736 = vmul.f32 %v2645, %v2689
    %v2737 = vmul.f32 %v2647, %v2689
    %v2738 = vmul.f32 %v2650, %v2689
    %v2739 = vmul.f32 %v2652, %v2689
    %v2740 = vmul.f32 %v2655, %v2689
    %v2741 = vmul.f32 %v2657, %v2689
    %v2742 = vmul.f32 %v2660, %v2689
    %v2743 = vmul.f32 %v2662, %v2689
    %v2744 = vmul.f32 %v2665, %v2689
    %v2745 = vmul.f32 %v2667, %v2689
    %v2746 = vmul.f32 %v2670, %v2689
    %v2747 = vmul.f32 %v2672, %v2689
    %v2748 = vmul.f32 %v2675, %v2689
    %v2749 = vmul.f32 %v2677, %v2689
    %v2750 = vmul.f32 %v2680, %v2689
    %v2751 = vmul.f32 %v2682, %v2689
    %v2752 = vmul.f32 %v2685, %v2689
    %v2753 = vmul.f32 %v2687, %v2689
    %v2754 = vsel %vm123, %v2690, 0.0
    %v2755 = vrot.slane %v2754, 4
    %v2756 = vadd.f32 %v2754, %v2755
    %v2757 = vrot.slane %v2756, 2
    %v2758 = vadd.f32 %v2756, %v2757
    %v2759 = vrot.slane %v2758, 1
    %v2760 = vadd.f32 %v2758, %v2759
    %v2761 = vsel %vm123, %v2691, 0.0
    %v2762 = vrot.slane %v2761, 4
    %v2763 = vadd.f32 %v2761, %v2762
    %v2764 = vrot.slane %v2763, 2
    %v2765 = vadd.f32 %v2763, %v2764
    %v2766 = vrot.slane %v2765, 1
    %v2767 = vadd.f32 %v2765, %v2766
    %v2768 = vsel %vm123, %v2692, 0.0
    %v2769 = vrot.slane %v2768, 4
    %v2770 = vadd.f32 %v2768, %v2769
    %v2771 = vrot.slane %v2770, 2
    %v2772 = vadd.f32 %v2770, %v2771
    %v2773 = vrot.slane %v2772, 1
    %v2774 = vadd.f32 %v2772, %v2773
    %v2775 = vsel %vm123, %v2693, 0.0
    %v2776 = vrot.slane %v2775, 4
    %v2777 = vadd.f32 %v2775, %v2776
    %v2778 = vrot.slane %v2777, 2
    %v2779 = vadd.f32 %v2777, %v2778
    %v2780 = vrot.slane %v2779, 1
    %v2781 = vadd.f32 %v2779, %v2780
    %v2782 = vsel %vm123, %v2694, 0.0
    %v2783 = vrot.slane %v2782, 4
    %v2784 = vadd.f32 %v2782, %v2783
    %v2785 = vrot.slane %v2784, 2
    %v2786 = vadd.f32 %v2784, %v2785
    %v2787 = vrot.slane %v2786, 1
    %v2788 = vadd.f32 %v2786, %v2787
    %v2789 = vsel %vm123, %v2695, 0.0
    %v2790 = vrot.slane %v2789, 4
    %v2791 = vadd.f32 %v2789, %v2790
    %v2792 = vrot.slane %v2791, 2
    %v2793 = vadd.f32 %v2791, %v2792
    %v2794 = vrot.slane %v2793, 1
    %v2795 = vadd.f32 %v2793, %v2794
    %v2796 = vsel %vm123, %v2696, 0.0
    %v2797 = vrot.slane %v2796, 4
    %v2798 = vadd.f32 %v2796, %v2797
    %v2799 = vrot.slane %v2798, 2
    %v2800 = vadd.f32 %v2798, %v2799
    %v2801 = vrot.slane %v2800, 1
    %v2802 = vadd.f32 %v2800, %v2801
    %v2803 = vsel %vm123, %v2697, 0.0
    %v2804 = vrot.slane %v2803, 4
    %v2805 = vadd.f32 %v2803, %v2804
    %v2806 = vrot.slane %v2805, 2
    %v2807 = vadd.f32 %v2805, %v2806
    %v2808 = vrot.slane %v2807, 1
    %v2809 = vadd.f32 %v2807, %v2808
    %v2810 = vsel %vm123, %v2698, 0.0
    %v2811 = vrot.slane %v2810, 4
    %v2812 = vadd.f32 %v2810, %v2811
    %v2813 = vrot.slane %v2812, 2
    %v2814 = vadd.f32 %v2812, %v2813
    %v2815 = vrot.slane %v2814, 1
    %v2816 = vadd.f32 %v2814, %v2815
    %v2817 = vsel %vm123, %v2699, 0.0
    %v2818 = vrot.slane %v2817, 4
    %v2819 = vadd.f32 %v2817, %v2818
    %v2820 = vrot.slane %v2819, 2
    %v2821 = vadd.f32 %v2819, %v2820
    %v2822 = vrot.slane %v2821, 1
    %v2823 = vadd.f32 %v2821, %v2822
    %v2824 = vsel %vm123, %v2700, 0.0
    %v2825 = vrot.slane %v2824, 4
    %v2826 = vadd.f32 %v2824, %v2825
    %v2827 = vrot.slane %v2826, 2
    %v2828 = vadd.f32 %v2826, %v2827
    %v2829 = vrot.slane %v2828, 1
    %v2830 = vadd.f32 %v2828, %v2829
    %v2831 = vsel %vm123, %v2701, 0.0
    %v2832 = vrot.slane %v2831, 4
    %v2833 = vadd.f32 %v2831, %v2832
    %v2834 = vrot.slane %v2833, 2
    %v2835 = vadd.f32 %v2833, %v2834
    %v2836 = vrot.slane %v2835, 1
    %v2837 = vadd.f32 %v2835, %v2836
    %v2838 = vsel %vm123, %v2702, 0.0
    %v2839 = vrot.slane %v2838, 4
    %v2840 = vadd.f32 %v2838, %v2839
    %v2841 = vrot.slane %v2840, 2
    %v2842 = vadd.f32 %v2840, %v2841
    %v2843 = vrot.slane %v2842, 1
    %v2844 = vadd.f32 %v2842, %v2843
    %v2845 = vsel %vm123, %v2703, 0.0
    %v2846 = vrot.slane %v2845, 4
    %v2847 = vadd.f32 %v2845, %v2846
    %v2848 = vrot.slane %v2847, 2
    %v2849 = vadd.f32 %v2847, %v2848
    %v2850 = vrot.slane %v2849, 1
    %v2851 = vadd.f32 %v2849, %v2850
    %v2852 = vsel %vm123, %v2704, 0.0
    %v2853 = vrot.slane %v2852, 4
    %v2854 = vadd.f32 %v2852, %v2853
    %v2855 = vrot.slane %v2854, 2
    %v2856 = vadd.f32 %v2854, %v2855
    %v2857 = vrot.slane %v2856, 1
    %v2858 = vadd.f32 %v2856, %v2857
    %v2859 = vsel %vm123, %v2705, 0.0
    %v2860 = vrot.slane %v2859, 4
    %v2861 = vadd.f32 %v2859, %v2860
    %v2862 = vrot.slane %v2861, 2
    %v2863 = vadd.f32 %v2861, %v2862
    %v2864 = vrot.slane %v2863, 1
    %v2865 = vadd.f32 %v2863, %v2864
    %v2866 = vsel %vm123, %v2706, 0.0
    %v2867 = vrot.slane %v2866, 4
    %v2868 = vadd.f32 %v2866, %v2867
    %v2869 = vrot.slane %v2868, 2
    %v2870 = vadd.f32 %v2868, %v2869
    %v2871 = vrot.slane %v2870, 1
    %v2872 = vadd.f32 %v2870, %v2871
    %v2873 = vsel %vm123, %v2707, 0.0
    %v2874 = vrot.slane %v2873, 4
    %v2875 = vadd.f32 %v2873, %v2874
    %v2876 = vrot.slane %v2875, 2
    %v2877 = vadd.f32 %v2875, %v2876
    %v2878 = vrot.slane %v2877, 1
    %v2879 = vadd.f32 %v2877, %v2878
    %v2880 = vsel %vm123, %v2708, 0.0
    %v2881 = vrot.slane %v2880, 4
    %v2882 = vadd.f32 %v2880, %v2881
    %v2883 = vrot.slane %v2882, 2
    %v2884 = vadd.f32 %v2882, %v2883
    %v2885 = vrot.slane %v2884, 1
    %v2886 = vadd.f32 %v2884, %v2885
    %v2887 = vsel %vm123, %v2709, 0.0
    %v2888 = vrot.slane %v2887, 4
    %v2889 = vadd.f32 %v2887, %v2888
    %v2890 = vrot.slane %v2889, 2
    %v2891 = vadd.f32 %v2889, %v2890
    %v2892 = vrot.slane %v2891, 1
    %v2893 = vadd.f32 %v2891, %v2892
    %v2894 = vsel %vm123, %v2710, 0.0
    %v2895 = vrot.slane %v2894, 4
    %v2896 = vadd.f32 %v2894, %v2895
    %v2897 = vrot.slane %v2896, 2
    %v2898 = vadd.f32 %v2896, %v2897
    %v2899 = vrot.slane %v2898, 1
    %v2900 = vadd.f32 %v2898, %v2899
    %v2901 = vsel %vm123, %v2711, 0.0
    %v2902 = vrot.slane %v2901, 4
    %v2903 = vadd.f32 %v2901, %v2902
    %v2904 = vrot.slane %v2903, 2
    %v2905 = vadd.f32 %v2903, %v2904
    %v2906 = vrot.slane %v2905, 1
    %v2907 = vadd.f32 %v2905, %v2906
    %v2908 = vsel %vm123, %v2712, 0.0
    %v2909 = vrot.slane %v2908, 4
    %v2910 = vadd.f32 %v2908, %v2909
    %v2911 = vrot.slane %v2910, 2
    %v2912 = vadd.f32 %v2910, %v2911
    %v2913 = vrot.slane %v2912, 1
    %v2914 = vadd.f32 %v2912, %v2913
    %v2915 = vsel %vm123, %v2713, 0.0
    %v2916 = vrot.slane %v2915, 4
    %v2917 = vadd.f32 %v2915, %v2916
    %v2918 = vrot.slane %v2917, 2
    %v2919 = vadd.f32 %v2917, %v2918
    %v2920 = vrot.slane %v2919, 1
    %v2921 = vadd.f32 %v2919, %v2920
    %v2922 = vsel %vm123, %v2714, 0.0
    %v2923 = vrot.slane %v2922, 4
    %v2924 = vadd.f32 %v2922, %v2923
    %v2925 = vrot.slane %v2924, 2
    %v2926 = vadd.f32 %v2924, %v2925
    %v2927 = vrot.slane %v2926, 1
    %v2928 = vadd.f32 %v2926, %v2927
    %v2929 = vsel %vm123, %v2715, 0.0
    %v2930 = vrot.slane %v2929, 4
    %v2931 = vadd.f32 %v2929, %v2930
    %v2932 = vrot.slane %v2931, 2
    %v2933 = vadd.f32 %v2931, %v2932
    %v2934 = vrot.slane %v2933, 1
    %v2935 = vadd.f32 %v2933, %v2934
    %v2936 = vsel %vm123, %v2716, 0.0
    %v2937 = vrot.slane %v2936, 4
    %v2938 = vadd.f32 %v2936, %v2937
    %v2939 = vrot.slane %v2938, 2
    %v2940 = vadd.f32 %v2938, %v2939
    %v2941 = vrot.slane %v2940, 1
    %v2942 = vadd.f32 %v2940, %v2941
    %v2943 = vsel %vm123, %v2717, 0.0
    %v2944 = vrot.slane %v2943, 4
    %v2945 = vadd.f32 %v2943, %v2944
    %v2946 = vrot.slane %v2945, 2
    %v2947 = vadd.f32 %v2945, %v2946
    %v2948 = vrot.slane %v2947, 1
    %v2949 = vadd.f32 %v2947, %v2948
    %v2950 = vsel %vm123, %v2718, 0.0
    %v2951 = vrot.slane %v2950, 4
    %v2952 = vadd.f32 %v2950, %v2951
    %v2953 = vrot.slane %v2952, 2
    %v2954 = vadd.f32 %v2952, %v2953
    %v2955 = vrot.slane %v2954, 1
    %v2956 = vadd.f32 %v2954, %v2955
    %v2957 = vsel %vm123, %v2719, 0.0
    %v2958 = vrot.slane %v2957, 4
    %v2959 = vadd.f32 %v2957, %v2958
    %v2960 = vrot.slane %v2959, 2
    %v2961 = vadd.f32 %v2959, %v2960
    %v2962 = vrot.slane %v2961, 1
    %v2963 = vadd.f32 %v2961, %v2962
    %v2964 = vsel %vm123, %v2720, 0.0
    %v2965 = vrot.slane %v2964, 4
    %v2966 = vadd.f32 %v2964, %v2965
    %v2967 = vrot.slane %v2966, 2
    %v2968 = vadd.f32 %v2966, %v2967
    %v2969 = vrot.slane %v2968, 1
    %v2970 = vadd.f32 %v2968, %v2969
    %v2971 = vsel %vm123, %v2721, 0.0
    %v2972 = vrot.slane %v2971, 4
    %v2973 = vadd.f32 %v2971, %v2972
    %v2974 = vrot.slane %v2973, 2
    %v2975 = vadd.f32 %v2973, %v2974
    %v2976 = vrot.slane %v2975, 1
    %v2977 = vadd.f32 %v2975, %v2976
    %v2978 = vsel %vm123, %v2722, 0.0
    %v2979 = vrot.slane %v2978, 4
    %v2980 = vadd.f32 %v2978, %v2979
    %v2981 = vrot.slane %v2980, 2
    %v2982 = vadd.f32 %v2980, %v2981
    %v2983 = vrot.slane %v2982, 1
    %v2984 = vadd.f32 %v2982, %v2983
    %v2985 = vsel %vm123, %v2723, 0.0
    %v2986 = vrot.slane %v2985, 4
    %v2987 = vadd.f32 %v2985, %v2986
    %v2988 = vrot.slane %v2987, 2
    %v2989 = vadd.f32 %v2987, %v2988
    %v2990 = vrot.slane %v2989, 1
    %v2991 = vadd.f32 %v2989, %v2990
    %v2992 = vsel %vm123, %v2724, 0.0
    %v2993 = vrot.slane %v2992, 4
    %v2994 = vadd.f32 %v2992, %v2993
    %v2995 = vrot.slane %v2994, 2
    %v2996 = vadd.f32 %v2994, %v2995
    %v2997 = vrot.slane %v2996, 1
    %v2998 = vadd.f32 %v2996, %v2997
    %v2999 = vsel %vm123, %v2725, 0.0
    %v3000 = vrot.slane %v2999, 4
    %v3001 = vadd.f32 %v2999, %v3000
    %v3002 = vrot.slane %v3001, 2
    %v3003 = vadd.f32 %v3001, %v3002
    %v3004 = vrot.slane %v3003, 1
    %v3005 = vadd.f32 %v3003, %v3004
    %v3006 = vsel %vm123, %v2726, 0.0
    %v3007 = vrot.slane %v3006, 4
    %v3008 = vadd.f32 %v3006, %v3007
    %v3009 = vrot.slane %v3008, 2
    %v3010 = vadd.f32 %v3008, %v3009
    %v3011 = vrot.slane %v3010, 1
    %v3012 = vadd.f32 %v3010, %v3011
    %v3013 = vsel %vm123, %v2727, 0.0
    %v3014 = vrot.slane %v3013, 4
    %v3015 = vadd.f32 %v3013, %v3014
    %v3016 = vrot.slane %v3015, 2
    %v3017 = vadd.f32 %v3015, %v3016
    %v3018 = vrot.slane %v3017, 1
    %v3019 = vadd.f32 %v3017, %v3018
    %v3020 = vsel %vm123, %v2728, 0.0
    %v3021 = vrot.slane %v3020, 4
    %v3022 = vadd.f32 %v3020, %v3021
    %v3023 = vrot.slane %v3022, 2
    %v3024 = vadd.f32 %v3022, %v3023
    %v3025 = vrot.slane %v3024, 1
    %v3026 = vadd.f32 %v3024, %v3025
    %v3027 = vsel %vm123, %v2729, 0.0
    %v3028 = vrot.slane %v3027, 4
    %v3029 = vadd.f32 %v3027, %v3028
    %v3030 = vrot.slane %v3029, 2
    %v3031 = vadd.f32 %v3029, %v3030
    %v3032 = vrot.slane %v3031, 1
    %v3033 = vadd.f32 %v3031, %v3032
    %v3034 = vsel %vm123, %v2730, 0.0
    %v3035 = vrot.slane %v3034, 4
    %v3036 = vadd.f32 %v3034, %v3035
    %v3037 = vrot.slane %v3036, 2
    %v3038 = vadd.f32 %v3036, %v3037
    %v3039 = vrot.slane %v3038, 1
    %v3040 = vadd.f32 %v3038, %v3039
    %v3041 = vsel %vm123, %v2731, 0.0
    %v3042 = vrot.slane %v3041, 4
    %v3043 = vadd.f32 %v3041, %v3042
    %v3044 = vrot.slane %v3043, 2
    %v3045 = vadd.f32 %v3043, %v3044
    %v3046 = vrot.slane %v3045, 1
    %v3047 = vadd.f32 %v3045, %v3046
    %v3048 = vsel %vm123, %v2732, 0.0
    %v3049 = vrot.slane %v3048, 4
    %v3050 = vadd.f32 %v3048, %v3049
    %v3051 = vrot.slane %v3050, 2
    %v3052 = vadd.f32 %v3050, %v3051
    %v3053 = vrot.slane %v3052, 1
    %v3054 = vadd.f32 %v3052, %v3053
    %v3055 = vsel %vm123, %v2733, 0.0
    %v3056 = vrot.slane %v3055, 4
    %v3057 = vadd.f32 %v3055, %v3056
    %v3058 = vrot.slane %v3057, 2
    %v3059 = vadd.f32 %v3057, %v3058
    %v3060 = vrot.slane %v3059, 1
    %v3061 = vadd.f32 %v3059, %v3060
    %v3062 = vsel %vm123, %v2734, 0.0
    %v3063 = vrot.slane %v3062, 4
    %v3064 = vadd.f32 %v3062, %v3063
    %v3065 = vrot.slane %v3064, 2
    %v3066 = vadd.f32 %v3064, %v3065
    %v3067 = vrot.slane %v3066, 1
    %v3068 = vadd.f32 %v3066, %v3067
    %v3069 = vsel %vm123, %v2735, 0.0
    %v3070 = vrot.slane %v3069, 4
    %v3071 = vadd.f32 %v3069, %v3070
    %v3072 = vrot.slane %v3071, 2
    %v3073 = vadd.f32 %v3071, %v3072
    %v3074 = vrot.slane %v3073, 1
    %v3075 = vadd.f32 %v3073, %v3074
    %v3076 = vsel %vm123, %v2736, 0.0
    %v3077 = vrot.slane %v3076, 4
    %v3078 = vadd.f32 %v3076, %v3077
    %v3079 = vrot.slane %v3078, 2
    %v3080 = vadd.f32 %v3078, %v3079
    %v3081 = vrot.slane %v3080, 1
    %v3082 = vadd.f32 %v3080, %v3081
    %v3083 = vsel %vm123, %v2737, 0.0
    %v3084 = vrot.slane %v3083, 4
    %v3085 = vadd.f32 %v3083, %v3084
    %v3086 = vrot.slane %v3085, 2
    %v3087 = vadd.f32 %v3085, %v3086
    %v3088 = vrot.slane %v3087, 1
    %v3089 = vadd.f32 %v3087, %v3088
    %v3090 = vsel %vm123, %v2738, 0.0
    %v3091 = vrot.slane %v3090, 4
    %v3092 = vadd.f32 %v3090, %v3091
    %v3093 = vrot.slane %v3092, 2
    %v3094 = vadd.f32 %v3092, %v3093
    %v3095 = vrot.slane %v3094, 1
    %v3096 = vadd.f32 %v3094, %v3095
    %v3097 = vsel %vm123, %v2739, 0.0
    %v3098 = vrot.slane %v3097, 4
    %v3099 = vadd.f32 %v3097, %v3098
    %v3100 = vrot.slane %v3099, 2
    %v3101 = vadd.f32 %v3099, %v3100
    %v3102 = vrot.slane %v3101, 1
    %v3103 = vadd.f32 %v3101, %v3102
    %v3104 = vsel %vm123, %v2740, 0.0
    %v3105 = vrot.slane %v3104, 4
    %v3106 = vadd.f32 %v3104, %v3105
    %v3107 = vrot.slane %v3106, 2
    %v3108 = vadd.f32 %v3106, %v3107
    %v3109 = vrot.slane %v3108, 1
    %v3110 = vadd.f32 %v3108, %v3109
    %v3111 = vsel %vm123, %v2741, 0.0
    %v3112 = vrot.slane %v3111, 4
    %v3113 = vadd.f32 %v3111, %v3112
    %v3114 = vrot.slane %v3113, 2
    %v3115 = vadd.f32 %v3113, %v3114
    %v3116 = vrot.slane %v3115, 1
    %v3117 = vadd.f32 %v3115, %v3116
    %v3118 = vsel %vm123, %v2742, 0.0
    %v3119 = vrot.slane %v3118, 4
    %v3120 = vadd.f32 %v3118, %v3119
    %v3121 = vrot.slane %v3120, 2
    %v3122 = vadd.f32 %v3120, %v3121
    %v3123 = vrot.slane %v3122, 1
    %v3124 = vadd.f32 %v3122, %v3123
    %v3125 = vsel %vm123, %v2743, 0.0
    %v3126 = vrot.slane %v3125, 4
    %v3127 = vadd.f32 %v3125, %v3126
    %v3128 = vrot.slane %v3127, 2
    %v3129 = vadd.f32 %v3127, %v3128
    %v3130 = vrot.slane %v3129, 1
    %v3131 = vadd.f32 %v3129, %v3130
    %v3132 = vsel %vm123, %v2744, 0.0
    %v3133 = vrot.slane %v3132, 4
    %v3134 = vadd.f32 %v3132, %v3133
    %v3135 = vrot.slane %v3134, 2
    %v3136 = vadd.f32 %v3134, %v3135
    %v3137 = vrot.slane %v3136, 1
    %v3138 = vadd.f32 %v3136, %v3137
    %v3139 = vsel %vm123, %v2745, 0.0
    %v3140 = vrot.slane %v3139, 4
    %v3141 = vadd.f32 %v3139, %v3140
    %v3142 = vrot.slane %v3141, 2
    %v3143 = vadd.f32 %v3141, %v3142
    %v3144 = vrot.slane %v3143, 1
    %v3145 = vadd.f32 %v3143, %v3144
    %v3146 = vsel %vm123, %v2746, 0.0
    %v3147 = vrot.slane %v3146, 4
    %v3148 = vadd.f32 %v3146, %v3147
    %v3149 = vrot.slane %v3148, 2
    %v3150 = vadd.f32 %v3148, %v3149
    %v3151 = vrot.slane %v3150, 1
    %v3152 = vadd.f32 %v3150, %v3151
    %v3153 = vsel %vm123, %v2747, 0.0
    %v3154 = vrot.slane %v3153, 4
    %v3155 = vadd.f32 %v3153, %v3154
    %v3156 = vrot.slane %v3155, 2
    %v3157 = vadd.f32 %v3155, %v3156
    %v3158 = vrot.slane %v3157, 1
    %v3159 = vadd.f32 %v3157, %v3158
    %v3160 = vsel %vm123, %v2748, 0.0
    %v3161 = vrot.slane %v3160, 4
    %v3162 = vadd.f32 %v3160, %v3161
    %v3163 = vrot.slane %v3162, 2
    %v3164 = vadd.f32 %v3162, %v3163
    %v3165 = vrot.slane %v3164, 1
    %v3166 = vadd.f32 %v3164, %v3165
    %v3167 = vsel %vm123, %v2749, 0.0
    %v3168 = vrot.slane %v3167, 4
    %v3169 = vadd.f32 %v3167, %v3168
    %v3170 = vrot.slane %v3169, 2
    %v3171 = vadd.f32 %v3169, %v3170
    %v3172 = vrot.slane %v3171, 1
    %v3173 = vadd.f32 %v3171, %v3172
    %v3174 = vsel %vm123, %v2750, 0.0
    %v3175 = vrot.slane %v3174, 4
    %v3176 = vadd.f32 %v3174, %v3175
    %v3177 = vrot.slane %v3176, 2
    %v3178 = vadd.f32 %v3176, %v3177
    %v3179 = vrot.slane %v3178, 1
    %v3180 = vadd.f32 %v3178, %v3179
    %v3181 = vsel %vm123, %v2751, 0.0
    %v3182 = vrot.slane %v3181, 4
    %v3183 = vadd.f32 %v3181, %v3182
    %v3184 = vrot.slane %v3183, 2
    %v3185 = vadd.f32 %v3183, %v3184
    %v3186 = vrot.slane %v3185, 1
    %v3187 = vadd.f32 %v3185, %v3186
    %v3188 = vsel %vm123, %v2752, 0.0
    %v3189 = vrot.slane %v3188, 4
    %v3190 = vadd.f32 %v3188, %v3189
    %v3191 = vrot.slane %v3190, 2
    %v3192 = vadd.f32 %v3190, %v3191
    %v3193 = vrot.slane %v3192, 1
    %v3194 = vadd.f32 %v3192, %v3193
    %v3195 = vsel %vm123, %v2753, 0.0
    %v3196 = vrot.slane %v3195, 4
    %v3197 = vadd.f32 %v3195, %v3196
    %v3198 = vrot.slane %v3197, 2
    %v3199 = vadd.f32 %v3197, %v3198
    %v3200 = vrot.slane %v3199, 1
    %v3201 = vadd.f32 %v3199, %v3200
    %v3202 = vpack.c.bf16 %v2760, %v2760
    %v3203 = vpack.c.bf16 %v2767, %v2767
    %v3204 = vpack.c.bf16 %v2774, %v2774
    %v3205 = vpack.c.bf16 %v2781, %v2781
    %v3206 = vpack.c.bf16 %v2788, %v2788
    %v3207 = vpack.c.bf16 %v2795, %v2795
    %v3208 = vpack.c.bf16 %v2802, %v2802
    %v3209 = vpack.c.bf16 %v2809, %v2809
    %v3210 = vpack.c.bf16 %v2816, %v2816
    %v3211 = vpack.c.bf16 %v2823, %v2823
    %v3212 = vpack.c.bf16 %v2830, %v2830
    %v3213 = vpack.c.bf16 %v2837, %v2837
    %v3214 = vpack.c.bf16 %v2844, %v2844
    %v3215 = vpack.c.bf16 %v2851, %v2851
    %v3216 = vpack.c.bf16 %v2858, %v2858
    %v3217 = vpack.c.bf16 %v2865, %v2865
    %v3218 = vpack.c.bf16 %v2872, %v2872
    %v3219 = vpack.c.bf16 %v2879, %v2879
    %v3220 = vpack.c.bf16 %v2886, %v2886
    %v3221 = vpack.c.bf16 %v2893, %v2893
    %v3222 = vpack.c.bf16 %v2900, %v2900
    %v3223 = vpack.c.bf16 %v2907, %v2907
    %v3224 = vpack.c.bf16 %v2914, %v2914
    %v3225 = vpack.c.bf16 %v2921, %v2921
    %v3226 = vpack.c.bf16 %v2928, %v2928
    %v3227 = vpack.c.bf16 %v2935, %v2935
    %v3228 = vpack.c.bf16 %v2942, %v2942
    %v3229 = vpack.c.bf16 %v2949, %v2949
    %v3230 = vpack.c.bf16 %v2956, %v2956
    %v3231 = vpack.c.bf16 %v2963, %v2963
    %v3232 = vpack.c.bf16 %v2970, %v2970
    %v3233 = vpack.c.bf16 %v2977, %v2977
    %v3234 = vpack.c.bf16 %v2984, %v2984
    %v3235 = vpack.c.bf16 %v2991, %v2991
    %v3236 = vpack.c.bf16 %v2998, %v2998
    %v3237 = vpack.c.bf16 %v3005, %v3005
    %v3238 = vpack.c.bf16 %v3012, %v3012
    %v3239 = vpack.c.bf16 %v3019, %v3019
    %v3240 = vpack.c.bf16 %v3026, %v3026
    %v3241 = vpack.c.bf16 %v3033, %v3033
    %v3242 = vpack.c.bf16 %v3040, %v3040
    %v3243 = vpack.c.bf16 %v3047, %v3047
    %v3244 = vpack.c.bf16 %v3054, %v3054
    %v3245 = vpack.c.bf16 %v3061, %v3061
    %v3246 = vpack.c.bf16 %v3068, %v3068
    %v3247 = vpack.c.bf16 %v3075, %v3075
    %v3248 = vpack.c.bf16 %v3082, %v3082
    %v3249 = vpack.c.bf16 %v3089, %v3089
    %v3250 = vpack.c.bf16 %v3096, %v3096
    %v3251 = vpack.c.bf16 %v3103, %v3103
    %v3252 = vpack.c.bf16 %v3110, %v3110
    %v3253 = vpack.c.bf16 %v3117, %v3117
    %v3254 = vpack.c.bf16 %v3124, %v3124
    %v3255 = vpack.c.bf16 %v3131, %v3131
    %v3256 = vpack.c.bf16 %v3138, %v3138
    %v3257 = vpack.c.bf16 %v3145, %v3145
    %v3258 = vpack.c.bf16 %v3152, %v3152
    %v3259 = vpack.c.bf16 %v3159, %v3159
    %v3260 = vpack.c.bf16 %v3166, %v3166
    %v3261 = vpack.c.bf16 %v3173, %v3173
    %v3262 = vpack.c.bf16 %v3180, %v3180
    %v3263 = vpack.c.bf16 %v3187, %v3187
    %v3264 = vpack.c.bf16 %v3194, %v3194
    %v3265 = vpack.c.bf16 %v3201, %v3201
    %v3266 = vld [vmem:[%s3] sm:$0xff]
    %v3267 = vld [vmem:[%s3 + $0x8] sm:$0xff]
    %v3268 = vld [vmem:[%s3 + $0x10] sm:$0xff]
    %v3269 = vld [vmem:[%s3 + $0x18] sm:$0xff]
    %v3334 = vunpack.c.l.b16 %v3202
    %v3335 = vunpack.c.l.b16 %v3203
    %v3336 = vunpack.c.l.b16 %v3204
    %v3337 = vunpack.c.l.b16 %v3205
    %v3338 = vunpack.c.l.b16 %v3206
    %v3339 = vunpack.c.l.b16 %v3207
    %v3340 = vunpack.c.l.b16 %v3208
    %v3341 = vunpack.c.l.b16 %v3209
    %v3342 = vunpack.c.l.b16 %v3210
    %v3343 = vunpack.c.l.b16 %v3211
    %v3344 = vunpack.c.l.b16 %v3212
    %v3345 = vunpack.c.l.b16 %v3213
    %v3346 = vunpack.c.l.b16 %v3214
    %v3347 = vunpack.c.l.b16 %v3215
    %v3348 = vunpack.c.l.b16 %v3216
    %v3349 = vunpack.c.l.b16 %v3217
    %v3350 = vunpack.c.l.b16 %v3218
    %v3351 = vunpack.c.l.b16 %v3219
    %v3352 = vunpack.c.l.b16 %v3220
    %v3353 = vunpack.c.l.b16 %v3221
    %v3354 = vunpack.c.l.b16 %v3222
    %v3355 = vunpack.c.l.b16 %v3223
    %v3356 = vunpack.c.l.b16 %v3224
    %v3357 = vunpack.c.l.b16 %v3225
    %v3358 = vunpack.c.l.b16 %v3226
    %v3359 = vunpack.c.l.b16 %v3227
    %v3360 = vunpack.c.l.b16 %v3228
    %v3361 = vunpack.c.l.b16 %v3229
    %v3362 = vunpack.c.l.b16 %v3230
    %v3363 = vunpack.c.l.b16 %v3231
    %v3364 = vunpack.c.l.b16 %v3232
    %v3365 = vunpack.c.l.b16 %v3233
    %v3366 = vunpack.c.l.b16 %v3234
    %v3367 = vunpack.c.l.b16 %v3235
    %v3368 = vunpack.c.l.b16 %v3236
    %v3369 = vunpack.c.l.b16 %v3237
    %v3370 = vunpack.c.l.b16 %v3238
    %v3371 = vunpack.c.l.b16 %v3239
    %v3372 = vunpack.c.l.b16 %v3240
    %v3373 = vunpack.c.l.b16 %v3241
    %v3374 = vunpack.c.l.b16 %v3242
    %v3375 = vunpack.c.l.b16 %v3243
    %v3376 = vunpack.c.l.b16 %v3244
    %v3377 = vunpack.c.l.b16 %v3245
    %v3378 = vunpack.c.l.b16 %v3246
    %v3379 = vunpack.c.l.b16 %v3247
    %v3380 = vunpack.c.l.b16 %v3248
    %v3381 = vunpack.c.l.b16 %v3249
    %v3382 = vunpack.c.l.b16 %v3250
    %v3383 = vunpack.c.l.b16 %v3251
    %v3384 = vunpack.c.l.b16 %v3252
    %v3385 = vunpack.c.l.b16 %v3253
    %v3386 = vunpack.c.l.b16 %v3254
    %v3387 = vunpack.c.l.b16 %v3255
    %v3388 = vunpack.c.l.b16 %v3256
    %v3389 = vunpack.c.l.b16 %v3257
    %v3390 = vunpack.c.l.b16 %v3258
    %v3391 = vunpack.c.l.b16 %v3259
    %v3392 = vunpack.c.l.b16 %v3260
    %v3393 = vunpack.c.l.b16 %v3261
    %v3394 = vunpack.c.l.b16 %v3262
    %v3395 = vunpack.c.l.b16 %v3263
    %v3396 = vunpack.c.l.b16 %v3264
    %v3397 = vunpack.c.l.b16 %v3265
    %vm3398 = vcmask 1041409
    %v3399 = vsel %vm3398, %v3335, %v3334
    %vm3400 = vcmask 1042434
    %v3401 = vsel %vm3400, %v3336, %v3399
    %vm3402 = vcmask 1043459
    %v3403 = vsel %vm3402, %v3337, %v3401
    %vm3404 = vcmask 1044484
    %v3405 = vsel %vm3404, %v3338, %v3403
    %vm3406 = vcmask 1045509
    %v3407 = vsel %vm3406, %v3339, %v3405
    %vm3408 = vcmask 1046534
    %v3409 = vsel %vm3408, %v3340, %v3407
    %vm3410 = vcmask 1047559
    %v3411 = vsel %vm3410, %v3341, %v3409
    %v3412 = vsel %vm3398, %v3343, %v3342
    %v3413 = vsel %vm3400, %v3344, %v3412
    %v3414 = vsel %vm3402, %v3345, %v3413
    %v3415 = vsel %vm3404, %v3346, %v3414
    %v3416 = vsel %vm3406, %v3347, %v3415
    %v3417 = vsel %vm3408, %v3348, %v3416
    %v3418 = vsel %vm3410, %v3349, %v3417
    %v3419 = vsel %vm3398, %v3351, %v3350
    %v3420 = vsel %vm3400, %v3352, %v3419
    %v3421 = vsel %vm3402, %v3353, %v3420
    %v3422 = vsel %vm3404, %v3354, %v3421
    %v3423 = vsel %vm3406, %v3355, %v3422
    %v3424 = vsel %vm3408, %v3356, %v3423
    %v3425 = vsel %vm3410, %v3357, %v3424
    %v3426 = vsel %vm3398, %v3359, %v3358
    %v3427 = vsel %vm3400, %v3360, %v3426
    %v3428 = vsel %vm3402, %v3361, %v3427
    %v3429 = vsel %vm3404, %v3362, %v3428
    %v3430 = vsel %vm3406, %v3363, %v3429
    %v3431 = vsel %vm3408, %v3364, %v3430
    %v3432 = vsel %vm3410, %v3365, %v3431
    %v3433 = vsel %vm3398, %v3367, %v3366
    %v3434 = vsel %vm3400, %v3368, %v3433
    %v3435 = vsel %vm3402, %v3369, %v3434
    %v3436 = vsel %vm3404, %v3370, %v3435
    %v3437 = vsel %vm3406, %v3371, %v3436
    %v3438 = vsel %vm3408, %v3372, %v3437
    %v3439 = vsel %vm3410, %v3373, %v3438
    %v3440 = vsel %vm3398, %v3375, %v3374
    %v3441 = vsel %vm3400, %v3376, %v3440
    %v3442 = vsel %vm3402, %v3377, %v3441
    %v3443 = vsel %vm3404, %v3378, %v3442
    %v3444 = vsel %vm3406, %v3379, %v3443
    %v3445 = vsel %vm3408, %v3380, %v3444
    %v3446 = vsel %vm3410, %v3381, %v3445
    %v3447 = vsel %vm3398, %v3383, %v3382
    %v3448 = vsel %vm3400, %v3384, %v3447
    %v3449 = vsel %vm3402, %v3385, %v3448
    %v3450 = vsel %vm3404, %v3386, %v3449
    %v3451 = vsel %vm3406, %v3387, %v3450
    %v3452 = vsel %vm3408, %v3388, %v3451
    %v3453 = vsel %vm3410, %v3389, %v3452
    %v3454 = vsel %vm3398, %v3391, %v3390
    %v3455 = vsel %vm3400, %v3392, %v3454
    %v3456 = vsel %vm3402, %v3393, %v3455
    %v3457 = vsel %vm3404, %v3394, %v3456
    %v3458 = vsel %vm3406, %v3395, %v3457
    %v3459 = vsel %vm3408, %v3396, %v3458
    %v3460 = vsel %vm3410, %v3397, %v3459
    %v3461 = vpack.c.b16 %v3418, %v3411
    %v3462 = vpack.c.b16 %v3432, %v3425
    %v3463 = vpack.c.b16 %v3446, %v3439
    %v3464 = vpack.c.b16 %v3460, %v3453
    %v3469 = vunpack.c.l.b16 %v3266
    %v3470 = vunpack.c.h.b16 %v3266
    %v3471 = vunpack.c.l.b16 %v3267
    %v3472 = vunpack.c.h.b16 %v3267
    %v3473 = vunpack.c.l.b16 %v3268
    %v3474 = vunpack.c.h.b16 %v3268
    %v3475 = vunpack.c.l.b16 %v3269
    %v3476 = vunpack.c.h.b16 %v3269
    %v3477 = vpack.c.b16 %v3471, %v3469
    %v3478 = vpack.c.b16 %v3472, %v3470
    %v3479 = vpack.c.b16 %v3475, %v3473
    %v3480 = vpack.c.b16 %v3476, %v3474
    %v3486 = vsel %vm123, %v3461, 0
    %v3489 = vsel %vm123, %v3462, 0
    %v3492 = vsel %vm123, %v3463, 0
    %v3495 = vsel %vm123, %v3464, 0
    %3497 = vmatpush.bf16.msra.mxu0 0
    %3498 = vmatpush.bf16.msra.mxu0 0
    %3499 = vmatpush.bf16.msra.mxu0 0
    %3500 = vmatpush.bf16.msra.mxu0 0
    %3501 = vmatpush.bf16.msra.mxu0 0
    %3502 = vmatpush.bf16.msra.mxu0 0
    %3503 = vmatpush.bf16.msra.mxu0 %v3479
    %3504 = vmatpush.bf16.msra.mxu0 %v3477
    %3505 = vmatmul.bf16.gmra.mxu0 %v3486
    %v3506 = vpop.f32.mrf.mxu0
    %v3507 = vadd.f32 0.0, %v3506
    %v3508 = vpop.f32.mrf.mxu0
    %v3509 = vadd.f32 0.0, %v3508
    %3510 = vmatmul.bf16.gmra.mxu0 %v3489
    %v3511 = vpop.f32.mrf.mxu0
    %v3512 = vadd.f32 0.0, %v3511
    %v3513 = vpop.f32.mrf.mxu0
    %v3514 = vadd.f32 0.0, %v3513
    %3515 = vmatmul.bf16.gmra.mxu0 %v3492
    %v3516 = vpop.f32.mrf.mxu0
    %v3517 = vpop.f32.mrf.mxu0
    %3518 = vmatmul.bf16.gmra.mxu0 %v3495
    %v3519 = vpop.f32.mrf.mxu0
    %v3520 = vpop.f32.mrf.mxu0
    %3521 = vdwg.mxu0
    %3522 = vmatpush.bf16.msra.mxu0 0
    %3523 = vmatpush.bf16.msra.mxu0 0
    %3524 = vmatpush.bf16.msra.mxu0 0
    %3525 = vmatpush.bf16.msra.mxu0 0
    %3526 = vmatpush.bf16.msra.mxu0 0
    %3527 = vmatpush.bf16.msra.mxu0 0
    %3528 = vmatpush.bf16.msra.mxu0 %v3480
    %3529 = vmatpush.bf16.msra.mxu0 %v3478
    %3530 = vmatmul.bf16.gmra.mxu0 %v3486
    %v3531 = vpop.f32.mrf.mxu0
    %v3532 = vpop.f32.mrf.mxu0
    %3533 = vmatmul.bf16.gmra.mxu0 %v3489
    %v3534 = vpop.f32.mrf.mxu0
    %v3535 = vpop.f32.mrf.mxu0
    %3536 = vmatmul.bf16.gmra.mxu0 %v3492
    %v3537 = vpop.f32.mrf.mxu0
    %v3538 = vadd.f32 0.0, %v3537
    %v3539 = vpop.f32.mrf.mxu0
    %v3540 = vadd.f32 0.0, %v3539
    %3541 = vmatmul.bf16.gmra.mxu0 %v3495
    %v3542 = vpop.f32.mrf.mxu0
    %v3543 = vadd.f32 0.0, %v3542
    %v3544 = vpop.f32.mrf.mxu0
    %v3545 = vadd.f32 0.0, %v3544
    %3546 = vdwg.mxu0
    %3548 = vrot.lane.b32.xlu0 %v3509, 96
    %v3549 = vpop.permute.xlu0 %3548
    %3552 = vrot.lane.b32.xlu0 %v3512, 64
    %v3553 = vpop.permute.xlu0 %3552
    %3556 = vrot.lane.b32.xlu0 %v3514, 32
    %v3557 = vpop.permute.xlu0 %3556
    %3560 = vrot.lane.b32.xlu0 %v3540, 96
    %v3561 = vpop.permute.xlu0 %3560
    %3564 = vrot.lane.b32.xlu0 %v3543, 64
    %v3565 = vpop.permute.xlu0 %3564
    %3568 = vrot.lane.b32.xlu0 %v3545, 32
    %v3569 = vpop.permute.xlu0 %3568
    %v3571 = vld [vmem:[%s4] sm:$0x1]
    %v3572 = vld [vmem:[%s4 + $0x1] sm:$0x1]
    %v3573 = vld [vmem:[%s4 + $0x2] sm:$0x1]
    %v3574 = vld [vmem:[%s4 + $0x3] sm:$0x1]
    %v3575 = vld [vmem:[%s4 + $0x4] sm:$0x1]
    %v3576 = vld [vmem:[%s4 + $0x5] sm:$0x1]
    %v3577 = vld [vmem:[%s4 + $0x6] sm:$0x1]
    %v3578 = vld [vmem:[%s4 + $0x7] sm:$0x1]
    %v3587 = vperm.slane %v3571, 0
    %v3588 = vperm.slane %v3572, 0
    %v3589 = vperm.slane %v3573, 0
    %v3590 = vperm.slane %v3574, 0
    %v3591 = vperm.slane %v3575, 0
    %v3592 = vperm.slane %v3576, 0
    %v3593 = vperm.slane %v3577, 0
    %v3594 = vperm.slane %v3578, 0
    %v3603 = vadd.f32 %v3507, %v3587
    %v3604 = vadd.f32 %v3549, %v3588
    %v3605 = vadd.f32 %v3553, %v3589
    %v3606 = vadd.f32 %v3557, %v3590
    %v3607 = vadd.f32 %v3538, %v3591
    %v3608 = vadd.f32 %v3561, %v3592
    %v3609 = vadd.f32 %v3565, %v3593
    %v3610 = vadd.f32 %v3569, %v3594
    %3611 = vst.msk [vmem:[#allocation2] sm:$0xff] %vm123, %v3603
    %3612 = vst.msk [vmem:[#allocation2 + $0x8] sm:$0xff] %vm123, %v3604
    %3613 = vst.msk [vmem:[#allocation2 + $0x10] sm:$0xff] %vm123, %v3605
    %3614 = vst.msk [vmem:[#allocation2 + $0x18] sm:$0xff] %vm123, %v3606
    %3615 = vst.msk [vmem:[#allocation2 + $0x20] sm:$0xff] %vm123, %v3607
    %3616 = vst.msk [vmem:[#allocation2 + $0x28] sm:$0xff] %vm123, %v3608
    %3617 = vst.msk [vmem:[#allocation2 + $0x30] sm:$0xff] %vm123, %v3609
    %3618 = vst.msk [vmem:[#allocation2 + $0x38] sm:$0xff] %vm123, %v3610
    // Predicated region
    $region34: #{multiverse_forward.1} parent=1 // pred_check
      _
    $region35: #{multiverse_forward.1} parent=1 // pred_check_branch
      %3620 = sbr.rel (0) target = $region37
    $region36: #{multiverse_forward.1} parent=1 // pred_region
      %3622 = vsyncadd [#allocation3], 0
      %s3623 = sshll.u32 [#allocation2], 4
      %s3624 = int_to_ptr.vmem [resolvable:$true] %s3623
      %s3625 = sshll.u32 %s8, 4
      %s3626 = int_to_ptr.hbm [resolvable:$true] %s3625
      %3631 = dma.vmem_to_hbm [thread:$0]  %s3624, 1024, %s3626, [#allocation3], 128, 128, 8
    $region37: #{multiverse_forward.1} parent=1 // pred_fallthru
      _
    // Predicated region
    $region38: #{multiverse_forward.1} parent=1 // pred_check
      _
    $region39: #{multiverse_forward.1} parent=1 // pred_check_branch
      %3633 = sbr.rel (0) target = $region41
    $region40: #{multiverse_forward.1} parent=1 // pred_region
      %3635 = dma.done [#allocation3], 1024
    $region41: #{multiverse_forward.1} parent=1 // pred_fallthru
      _
    %3636 = vsyncpa [#allocation3], 1

</llo_original>
